<compile_context>
chip_gen: v6e
topology: v6e:2x2x1
jax: 0.10.0
libtpu: 0.0.40
codegen_flags: <defaults>
</compile_context>

<pallas_src>
import functools

import jax
import jax.numpy as jnp
from jax.experimental import pallas as pl
from jax.experimental.pallas import tpu as pltpu


def _convlstm_kernel(x_ref, h_ref, c_ref, w_ref, b_ref, out_ref, comb_scr,
                     *, H, W, hid, cin, kh, kw, cpad):
    """One batch element per grid step.

    x_ref    : (1, H, W, cin)          bf16 input, NHWC
    h_ref    : (1, H, W, hid)          bf16 hidden state, NHWC
    c_ref    : (1, hid, H*W)           f32 cell state (channels-on-sublanes)
    w_ref    : (kh*kw*cpad, 4*hid)     bf16 lane-padded im2col conv weights
    b_ref    : (1, 4*hid)              f32 conv bias
    out_ref  : (1, 2*hid, H*W)         f32 [h_next ; c_next], lane-dense
    comb_scr : (H+kh-1, W+kw-1, cpad)  bf16 VMEM scratch (padded [x ; h])
    """
    ph, pw = kh // 2, kw // 2

    # Zero the whole padded scratch (spatial halo + padded channel lanes),
    # then drop x and h straight into their channel slots -- no concat
    # materialization.  Full zero is ~a few dozen vector stores at this size
    # and keeps the halo/pad invariant valid under per-core scratch reuse.
    comb_scr[...] = jnp.zeros_like(comb_scr)
    comb_scr[ph:ph + H, pw:pw + W, 0:cin] = x_ref[0].astype(comb_scr.dtype)
    comb_scr[ph:ph + H, pw:pw + W, cin:cin + hid] = (
        h_ref[0].astype(comb_scr.dtype))

    # im2col with a 128-lane-aligned channel axis: each shifted patch is a
    # whole lane tile, so the concat along lanes and the (H,W,.)->(H*W,.)
    # reshape are pure tile stacking (no relayout copies).
    patches = [comb_scr[dh:dh + H, dw:dw + W, :]
               for dh in range(kh) for dw in range(kw)]
    col = jnp.concatenate(patches, axis=-1).reshape(H * W, kh * kw * cpad)

    # ONE bf16 MXU matmul with f32 accumulation (K = kh*kw*cpad; the padded
    # K-rows of w are zero so numerics match the unpadded conv).
    acc = jnp.dot(col, w_ref[...], preferred_element_type=jnp.float32)
    acc = acc + b_ref[0, :]

    # Spatial-on-lanes layout: one XLU transpose -> (4*hid, H*W) = (128, 256)
    # so each gate is a full-lane-width (hid, H*W) tile and the output store
    # is lane-dense (multiple of 128 lanes, no masked vst).
    acc_t = acc.T

    # Gate order matches torch.split: i, f, o, g (sublane-aligned 32-row
    # blocks).  i|f|o share one fused sigmoid pass; all gate math stays f32.
    sig = jax.nn.sigmoid(acc_t[:3 * hid, :])
    i = sig[0 * hid:1 * hid, :]
    f = sig[1 * hid:2 * hid, :]
    o = sig[2 * hid:3 * hid, :]
    g = jnp.tanh(acc_t[3 * hid:, :])

    c_cur = c_ref[0]                       # (hid, H*W) f32, lane-dense
    c_next = f * c_cur + i * g
    h_next = o * jnp.tanh(c_next)

    # Single lane-dense store of both outputs stacked on the sublane axis.
    out_ref[0] = jnp.concatenate([h_next, c_next], axis=0)


def pack_conv_lstm_weights(weight, bias, kernel_size, input_dim, hidden_dim):
    """OIHW conv weight -> lane-padded im2col matrix (bf16) + f32 bias.

    Hoist this out of the per-timestep call when running inside a scan.
    """
    kh, kw = kernel_size
    ctot = input_dim + hidden_dim
    cpad = ((ctot + 127) // 128) * 128
    w_t = jnp.transpose(weight, (2, 3, 1, 0))            # (kh, kw, ctot, 4*hid)
    w_t = jnp.pad(w_t, ((0, 0), (0, 0), (0, cpad - ctot), (0, 0)))
    w_k = w_t.reshape(kh * kw * cpad, 4 * hidden_dim).astype(jnp.bfloat16)
    b_k = bias.reshape(1, 4 * hidden_dim).astype(jnp.float32)
    return w_k, b_k, cpad


def conv_lstm_cell(x_nchw, h_nchw, c_nchw, weight, bias, kernel_size):
    """ConvLSTMCell.forward.

    x_nchw : (B, C_in, H, W)              input (PyTorch NCHW)
    h_nchw : (B, hid, H, W)               hidden state
    c_nchw : (B, hid, H, W)               cell state
    weight : (4*hid, C_in+hid, kH, kW)    torch Conv2d weight (OIHW)
    bias   : (4*hid,)
    returns (h_next, c_next) in NCHW.
    """
    kh, kw = kernel_size
    assert kh % 2 == 1 and kw % 2 == 1, "ConvLSTMCell uses odd 'same' kernels"
    B, cin, H, W = x_nchw.shape
    hid = h_nchw.shape[1]
    HW = H * W

    # NCHW -> NHWC glue for x/h (bf16 MXU operands); c is a pure reshape of
    # NCHW (channels-on-sublanes, spatial-on-lanes) and stays f32.
    x = jnp.transpose(x_nchw, (0, 2, 3, 1)).astype(jnp.bfloat16)
    h = jnp.transpose(h_nchw, (0, 2, 3, 1)).astype(jnp.bfloat16)
    c = c_nchw.reshape(B, hid, HW).astype(jnp.float32)

    w_k, b_k, cpad = pack_conv_lstm_weights(weight, bias, (kh, kw), cin, hid)
    K = kh * kw * cpad

    kernel = functools.partial(_convlstm_kernel, H=H, W=W, hid=hid, cin=cin,
                               kh=kh, kw=kw, cpad=cpad)

    hc = pl.pallas_call(
        kernel,
        out_shape=jax.ShapeDtypeStruct((B, 2 * hid, HW), jnp.float32),
        grid=(B,),
        in_specs=[
            pl.BlockSpec((1, H, W, cin), lambda b: (b, 0, 0, 0)),
            pl.BlockSpec((1, H, W, hid), lambda b: (b, 0, 0, 0)),
            pl.BlockSpec((1, hid, HW), lambda b: (b, 0, 0)),
            pl.BlockSpec((K, 4 * hid), lambda b: (0, 0)),
            pl.BlockSpec((1, 4 * hid), lambda b: (0, 0)),
        ],
        out_specs=pl.BlockSpec((1, 2 * hid, HW), lambda b: (b, 0, 0)),
        scratch_shapes=[
            pltpu.VMEM((H + kh - 1, W + kw - 1, cpad), jnp.bfloat16),
        ],
        compiler_params=pltpu.CompilerParams(
            dimension_semantics=("parallel",)),
    )(x, h, c, w_k, b_k)

    # (B, 2*hid, H*W) is already NCHW-flattened: pure reshapes, no transposes.
    h_next = hc[:, :hid, :].reshape(B, hid, H, W)
    c_next = hc[:, hid:, :].reshape(B, hid, H, W)
    return h_next, c_next


def _reference(x, h, c, weight, bias, kernel_size):
    """Pure-JAX f32 reference, mirrors the PyTorch forward in NCHW."""
    kh, kw = kernel_size
    comb = jnp.concatenate([x, h], axis=1)
    out = jax.lax.conv_general_dilated(
        comb, weight, window_strides=(1, 1),
        padding=[(kh // 2, kh // 2), (kw // 2, kw // 2)],
        dimension_numbers=("NCHW", "OIHW", "NCHW"),
        precision=jax.lax.Precision.HIGHEST)
    out = out + bias[None, :, None, None]
    hid = h.shape[1]
    cc_i, cc_f, cc_o, cc_g = jnp.split(out, 4, axis=1)
    i = jax.nn.sigmoid(cc_i)
    f = jax.nn.sigmoid(cc_f)
    o = jax.nn.sigmoid(cc_o)
    g = jnp.tanh(cc_g)
    c_next = f * c + i * g
    h_next = o * jnp.tanh(c_next)
    return h_next, c_next


if __name__ == "__main__":
    # Small shapes consistent with the module: batch=2, in-channels=4,
    # hidden=32, 16x16 spatial, 3x3 kernel, bias=True.
    B, CIN, HID, H, W = 2, 4, 32, 16, 16
    KSIZE = (3, 3)

    key = jax.random.PRNGKey(0)
    kx, khh, kcc, kww, kbb = jax.random.split(key, 5)

    x = jax.random.normal(kx, (B, CIN, H, W), jnp.float32)
    h_cur = jax.random.normal(khh, (B, HID, H, W), jnp.float32)
    c_cur = jax.random.normal(kcc, (B, HID, H, W), jnp.float32)

    # Deterministic synthetic parameters (torch Conv2d layout: OIHW).
    weight = 0.1 * jax.random.normal(
        kww, (4 * HID, CIN + HID, KSIZE[0], KSIZE[1]), jnp.float32)
    bias = 0.1 * jax.random.normal(kbb, (4 * HID,), jnp.float32)

    h_next, c_next = conv_lstm_cell(x, h_cur, c_cur, weight, bias, KSIZE)
    jax.block_until_ready((h_next, c_next))

    h_exp, c_exp = _reference(x, h_cur, c_cur, weight, bias, KSIZE)
    assert h_next.shape == (B, HID, H, W) and c_next.shape == (B, HID, H, W)
    # bf16 MXU operands (f32 accumulation) vs an all-f32 reference -> 3e-2
    # tolerance (observed max error ~1-2e-2); zero K-padding does not change
    # the numerics.
    assert jnp.allclose(h_next, h_exp, atol=3e-2, rtol=3e-2)
    assert jnp.allclose(c_next, c_exp, atol=3e-2, rtol=3e-2)

    print("KERNEL_OK")
</pallas_src>

<mosaic_0001>
module attributes {stable_mosaic.version = 11 : i64} {
  func.func @_convlstm_kernel(%arg0: i32, %arg1: memref<1x16x16x4xbf16, #tpu.memory_space<vmem>>, %arg2: memref<1x16x16x32xbf16, #tpu.memory_space<vmem>>, %arg3: memref<1x32x256xf32, #tpu.memory_space<vmem>>, %arg4: memref<1152x128xbf16, #tpu.memory_space<vmem>>, %arg5: memref<1x128xf32, #tpu.memory_space<vmem>>, %arg6: memref<1x64x256xf32, #tpu.memory_space<vmem>>, %arg7: memref<18x18x128xbf16, #tpu.memory_space<vmem>>) attributes {dimension_semantics = [#tpu.dimension_semantics<parallel>], iteration_bounds = array<i64: 2>, scalar_prefetch = 0 : i64, scratch_operands = 1 : i64, tpu.core_type = #tpu.core_type<tc>, window_params = [{transform_indices = @transform_0, window_bounds = array<i64: 1, 16, 16, 4>}, {transform_indices = @transform_1, window_bounds = array<i64: 1, 16, 16, 32>}, {transform_indices = @transform_2, window_bounds = array<i64: 1, 32, 256>}, {pipeline_mode = #tpu.pipeline_mode<synchronous>, transform_indices = @transform_3, window_bounds = array<i64: 1152, 128>}, {pipeline_mode = #tpu.pipeline_mode<synchronous>, transform_indices = @transform_4, window_bounds = array<i64: 1, 128>}, {transform_indices = @transform_5, window_bounds = array<i64: 1, 64, 256>}]} {
    %cst = arith.constant 0.000000e+00 : bf16
    %0 = vector.broadcast %cst : bf16 to vector<18x18x128xbf16>
    %c0 = arith.constant 0 : index
    %c0_0 = arith.constant 0 : index
    %c0_1 = arith.constant 0 : index
    %1 = vector.load %arg7[%c0, %c0_0, %c0_1] : memref<18x18x128xbf16, #tpu.memory_space<vmem>>, vector<18x18x128xbf16>
    tpu.vector_store %arg7[%c0, %c0_0, %c0_1], %0 {strides = array<i32>} : memref<18x18x128xbf16, #tpu.memory_space<vmem>>, vector<18x18x128xbf16>,
    %c0_2 = arith.constant 0 : index
    %c0_3 = arith.constant 0 : index
    %c0_4 = arith.constant 0 : index
    %c0_5 = arith.constant 0 : index
    %2 = vector.load %arg1[%c0_2, %c0_3, %c0_4, %c0_5] : memref<1x16x16x4xbf16, #tpu.memory_space<vmem>>, vector<1x16x16x4xbf16>
    %3 = vector.shape_cast %2 : vector<1x16x16x4xbf16> to vector<16x16x4xbf16>
    %c1 = arith.constant 1 : index
    %c1_6 = arith.constant 1 : index
    %c0_7 = arith.constant 0 : index
    %4 = vector.load %arg7[%c1, %c1_6, %c0_7] : memref<18x18x128xbf16, #tpu.memory_space<vmem>>, vector<16x16x4xbf16>
    tpu.vector_store %arg7[%c1, %c1_6, %c0_7], %3 {strides = array<i32>} : memref<18x18x128xbf16, #tpu.memory_space<vmem>>, vector<16x16x4xbf16>,
    %c0_8 = arith.constant 0 : index
    %c0_9 = arith.constant 0 : index
    %c0_10 = arith.constant 0 : index
    %c0_11 = arith.constant 0 : index
    %5 = vector.load %arg2[%c0_8, %c0_9, %c0_10, %c0_11] : memref<1x16x16x32xbf16, #tpu.memory_space<vmem>>, vector<1x16x16x32xbf16>
    %6 = vector.shape_cast %5 : vector<1x16x16x32xbf16> to vector<16x16x32xbf16>
    %c1_12 = arith.constant 1 : index
    %c1_13 = arith.constant 1 : index
    %c4 = arith.constant 4 : index
    %7 = vector.load %arg7[%c1_12, %c1_13, %c4] : memref<18x18x128xbf16, #tpu.memory_space<vmem>>, vector<16x16x32xbf16>
    tpu.vector_store %arg7[%c1_12, %c1_13, %c4], %6 {strides = array<i32>} : memref<18x18x128xbf16, #tpu.memory_space<vmem>>, vector<16x16x32xbf16>,
    %c0_14 = arith.constant 0 : index
    %c0_15 = arith.constant 0 : index
    %c0_16 = arith.constant 0 : index
    %8 = vector.load %arg7[%c0_14, %c0_15, %c0_16] : memref<18x18x128xbf16, #tpu.memory_space<vmem>>, vector<16x16x128xbf16>
    %c0_17 = arith.constant 0 : index
    %c1_18 = arith.constant 1 : index
    %c0_19 = arith.constant 0 : index
    %9 = vector.load %arg7[%c0_17, %c1_18, %c0_19] : memref<18x18x128xbf16, #tpu.memory_space<vmem>>, vector<16x16x128xbf16>
    %c0_20 = arith.constant 0 : index
    %c2 = arith.constant 2 : index
    %c0_21 = arith.constant 0 : index
    %10 = vector.load %arg7[%c0_20, %c2, %c0_21] : memref<18x18x128xbf16, #tpu.memory_space<vmem>>, vector<16x16x128xbf16>
    %c1_22 = arith.constant 1 : index
    %c0_23 = arith.constant 0 : index
    %c0_24 = arith.constant 0 : index
    %11 = vector.load %arg7[%c1_22, %c0_23, %c0_24] : memref<18x18x128xbf16, #tpu.memory_space<vmem>>, vector<16x16x128xbf16>
    %c1_25 = arith.constant 1 : index
    %c1_26 = arith.constant 1 : index
    %c0_27 = arith.constant 0 : index
    %12 = vector.load %arg7[%c1_25, %c1_26, %c0_27] : memref<18x18x128xbf16, #tpu.memory_space<vmem>>, vector<16x16x128xbf16>
    %c1_28 = arith.constant 1 : index
    %c2_29 = arith.constant 2 : index
    %c0_30 = arith.constant 0 : index
    %13 = vector.load %arg7[%c1_28, %c2_29, %c0_30] : memref<18x18x128xbf16, #tpu.memory_space<vmem>>, vector<16x16x128xbf16>
    %c2_31 = arith.constant 2 : index
    %c0_32 = arith.constant 0 : index
    %c0_33 = arith.constant 0 : index
    %14 = vector.load %arg7[%c2_31, %c0_32, %c0_33] : memref<18x18x128xbf16, #tpu.memory_space<vmem>>, vector<16x16x128xbf16>
    %c2_34 = arith.constant 2 : index
    %c1_35 = arith.constant 1 : index
    %c0_36 = arith.constant 0 : index
    %15 = vector.load %arg7[%c2_34, %c1_35, %c0_36] : memref<18x18x128xbf16, #tpu.memory_space<vmem>>, vector<16x16x128xbf16>
    %c2_37 = arith.constant 2 : index
    %c2_38 = arith.constant 2 : index
    %c0_39 = arith.constant 0 : index
    %16 = vector.load %arg7[%c2_37, %c2_38, %c0_39] : memref<18x18x128xbf16, #tpu.memory_space<vmem>>, vector<16x16x128xbf16>
    %17 = tpu.concatenate %8, %9, %10, %11, %12, %13, %14, %15, %16 in 2 : vector<16x16x128xbf16>, vector<16x16x128xbf16>, vector<16x16x128xbf16>, vector<16x16x128xbf16>, vector<16x16x128xbf16>, vector<16x16x128xbf16>, vector<16x16x128xbf16>, vector<16x16x128xbf16>, vector<16x16x128xbf16> -> vector<16x16x1152xbf16>
    %18 = vector.shape_cast %17 : vector<16x16x1152xbf16> to vector<256x1152xbf16>
    %c0_40 = arith.constant 0 : index
    %c0_41 = arith.constant 0 : index
    %19 = vector.load %arg4[%c0_40, %c0_41] : memref<1152x128xbf16, #tpu.memory_space<vmem>>, vector<1152x128xbf16>
    %cst_42 = arith.constant dense<0.000000e+00> : vector<256x128xf32>
    %20 = tpu.matmul %18, %19, %cst_42 {dimension_numbers = #tpu.dot_dimension_numbers<[1], [0], [0], [1], [0, 0, 1, 1], [], []>} : vector<256x1152xbf16>, vector<1152x128xbf16>, vector<256x128xf32> -> vector<256x128xf32>
    %c0_43 = arith.constant 0 : index
    %c0_44 = arith.constant 0 : index
    %21 = vector.load %arg5[%c0_43, %c0_44] : memref<1x128xf32, #tpu.memory_space<vmem>>, vector<1x128xf32>
    %22 = vector.shape_cast %21 : vector<1x128xf32> to vector<128xf32>
    %23 = vector.shape_cast %22 : vector<128xf32> to vector<1x128xf32>
    %24 = vector.broadcast %23 : vector<1x128xf32> to vector<256x128xf32>
    %25 = arith.addf %20, %24 : vector<256x128xf32>
    %26 = tpu.transpose %25, [1, 0] : vector<256x128xf32> -> vector<128x256xf32>
    %27 = vector.extract_strided_slice %26 {offsets = [0, 0], sizes = [96, 256], strides = [1, 1]} : vector<128x256xf32> to vector<96x256xf32>
    %28 = arith.negf %27 : vector<96x256xf32>
    %29 = math.exp %28 : vector<96x256xf32>
    %cst_45 = arith.constant 1.000000e+00 : f32
    %30 = vector.broadcast %cst_45 : f32 to vector<96x256xf32>
    %31 = arith.addf %30, %29 : vector<96x256xf32>
    %32 = arith.divf %30, %31 : vector<96x256xf32>
    %33 = vector.extract_strided_slice %32 {offsets = [0, 0], sizes = [32, 256], strides = [1, 1]} : vector<96x256xf32> to vector<32x256xf32>
    %34 = vector.extract_strided_slice %32 {offsets = [32, 0], sizes = [32, 256], strides = [1, 1]} : vector<96x256xf32> to vector<32x256xf32>
    %35 = vector.extract_strided_slice %32 {offsets = [64, 0], sizes = [32, 256], strides = [1, 1]} : vector<96x256xf32> to vector<32x256xf32>
    %36 = vector.extract_strided_slice %26 {offsets = [96, 0], sizes = [32, 256], strides = [1, 1]} : vector<128x256xf32> to vector<32x256xf32>
    %37 = math.tanh %36 : vector<32x256xf32>
    %c0_46 = arith.constant 0 : index
    %c0_47 = arith.constant 0 : index
    %c0_48 = arith.constant 0 : index
    %38 = vector.load %arg3[%c0_46, %c0_47, %c0_48] : memref<1x32x256xf32, #tpu.memory_space<vmem>>, vector<1x32x256xf32>
    %39 = vector.shape_cast %38 : vector<1x32x256xf32> to vector<32x256xf32>
    %40 = arith.mulf %34, %39 : vector<32x256xf32>
    %41 = arith.mulf %33, %37 : vector<32x256xf32>
    %42 = arith.addf %40, %41 : vector<32x256xf32>
    %43 = math.tanh %42 : vector<32x256xf32>
    %44 = arith.mulf %35, %43 : vector<32x256xf32>
    %45 = tpu.concatenate %44, %42 in 0 : vector<32x256xf32>, vector<32x256xf32> -> vector<64x256xf32>
    %c0_49 = arith.constant 0 : index
    %c0_50 = arith.constant 0 : index
    %c0_51 = arith.constant 0 : index
    %46 = vector.load %arg6[%c0_49, %c0_50, %c0_51] : memref<1x64x256xf32, #tpu.memory_space<vmem>>, vector<1x64x256xf32>
    %47 = vector.shape_cast %46 : vector<1x64x256xf32> to vector<64x256xf32>
    %48 = vector.shape_cast %45 : vector<64x256xf32> to vector<1x64x256xf32>
    tpu.vector_store %arg6[%c0_49, %c0_50, %c0_51], %48 {strides = array<i32>} : memref<1x64x256xf32, #tpu.memory_space<vmem>>, vector<1x64x256xf32>,
    return
  }
  func.func @transform_0(%arg0: i32) -> (i32, i32, i32, i32) {
    %c0_i32 = arith.constant 0 : i32
    %c0_i32_0 = arith.constant 0 : i32
    %c0_i32_1 = arith.constant 0 : i32
    %c0_i32_2 = arith.constant 0 : i32
    return %arg0, %c0_i32, %c0_i32_0, %c0_i32_1 : i32, i32, i32, i32
  }
  func.func @transform_1(%arg0: i32) -> (i32, i32, i32, i32) {
    %c0_i32 = arith.constant 0 : i32
    %c0_i32_0 = arith.constant 0 : i32
    %c0_i32_1 = arith.constant 0 : i32
    %c0_i32_2 = arith.constant 0 : i32
    return %arg0, %c0_i32, %c0_i32_0, %c0_i32_1 : i32, i32, i32, i32
  }
  func.func @transform_2(%arg0: i32) -> (i32, i32, i32) {
    %c0_i32 = arith.constant 0 : i32
    %c0_i32_0 = arith.constant 0 : i32
    %c0_i32_1 = arith.constant 0 : i32
    return %arg0, %c0_i32, %c0_i32_0 : i32, i32, i32
  }
  func.func @transform_3(%arg0: i32) -> (i32, i32) {
    %c0_i32 = arith.constant 0 : i32
    %c0_i32_0 = arith.constant 0 : i32
    %c0_i32_1 = arith.constant 0 : i32
    return %c0_i32, %c0_i32_0 : i32, i32
  }
  func.func @transform_4(%arg0: i32) -> (i32, i32) {
    %c0_i32 = arith.constant 0 : i32
    %c0_i32_0 = arith.constant 0 : i32
    %c0_i32_1 = arith.constant 0 : i32
    return %c0_i32, %c0_i32_0 : i32, i32
  }
  func.func @transform_5(%arg0: i32) -> (i32, i32, i32) {
    %c0_i32 = arith.constant 0 : i32
    %c0_i32_0 = arith.constant 0 : i32
    %c0_i32_1 = arith.constant 0 : i32
    return %arg0, %c0_i32, %c0_i32_0 : i32, i32, i32
  }
}

</mosaic_0001>

<llo_original>
// kernel: tpu_custom_call.1
$region0: #{tpu_custom_call.1}
  #allocation0 [shape = 'u32[]', space=smem, size = 0x4, offset = 0x4, fixed_abs, tag = 'smem constant byte address 0x4 - core index']
  #allocation1 [shape = 'u32[144,128]{1,0:T(1,128)}', space=vmem, size = 0x12000, scoped, tag = 'internal scratch']
  #allocation2 [shape = 'bf16[18,18,128]{2,1,0:T(8,128)(2,1)}', space=vmem, size = 0x1b000, scoped, tag = 'scratch operand']
  %s0 = inlined_call_operand.vmem [shape: bf16[2,16,16,4], index: 0, kind: input, shape index: {}]
  %s1 = inlined_call_operand.vmem [shape: bf16[2,16,16,32], index: 1, kind: input, shape index: {}]
  %s2 = inlined_call_operand.hbm [shape: f32[2,32,256], index: 2, kind: input, shape index: {}]
  %s3 = inlined_call_operand.hbm [shape: bf16[1152,128], index: 3, kind: input, shape index: {}]
  %s4 = inlined_call_operand.vmem [shape: f32[1,128], index: 4, kind: input, shape index: {}]
  %s5 = inlined_call_operand.hbm [shape: f32[2,64,256], index: 5, kind: output, shape index: {}]
  %s6 = sld [smem:[#allocation0]]
  $region61: #{tpu_custom_call.1} parent=0
    _
  %s8 = ssub.s32 1, %s6
  %s9 = scalar_select 0, %s8, %s6
  $region1: #{tpu_custom_call.1} parent=0
    #allocation3 [shape = 'u8[65536]{0}', space=vmem, size = 0x10000, scoped, tag = 'input window, operand 2']
    #allocation4 [shape = 's32[2]{0}', space=sflag, size = 0x8, scoped, tag = 'scoped memory for tpu_custom_call.1']
    #allocation5 [shape = 's32[2]{0}', space=sflag, size = 0x8, scoped, tag = 'scoped memory for tpu_custom_call.1']
    #allocation6 [shape = 'u8[294912]{0}', space=vmem, size = 0x48000, scoped, tag = 'input window, operand 3, single buffered']
    #allocation7 [shape = 's32[1]{0}', space=sflag, size = 0x4, scoped, tag = 'scoped memory for tpu_custom_call.1']
    #allocation8 [shape = 'u8[131072]{0}', space=vmem, size = 0x20000, scoped, tag = 'output window, operand 0']
    %10 = vsyncpa [#allocation4], 0
    %s11 = scalar_lea.sflag [#allocation4], 1
    %12 = vsyncpa %s11, 0
    %13 = vsyncpa [#allocation7], 0
    %14 = vsyncpa [#allocation5], 0
    %s15 = scalar_lea.sflag [#allocation5], 1
    %16 = vsyncpa %s15, 0
    loop: start=0, step=1, limit=4
    $region2: #{tpu_custom_call.1} parent=1 // loop_pre_header
      _
    $region3: #{tpu_custom_call.1} parent=1 // loop_header
      %s18 = sphi 0, %s22
      %p19 = scmp.ge.s32.totalorder %s18, 4
      %s28 = sphi 0, %s30
      %s31 = sphi 0, %s28
      %s32 = sphi 0, %s31
      %s48 = sphi 0, %s32
      %s54 = sphi 0, %s56
      %s57 = sphi 0, %s54
      %s58 = sphi 0, %s57
      %s74 = sphi 0, %s58
      %s80 = sphi 0, %s82
      %s83 = sphi 0, %s80
      %s84 = sphi 0, %s83
      %s100 = sphi 0, %s84
      %s104 = sphi 0, %s104
      %s106 = sphi 0, %s104
      %s107 = sphi 0, %s106
      %s121 = sphi 0, %s107
      %s125 = sphi 0, %s125
      %s127 = sphi 0, %s125
      %s128 = sphi 0, %s127
      %s142 = sphi 0, %s128
      %s148 = sphi 0, %s150
      %s151 = sphi 0, %s148
      %s152 = sphi 0, %s151
      %s168 = sphi 0, %s152
    $region4: #{tpu_custom_call.1} parent=1 // loop_header_branch
      %21 = sbr.rel (%p19) target = $region8
    $region5: #{tpu_custom_call.1} parent=1 // loop_body
      %s23 = ssub.s32 %s18, 1
      %s24 = ssub.s32 %s18, 2
      %s25 = sadd.s32 %s18, 1
      %s26 = ssub.s32 %s18, %s25
      %p27 = scmp.eq.s32.totalorder %s26, 0
      %s29 = sadd.s32 %s28, 1
      %s30 = scalar_select %p27, %s28, %s29
      %p33 = pneg %p27
      %p34 = scmp.eq.s32.totalorder %s18, 1
      %p35 = por %p33, %p34
      %p36 = scmp.ne.s32.totalorder %s28, %s31
      %p37 = scmp.eq.s32.totalorder %s18, 0
      %p38 = por %p36, %p37
      %p39 = scmp.ne.s32.totalorder %s28, %s31
      %p40 = scmp.eq.s32.totalorder %s23, 1
      %p41 = por %p39, %p40
      %p42 = scmp.ne.s32.totalorder %s31, %s32
      %p43 = scmp.eq.s32.totalorder %s23, 0
      %p44 = por %p42, %p43
      %p45 = scmp.ne.s32.totalorder %s31, %s32
      %p46 = scmp.eq.s32.totalorder %s24, 1
      %p47 = por %p45, %p46
      %p49 = scmp.ne.s32.totalorder %s32, %s48
      %p50 = scmp.eq.s32.totalorder %s24, 0
      %p51 = por %p49, %p50
      %s52 = ssub.s32 %s18, %s25
      %p53 = scmp.eq.s32.totalorder %s52, 0
      %s55 = sadd.s32 %s54, 1
      %s56 = scalar_select %p53, %s54, %s55
      %p59 = pneg %p53
      %p60 = scmp.eq.s32.totalorder %s18, 1
      %p61 = por %p59, %p60
      %p62 = scmp.ne.s32.totalorder %s54, %s57
      %p63 = scmp.eq.s32.totalorder %s18, 0
      %p64 = por %p62, %p63
      %p65 = scmp.ne.s32.totalorder %s54, %s57
      %p66 = scmp.eq.s32.totalorder %s23, 1
      %p67 = por %p65, %p66
      %p68 = scmp.ne.s32.totalorder %s57, %s58
      %p69 = scmp.eq.s32.totalorder %s23, 0
      %p70 = por %p68, %p69
      %p71 = scmp.ne.s32.totalorder %s57, %s58
      %p72 = scmp.eq.s32.totalorder %s24, 1
      %p73 = por %p71, %p72
      %p75 = scmp.ne.s32.totalorder %s58, %s74
      %p76 = scmp.eq.s32.totalorder %s24, 0
      %p77 = por %p75, %p76
      %s78 = ssub.s32 %s18, %s25
      %p79 = scmp.eq.s32.totalorder %s78, 0
      %s81 = sadd.s32 %s80, 1
      %s82 = scalar_select %p79, %s80, %s81
      %p85 = pneg %p79
      %p86 = scmp.eq.s32.totalorder %s18, 1
      %p87 = por %p85, %p86
      %p88 = scmp.ne.s32.totalorder %s80, %s83
      %p89 = scmp.eq.s32.totalorder %s18, 0
      %p90 = por %p88, %p89
      %p91 = scmp.ne.s32.totalorder %s80, %s83
      %p92 = scmp.eq.s32.totalorder %s23, 1
      %p93 = por %p91, %p92
      %p94 = scmp.ne.s32.totalorder %s83, %s84
      %p95 = scmp.eq.s32.totalorder %s23, 0
      %p96 = por %p94, %p95
      %p97 = scmp.ne.s32.totalorder %s83, %s84
      %p98 = scmp.eq.s32.totalorder %s24, 1
      %p99 = por %p97, %p98
      %p101 = scmp.ne.s32.totalorder %s84, %s100
      %p102 = scmp.eq.s32.totalorder %s24, 0
      %p103 = por %p101, %p102
      %s105 = sadd.s32 %s104, 1
      %p108 = scmp.eq.s32.totalorder %s18, 1
      %p109 = scmp.ne.s32.totalorder %s104, %s106
      %p110 = scmp.eq.s32.totalorder %s18, 0
      %p111 = por %p109, %p110
      %p112 = scmp.ne.s32.totalorder %s104, %s106
      %p113 = scmp.eq.s32.totalorder %s23, 1
      %p114 = por %p112, %p113
      %p115 = scmp.ne.s32.totalorder %s106, %s107
      %p116 = scmp.eq.s32.totalorder %s23, 0
      %p117 = por %p115, %p116
      %p118 = scmp.ne.s32.totalorder %s106, %s107
      %p119 = scmp.eq.s32.totalorder %s24, 1
      %p120 = por %p118, %p119
      %p122 = scmp.ne.s32.totalorder %s107, %s121
      %p123 = scmp.eq.s32.totalorder %s24, 0
      %p124 = por %p122, %p123
      %s126 = sadd.s32 %s125, 1
      %p129 = scmp.eq.s32.totalorder %s18, 1
      %p130 = scmp.ne.s32.totalorder %s125, %s127
      %p131 = scmp.eq.s32.totalorder %s18, 0
      %p132 = por %p130, %p131
      %p133 = scmp.ne.s32.totalorder %s125, %s127
      %p134 = scmp.eq.s32.totalorder %s23, 1
      %p135 = por %p133, %p134
      %p136 = scmp.ne.s32.totalorder %s127, %s128
      %p137 = scmp.eq.s32.totalorder %s23, 0
      %p138 = por %p136, %p137
      %p139 = scmp.ne.s32.totalorder %s127, %s128
      %p140 = scmp.eq.s32.totalorder %s24, 1
      %p141 = por %p139, %p140
      %p143 = scmp.ne.s32.totalorder %s128, %s142
      %p144 = scmp.eq.s32.totalorder %s24, 0
      %p145 = por %p143, %p144
      %s146 = ssub.s32 %s18, %s25
      %p147 = scmp.eq.s32.totalorder %s146, 0
      %s149 = sadd.s32 %s148, 1
      %s150 = scalar_select %p147, %s148, %s149
      %p153 = pneg %p147
      %p154 = scmp.eq.s32.totalorder %s18, 1
      %p155 = por %p153, %p154
      %p156 = scmp.ne.s32.totalorder %s148, %s151
      %p157 = scmp.eq.s32.totalorder %s18, 0
      %p158 = por %p156, %p157
      %p159 = scmp.ne.s32.totalorder %s148, %s151
      %p160 = scmp.eq.s32.totalorder %s23, 1
      %p161 = por %p159, %p160
      %p162 = scmp.ne.s32.totalorder %s151, %s152
      %p163 = scmp.eq.s32.totalorder %s23, 0
      %p164 = por %p162, %p163
      %p165 = scmp.ne.s32.totalorder %s151, %s152
      %p166 = scmp.eq.s32.totalorder %s24, 1
      %p167 = por %p165, %p166
      %p169 = scmp.ne.s32.totalorder %s152, %s168
      %p170 = scmp.eq.s32.totalorder %s24, 0
      %p171 = por %p169, %p170
      %p172 = scmp.le.s32.totalorder 1, %s18
      %p173 = scmp.lt.s32.totalorder %s18, 3
      %p174 = pnand %p172, %p173
      %p175 = pneg %p174
      // Predicated region
      $region9: #{tpu_custom_call.1} parent=5 // pred_check
        _
      $region10: #{tpu_custom_call.1} parent=5 // pred_check_branch
        %177 = sbr.rel (%p174) target = $region12
      $region11: #{tpu_custom_call.1} parent=5 // pred_region
        %s178 = ssub.s32 %s18, 1
        // Predicated region
        $region13: #{tpu_custom_call.1} parent=11 // pred_check
          %p179 = pneg %p117
        $region14: #{tpu_custom_call.1} parent=11 // pred_check_branch
          %181 = sbr.rel (%p179) target = $region16
        $region15: #{tpu_custom_call.1} parent=11 // pred_region
          %s183 = ssub.s32 9216, 9216
          %184 = vsyncadd [#allocation7], %s183
          %s185 = sshll.u32 [#allocation6], 4
          %s186 = int_to_ptr.vmem [resolvable:$true] %s185
          %191 = dma.hbm_to_vmem [thread:$0]  %s3, 9216, %s186, [#allocation7], 64, 64, 4
        $region16: #{tpu_custom_call.1} parent=11 // pred_fallthru
          _
        // Predicated region
        $region17: #{tpu_custom_call.1} parent=11 // pred_check
          %p192 = pneg %p138
        $region18: #{tpu_custom_call.1} parent=11 // pred_check_branch
          %194 = sbr.rel (%p192) target = $region20
        $region19: #{tpu_custom_call.1} parent=11 // pred_region
          _
        $region20: #{tpu_custom_call.1} parent=11 // pred_fallthru
          _
      $region12: #{tpu_custom_call.1} parent=5 // pred_fallthru
        _
      %p195 = scmp.lt.s32.totalorder %s18, 2
      // Predicated region
      $region21: #{tpu_custom_call.1} parent=5 // pred_check
        %p196 = pneg %p195
      $region22: #{tpu_custom_call.1} parent=5 // pred_check_branch
        %198 = sbr.rel (%p196) target = $region24
      $region23: #{tpu_custom_call.1} parent=5 // pred_region
        // Predicated region
        $region25: #{tpu_custom_call.1} parent=23 // pred_check
          %p199 = pneg %p38
        $region26: #{tpu_custom_call.1} parent=23 // pred_check_branch
          %201 = sbr.rel (%p199) target = $region28
        $region27: #{tpu_custom_call.1} parent=23 // pred_region
          %p202 = scmp.lt.s32.totalorder %s18, 1
          %s203 = scalar_select %p202, %s18, 1
          %s204 = smul.addr %s203, 32
          %s205 = smul.addr %s204, 4
          %s206 = scalar_lea.vmem %s0, %s205
        $region28: #{tpu_custom_call.1} parent=23 // pred_fallthru
          _
        // Predicated region
        $region29: #{tpu_custom_call.1} parent=23 // pred_check
          %p207 = pneg %p64
        $region30: #{tpu_custom_call.1} parent=23 // pred_check_branch
          %209 = sbr.rel (%p207) target = $region32
        $region31: #{tpu_custom_call.1} parent=23 // pred_region
          %p210 = scmp.lt.s32.totalorder %s18, 1
          %s211 = scalar_select %p210, %s18, 1
          %s212 = smul.addr %s211, 32
          %s213 = smul.addr %s212, 4
          %s214 = scalar_lea.vmem %s1, %s213
        $region32: #{tpu_custom_call.1} parent=23 // pred_fallthru
          _
        // Predicated region
        $region33: #{tpu_custom_call.1} parent=23 // pred_check
          %p215 = pneg %p90
        $region34: #{tpu_custom_call.1} parent=23 // pred_check_branch
          %217 = sbr.rel (%p215) target = $region36
        $region35: #{tpu_custom_call.1} parent=23 // pred_region
          %s218 = sand.u32 %s80, 1
          %s219 = scalar_lea.sflag [#allocation4], %s218
          %s220 = sand.u32 %s80, 1
          %s221 = smul.addr %s220, 64
          %s222 = scalar_lea.vmem [#allocation3], %s221
          %s224 = ssub.s32 1024, 1024
          %225 = vsyncadd %s219, %s224
          %s226 = smul.addr %s18, 8
          %s227 = smul.addr %s226, 128
          %s228 = scalar_lea.hbm %s2, %s227
          %s229 = sshll.u32 %s222, 4
          %s230 = int_to_ptr.vmem [resolvable:$true] %s229
          %235 = dma.hbm_to_vmem [thread:$0]  %s228, 1024, %s230, %s219, 256, 256, 16
        $region36: #{tpu_custom_call.1} parent=23 // pred_fallthru
          _
      $region24: #{tpu_custom_call.1} parent=5 // pred_fallthru
        _
      %p236 = scmp.le.s32.totalorder 1, %s18
      %p237 = scmp.lt.s32.totalorder %s18, 3
      %p238 = pnand %p236, %p237
      %p239 = pneg %p238
      // Predicated region
      $region37: #{tpu_custom_call.1} parent=5 // pred_check
        _
      $region38: #{tpu_custom_call.1} parent=5 // pred_check_branch
        %241 = sbr.rel (%p238) target = $region40
      $region39: #{tpu_custom_call.1} parent=5 // pred_region
        %s242 = ssub.s32 %s18, 1
        %s243 = sand.u32 %s83, 1
        %s244 = scalar_lea.sflag [#allocation4], %s243
        %s245 = sand.u32 %s83, 1
        %s246 = smul.addr %s245, 64
        %s247 = scalar_lea.vmem [#allocation3], %s246
        // Predicated region
        $region41: #{tpu_custom_call.1} parent=39 // pred_check
          %p248 = pneg %p96
        $region42: #{tpu_custom_call.1} parent=39 // pred_check_branch
          %250 = sbr.rel (%p248) target = $region44
        $region43: #{tpu_custom_call.1} parent=39 // pred_region
          %251 = dma.done %s244, 1024
        $region44: #{tpu_custom_call.1} parent=39 // pred_fallthru
          _
        // Predicated region
        $region45: #{tpu_custom_call.1} parent=39 // pred_check
          %p252 = pneg %p117
        $region46: #{tpu_custom_call.1} parent=39 // pred_check_branch
          %254 = sbr.rel (%p252) target = $region48
        $region47: #{tpu_custom_call.1} parent=39 // pred_region
          %255 = dma.done [#allocation7], 9216
        $region48: #{tpu_custom_call.1} parent=39 // pred_fallthru
          _
        %p256 = scmp.lt.s32.totalorder %s23, 1
        %s257 = scalar_select %p256, %s23, 1
        %s258 = smul.addr %s257, 32
        %s259 = smul.addr %s258, 4
        %s260 = scalar_lea.vmem %s0, %s259
        %p261 = pneg %p44
        %p262 = pneg %p41
        %p263 = scmp.lt.s32.totalorder %s23, 1
        %s264 = scalar_select %p263, %s23, 1
        %s265 = smul.addr %s264, 32
        %s266 = smul.addr %s265, 4
        %s267 = scalar_lea.vmem %s1, %s266
        %p268 = pneg %p70
        %p269 = pneg %p67
        %s270 = sand.u32 %s83, 1
        %s271 = scalar_lea.sflag [#allocation4], %s270
        %s272 = sand.u32 %s83, 1
        %s273 = smul.addr %s272, 64
        %s274 = scalar_lea.vmem [#allocation3], %s273
        %p275 = pneg %p96
        %p276 = pneg %p93
        %p277 = pneg %p117
        %p278 = pneg %p114
        %p279 = pneg %p138
        %p280 = pneg %p135
        %p281 = pneg %p164
        %p282 = pneg %p161
        %s283 = sand.u32 %s151, 1
        %s284 = scalar_lea.sflag [#allocation5], %s283
        %s285 = sand.u32 %s151, 1
        %s286 = smul.addr %s285, 128
        %s287 = scalar_lea.vmem [#allocation8], %s286
        %p288 = scmp.lt.s32.totalorder %s23, 1
        %s289 = scalar_select %p288, %s23, 1
        %s290 = smul.addr %s289, 32
        %s291 = smul.addr %s290, 4
        %s292 = scalar_lea.vmem %s0, %s291
        %p293 = scmp.lt.s32.totalorder %s23, 1
        %s294 = scalar_select %p293, %s23, 1
        %s295 = smul.addr %s294, 32
        %s296 = smul.addr %s295, 4
        %s297 = scalar_lea.vmem %s1, %s296
        %299 = vst [vmem:[#allocation2] sm:$0xf] 0
        %300 = vst [vmem:[#allocation2 + $0x4] sm:$0xf] 0
        %301 = vst [vmem:[#allocation2 + $0x8] sm:$0x1] 0
        %302 = vst [vmem:[#allocation2 + $0xc] sm:$0xf] 0
        %303 = vst [vmem:[#allocation2 + $0x10] sm:$0xf] 0
        %304 = vst [vmem:[#allocation2 + $0x14] sm:$0x1] 0
        %305 = vst [vmem:[#allocation2 + $0x18] sm:$0xf] 0
        %306 = vst [vmem:[#allocation2 + $0x1c] sm:$0xf] 0
        %307 = vst [vmem:[#allocation2 + $0x20] sm:$0x1] 0
        %308 = vst [vmem:[#allocation2 + $0x24] sm:$0xf] 0
        %309 = vst [vmem:[#allocation2 + $0x28] sm:$0xf] 0
        %310 = vst [vmem:[#allocation2 + $0x2c] sm:$0x1] 0
        %311 = vst [vmem:[#allocation2 + $0x30] sm:$0xf] 0
        %312 = vst [vmem:[#allocation2 + $0x34] sm:$0xf] 0
        %313 = vst [vmem:[#allocation2 + $0x38] sm:$0x1] 0
        %314 = vst [vmem:[#allocation2 + $0x3c] sm:$0xf] 0
        %315 = vst [vmem:[#allocation2 + $0x40] sm:$0xf] 0
        %316 = vst [vmem:[#allocation2 + $0x44] sm:$0x1] 0
        %317 = vst [vmem:[#allocation2 + $0x48] sm:$0xf] 0
        %318 = vst [vmem:[#allocation2 + $0x4c] sm:$0xf] 0
        %319 = vst [vmem:[#allocation2 + $0x50] sm:$0x1] 0
        %320 = vst [vmem:[#allocation2 + $0x54] sm:$0xf] 0
        %321 = vst [vmem:[#allocation2 + $0x58] sm:$0xf] 0
        %322 = vst [vmem:[#allocation2 + $0x5c] sm:$0x1] 0
        %323 = vst [vmem:[#allocation2 + $0x60] sm:$0xf] 0
        %324 = vst [vmem:[#allocation2 + $0x64] sm:$0xf] 0
        %325 = vst [vmem:[#allocation2 + $0x68] sm:$0x1] 0
        %326 = vst [vmem:[#allocation2 + $0x6c] sm:$0xf] 0
        %327 = vst [vmem:[#allocation2 + $0x70] sm:$0xf] 0
        %328 = vst [vmem:[#allocation2 + $0x74] sm:$0x1] 0
        %329 = vst [vmem:[#allocation2 + $0x78] sm:$0xf] 0
        %330 = vst [vmem:[#allocation2 + $0x7c] sm:$0xf] 0
        %331 = vst [vmem:[#allocation2 + $0x80] sm:$0x1] 0
        %332 = vst [vmem:[#allocation2 + $0x84] sm:$0xf] 0
        %333 = vst [vmem:[#allocation2 + $0x88] sm:$0xf] 0
        %334 = vst [vmem:[#allocation2 + $0x8c] sm:$0x1] 0
        %335 = vst [vmem:[#allocation2 + $0x90] sm:$0xf] 0
        %336 = vst [vmem:[#allocation2 + $0x94] sm:$0xf] 0
        %337 = vst [vmem:[#allocation2 + $0x98] sm:$0x1] 0
        %338 = vst [vmem:[#allocation2 + $0x9c] sm:$0xf] 0
        %339 = vst [vmem:[#allocation2 + $0xa0] sm:$0xf] 0
        %340 = vst [vmem:[#allocation2 + $0xa4] sm:$0x1] 0
        %341 = vst [vmem:[#allocation2 + $0xa8] sm:$0xf] 0
        %342 = vst [vmem:[#allocation2 + $0xac] sm:$0xf] 0
        %343 = vst [vmem:[#allocation2 + $0xb0] sm:$0x1] 0
        %344 = vst [vmem:[#allocation2 + $0xb4] sm:$0xf] 0
        %345 = vst [vmem:[#allocation2 + $0xb8] sm:$0xf] 0
        %346 = vst [vmem:[#allocation2 + $0xbc] sm:$0x1] 0
        %347 = vst [vmem:[#allocation2 + $0xc0] sm:$0xf] 0
        %348 = vst [vmem:[#allocation2 + $0xc4] sm:$0xf] 0
        %349 = vst [vmem:[#allocation2 + $0xc8] sm:$0x1] 0
        %350 = vst [vmem:[#allocation2 + $0xcc] sm:$0xf] 0
        %351 = vst [vmem:[#allocation2 + $0xd0] sm:$0xf] 0
        %352 = vst [vmem:[#allocation2 + $0xd4] sm:$0x1] 0
        %v353 = vld [vmem:[%s292] sm:$0xf]
        %v354 = vld [vmem:[%s292 + $0x4] sm:$0xf]
        %v355 = vld [vmem:[%s292 + $0x8] sm:$0xf]
        %v356 = vld [vmem:[%s292 + $0xc] sm:$0xf]
        %v357 = vld [vmem:[%s292 + $0x10] sm:$0xf]
        %v358 = vld [vmem:[%s292 + $0x14] sm:$0xf]
        %v359 = vld [vmem:[%s292 + $0x18] sm:$0xf]
        %v360 = vld [vmem:[%s292 + $0x1c] sm:$0xf]
        %v361 = vld [vmem:[%s292 + $0x20] sm:$0xf]
        %v362 = vld [vmem:[%s292 + $0x24] sm:$0xf]
        %v363 = vld [vmem:[%s292 + $0x28] sm:$0xf]
        %v364 = vld [vmem:[%s292 + $0x2c] sm:$0xf]
        %v365 = vld [vmem:[%s292 + $0x30] sm:$0xf]
        %v366 = vld [vmem:[%s292 + $0x34] sm:$0xf]
        %v367 = vld [vmem:[%s292 + $0x38] sm:$0xf]
        %v368 = vld [vmem:[%s292 + $0x3c] sm:$0xf]
        %v369 = vld [vmem:[%s292 + $0x40] sm:$0xf]
        %v370 = vld [vmem:[%s292 + $0x44] sm:$0xf]
        %v371 = vld [vmem:[%s292 + $0x48] sm:$0xf]
        %v372 = vld [vmem:[%s292 + $0x4c] sm:$0xf]
        %v373 = vld [vmem:[%s292 + $0x50] sm:$0xf]
        %v374 = vld [vmem:[%s292 + $0x54] sm:$0xf]
        %v375 = vld [vmem:[%s292 + $0x58] sm:$0xf]
        %v376 = vld [vmem:[%s292 + $0x5c] sm:$0xf]
        %v377 = vld [vmem:[%s292 + $0x60] sm:$0xf]
        %v378 = vld [vmem:[%s292 + $0x64] sm:$0xf]
        %v379 = vld [vmem:[%s292 + $0x68] sm:$0xf]
        %v380 = vld [vmem:[%s292 + $0x6c] sm:$0xf]
        %v381 = vld [vmem:[%s292 + $0x70] sm:$0xf]
        %v382 = vld [vmem:[%s292 + $0x74] sm:$0xf]
        %v383 = vld [vmem:[%s292 + $0x78] sm:$0xf]
        %v384 = vld [vmem:[%s292 + $0x7c] sm:$0xf]
        %vm385 = vsmask.f32 256
        %vm386 = vsmask.f32 4368
        %vm387 = vmor %vm385, %vm386
        %v389 = vshrl.u32 %v353, 16
        %v391 = vrot.slane %v389, 7
        %v392 = vshll.u32 %v353, 16
        %v394 = vor.u32 %v391, %v392
        %v395 = vrot.slane %v391, 4
        %v397 = vshrl.u32 %v354, 16
        %v399 = vrot.slane %v397, 7
        %v400 = vshll.u32 %v354, 16
        %v402 = vor.u32 %v399, %v400
        %v403 = vsel %vm387, %v395, %v402
        %v404 = vrot.slane %v399, 4
        %v406 = vshrl.u32 %v355, 16
        %v408 = vrot.slane %v406, 7
        %v409 = vshll.u32 %v355, 16
        %v411 = vor.u32 %v408, %v409
        %v412 = vrot.slane %v408, 4
        %v414 = vshrl.u32 %v356, 16
        %v416 = vrot.slane %v414, 7
        %v417 = vshll.u32 %v356, 16
        %v419 = vor.u32 %v416, %v417
        %v420 = vsel %vm387, %v412, %v419
        %v421 = vrot.slane %v416, 4
        %v423 = vshrl.u32 %v357, 16
        %v425 = vrot.slane %v423, 7
        %v426 = vshll.u32 %v357, 16
        %v428 = vor.u32 %v425, %v426
        %v429 = vrot.slane %v425, 4
        %v431 = vshrl.u32 %v358, 16
        %v433 = vrot.slane %v431, 7
        %v434 = vshll.u32 %v358, 16
        %v436 = vor.u32 %v433, %v434
        %v437 = vsel %vm387, %v429, %v436
        %v438 = vrot.slane %v433, 4
        %v440 = vshrl.u32 %v359, 16
        %v442 = vrot.slane %v440, 7
        %v443 = vshll.u32 %v359, 16
        %v445 = vor.u32 %v442, %v443
        %v446 = vrot.slane %v442, 4
        %v448 = vshrl.u32 %v360, 16
        %v450 = vrot.slane %v448, 7
        %v451 = vshll.u32 %v360, 16
        %v453 = vor.u32 %v450, %v451
        %v454 = vsel %vm387, %v446, %v453
        %v455 = vrot.slane %v450, 4
        %v457 = vshrl.u32 %v361, 16
        %v459 = vrot.slane %v457, 7
        %v460 = vshll.u32 %v361, 16
        %v462 = vor.u32 %v459, %v460
        %v463 = vrot.slane %v459, 4
        %v465 = vshrl.u32 %v362, 16
        %v467 = vrot.slane %v465, 7
        %v468 = vshll.u32 %v362, 16
        %v470 = vor.u32 %v467, %v468
        %v471 = vsel %vm387, %v463, %v470
        %v472 = vrot.slane %v467, 4
        %v474 = vshrl.u32 %v363, 16
        %v476 = vrot.slane %v474, 7
        %v477 = vshll.u32 %v363, 16
        %v479 = vor.u32 %v476, %v477
        %v480 = vrot.slane %v476, 4
        %v482 = vshrl.u32 %v364, 16
        %v484 = vrot.slane %v482, 7
        %v485 = vshll.u32 %v364, 16
        %v487 = vor.u32 %v484, %v485
        %v488 = vsel %vm387, %v480, %v487
        %v489 = vrot.slane %v484, 4
        %v491 = vshrl.u32 %v365, 16
        %v493 = vrot.slane %v491, 7
        %v494 = vshll.u32 %v365, 16
        %v496 = vor.u32 %v493, %v494
        %v497 = vrot.slane %v493, 4
        %v499 = vshrl.u32 %v366, 16
        %v501 = vrot.slane %v499, 7
        %v502 = vshll.u32 %v366, 16
        %v504 = vor.u32 %v501, %v502
        %v505 = vsel %vm387, %v497, %v504
        %v506 = vrot.slane %v501, 4
        %v508 = vshrl.u32 %v367, 16
        %v510 = vrot.slane %v508, 7
        %v511 = vshll.u32 %v367, 16
        %v513 = vor.u32 %v510, %v511
        %v514 = vrot.slane %v510, 4
        %v516 = vshrl.u32 %v368, 16
        %v518 = vrot.slane %v516, 7
        %v519 = vshll.u32 %v368, 16
        %v521 = vor.u32 %v518, %v519
        %v522 = vsel %vm387, %v514, %v521
        %v523 = vrot.slane %v518, 4
        %v525 = vshrl.u32 %v369, 16
        %v527 = vrot.slane %v525, 7
        %v528 = vshll.u32 %v369, 16
        %v530 = vor.u32 %v527, %v528
        %v531 = vrot.slane %v527, 4
        %v533 = vshrl.u32 %v370, 16
        %v535 = vrot.slane %v533, 7
        %v536 = vshll.u32 %v370, 16
        %v538 = vor.u32 %v535, %v536
        %v539 = vsel %vm387, %v531, %v538
        %v540 = vrot.slane %v535, 4
        %v542 = vshrl.u32 %v371, 16
        %v544 = vrot.slane %v542, 7
        %v545 = vshll.u32 %v371, 16
        %v547 = vor.u32 %v544, %v545
        %v548 = vrot.slane %v544, 4
        %v550 = vshrl.u32 %v372, 16
        %v552 = vrot.slane %v550, 7
        %v553 = vshll.u32 %v372, 16
        %v555 = vor.u32 %v552, %v553
        %v556 = vsel %vm387, %v548, %v555
        %v557 = vrot.slane %v552, 4
        %v559 = vshrl.u32 %v373, 16
        %v561 = vrot.slane %v559, 7
        %v562 = vshll.u32 %v373, 16
        %v564 = vor.u32 %v561, %v562
        %v565 = vrot.slane %v561, 4
        %v567 = vshrl.u32 %v374, 16
        %v569 = vrot.slane %v567, 7
        %v570 = vshll.u32 %v374, 16
        %v572 = vor.u32 %v569, %v570
        %v573 = vsel %vm387, %v565, %v572
        %v574 = vrot.slane %v569, 4
        %v576 = vshrl.u32 %v375, 16
        %v578 = vrot.slane %v576, 7
        %v579 = vshll.u32 %v375, 16
        %v581 = vor.u32 %v578, %v579
        %v582 = vrot.slane %v578, 4
        %v584 = vshrl.u32 %v376, 16
        %v586 = vrot.slane %v584, 7
        %v587 = vshll.u32 %v376, 16
        %v589 = vor.u32 %v586, %v587
        %v590 = vsel %vm387, %v582, %v589
        %v591 = vrot.slane %v586, 4
        %v593 = vshrl.u32 %v377, 16
        %v595 = vrot.slane %v593, 7
        %v596 = vshll.u32 %v377, 16
        %v598 = vor.u32 %v595, %v596
        %v599 = vrot.slane %v595, 4
        %v601 = vshrl.u32 %v378, 16
        %v603 = vrot.slane %v601, 7
        %v604 = vshll.u32 %v378, 16
        %v606 = vor.u32 %v603, %v604
        %v607 = vsel %vm387, %v599, %v606
        %v608 = vrot.slane %v603, 4
        %v610 = vshrl.u32 %v379, 16
        %v612 = vrot.slane %v610, 7
        %v613 = vshll.u32 %v379, 16
        %v615 = vor.u32 %v612, %v613
        %v616 = vrot.slane %v612, 4
        %v618 = vshrl.u32 %v380, 16
        %v620 = vrot.slane %v618, 7
        %v621 = vshll.u32 %v380, 16
        %v623 = vor.u32 %v620, %v621
        %v624 = vsel %vm387, %v616, %v623
        %v625 = vrot.slane %v620, 4
        %v627 = vshrl.u32 %v381, 16
        %v629 = vrot.slane %v627, 7
        %v630 = vshll.u32 %v381, 16
        %v632 = vor.u32 %v629, %v630
        %v633 = vrot.slane %v629, 4
        %v635 = vshrl.u32 %v382, 16
        %v637 = vrot.slane %v635, 7
        %v638 = vshll.u32 %v382, 16
        %v640 = vor.u32 %v637, %v638
        %v641 = vsel %vm387, %v633, %v640
        %v642 = vrot.slane %v637, 4
        %v644 = vshrl.u32 %v383, 16
        %v646 = vrot.slane %v644, 7
        %v647 = vshll.u32 %v383, 16
        %v649 = vor.u32 %v646, %v647
        %v650 = vrot.slane %v646, 4
        %v652 = vshrl.u32 %v384, 16
        %v654 = vrot.slane %v652, 7
        %v655 = vshll.u32 %v384, 16
        %v657 = vor.u32 %v654, %v655
        %v658 = vsel %vm387, %v650, %v657
        %v659 = vrot.slane %v654, 4
        %s708 = scalar_lea.vmem [#allocation2], 12
        %vm709 = vcmask 27648
        %vm710 = vsmask.f32 7938
        %vm711 = vmand %vm709, %vm710
        %v712 = vld [vmem:[%s708] sm:$0xf]
        %v713 = vsel %vm711, %v394, %v712
        %714 = vst [vmem:[%s708] sm:$0xf] %v713
        %vm715 = vcmask 27648
        %716 = vst.msk [vmem:[%s708 + $0x4] sm:$0xf] %vm715, %v403
        %vm717 = vcmask 24576
        %vm718 = vmand %vm717, %vm385
        %v719 = vld [vmem:[%s708 + $0x8] sm:$0x1]
        %v720 = vsel %vm718, %v404, %v719
        %721 = vst [vmem:[%s708 + $0x8] sm:$0x1] %v720
        %v722 = vld [vmem:[%s708 + $0xc] sm:$0xf]
        %v723 = vsel %vm711, %v411, %v722
        %724 = vst [vmem:[%s708 + $0xc] sm:$0xf] %v723
        %725 = vst.msk [vmem:[%s708 + $0x10] sm:$0xf] %vm715, %v420
        %v726 = vld [vmem:[%s708 + $0x14] sm:$0x1]
        %v727 = vsel %vm718, %v421, %v726
        %728 = vst [vmem:[%s708 + $0x14] sm:$0x1] %v727
        %v729 = vld [vmem:[%s708 + $0x18] sm:$0xf]
        %v730 = vsel %vm711, %v428, %v729
        %731 = vst [vmem:[%s708 + $0x18] sm:$0xf] %v730
        %732 = vst.msk [vmem:[%s708 + $0x1c] sm:$0xf] %vm715, %v437
        %v733 = vld [vmem:[%s708 + $0x20] sm:$0x1]
        %v734 = vsel %vm718, %v438, %v733
        %735 = vst [vmem:[%s708 + $0x20] sm:$0x1] %v734
        %v736 = vld [vmem:[%s708 + $0x24] sm:$0xf]
        %v737 = vsel %vm711, %v445, %v736
        %738 = vst [vmem:[%s708 + $0x24] sm:$0xf] %v737
        %739 = vst.msk [vmem:[%s708 + $0x28] sm:$0xf] %vm715, %v454
        %v740 = vld [vmem:[%s708 + $0x2c] sm:$0x1]
        %v741 = vsel %vm718, %v455, %v740
        %742 = vst [vmem:[%s708 + $0x2c] sm:$0x1] %v741
        %v743 = vld [vmem:[%s708 + $0x30] sm:$0xf]
        %v744 = vsel %vm711, %v462, %v743
        %745 = vst [vmem:[%s708 + $0x30] sm:$0xf] %v744
        %746 = vst.msk [vmem:[%s708 + $0x34] sm:$0xf] %vm715, %v471
        %v747 = vld [vmem:[%s708 + $0x38] sm:$0x1]
        %v748 = vsel %vm718, %v472, %v747
        %749 = vst [vmem:[%s708 + $0x38] sm:$0x1] %v748
        %v750 = vld [vmem:[%s708 + $0x3c] sm:$0xf]
        %v751 = vsel %vm711, %v479, %v750
        %752 = vst [vmem:[%s708 + $0x3c] sm:$0xf] %v751
        %753 = vst.msk [vmem:[%s708 + $0x40] sm:$0xf] %vm715, %v488
        %v754 = vld [vmem:[%s708 + $0x44] sm:$0x1]
        %v755 = vsel %vm718, %v489, %v754
        %756 = vst [vmem:[%s708 + $0x44] sm:$0x1] %v755
        %v757 = vld [vmem:[%s708 + $0x48] sm:$0xf]
        %v758 = vsel %vm711, %v496, %v757
        %759 = vst [vmem:[%s708 + $0x48] sm:$0xf] %v758
        %760 = vst.msk [vmem:[%s708 + $0x4c] sm:$0xf] %vm715, %v505
        %v761 = vld [vmem:[%s708 + $0x50] sm:$0x1]
        %v762 = vsel %vm718, %v506, %v761
        %763 = vst [vmem:[%s708 + $0x50] sm:$0x1] %v762
        %v764 = vld [vmem:[%s708 + $0x54] sm:$0xf]
        %v765 = vsel %vm711, %v513, %v764
        %766 = vst [vmem:[%s708 + $0x54] sm:$0xf] %v765
        %767 = vst.msk [vmem:[%s708 + $0x58] sm:$0xf] %vm715, %v522
        %v768 = vld [vmem:[%s708 + $0x5c] sm:$0x1]
        %v769 = vsel %vm718, %v523, %v768
        %770 = vst [vmem:[%s708 + $0x5c] sm:$0x1] %v769
        %v771 = vld [vmem:[%s708 + $0x60] sm:$0xf]
        %v772 = vsel %vm711, %v530, %v771
        %773 = vst [vmem:[%s708 + $0x60] sm:$0xf] %v772
        %774 = vst.msk [vmem:[%s708 + $0x64] sm:$0xf] %vm715, %v539
        %v775 = vld [vmem:[%s708 + $0x68] sm:$0x1]
        %v776 = vsel %vm718, %v540, %v775
        %777 = vst [vmem:[%s708 + $0x68] sm:$0x1] %v776
        %v778 = vld [vmem:[%s708 + $0x6c] sm:$0xf]
        %v779 = vsel %vm711, %v547, %v778
        %780 = vst [vmem:[%s708 + $0x6c] sm:$0xf] %v779
        %781 = vst.msk [vmem:[%s708 + $0x70] sm:$0xf] %vm715, %v556
        %v782 = vld [vmem:[%s708 + $0x74] sm:$0x1]
        %v783 = vsel %vm718, %v557, %v782
        %784 = vst [vmem:[%s708 + $0x74] sm:$0x1] %v783
        %v785 = vld [vmem:[%s708 + $0x78] sm:$0xf]
        %v786 = vsel %vm711, %v564, %v785
        %787 = vst [vmem:[%s708 + $0x78] sm:$0xf] %v786
        %788 = vst.msk [vmem:[%s708 + $0x7c] sm:$0xf] %vm715, %v573
        %v789 = vld [vmem:[%s708 + $0x80] sm:$0x1]
        %v790 = vsel %vm718, %v574, %v789
        %791 = vst [vmem:[%s708 + $0x80] sm:$0x1] %v790
        %v792 = vld [vmem:[%s708 + $0x84] sm:$0xf]
        %v793 = vsel %vm711, %v581, %v792
        %794 = vst [vmem:[%s708 + $0x84] sm:$0xf] %v793
        %795 = vst.msk [vmem:[%s708 + $0x88] sm:$0xf] %vm715, %v590
        %v796 = vld [vmem:[%s708 + $0x8c] sm:$0x1]
        %v797 = vsel %vm718, %v591, %v796
        %798 = vst [vmem:[%s708 + $0x8c] sm:$0x1] %v797
        %v799 = vld [vmem:[%s708 + $0x90] sm:$0xf]
        %v800 = vsel %vm711, %v598, %v799
        %801 = vst [vmem:[%s708 + $0x90] sm:$0xf] %v800
        %802 = vst.msk [vmem:[%s708 + $0x94] sm:$0xf] %vm715, %v607
        %v803 = vld [vmem:[%s708 + $0x98] sm:$0x1]
        %v804 = vsel %vm718, %v608, %v803
        %805 = vst [vmem:[%s708 + $0x98] sm:$0x1] %v804
        %v806 = vld [vmem:[%s708 + $0x9c] sm:$0xf]
        %v807 = vsel %vm711, %v615, %v806
        %808 = vst [vmem:[%s708 + $0x9c] sm:$0xf] %v807
        %809 = vst.msk [vmem:[%s708 + $0xa0] sm:$0xf] %vm715, %v624
        %v810 = vld [vmem:[%s708 + $0xa4] sm:$0x1]
        %v811 = vsel %vm718, %v625, %v810
        %812 = vst [vmem:[%s708 + $0xa4] sm:$0x1] %v811
        %v813 = vld [vmem:[%s708 + $0xa8] sm:$0xf]
        %v814 = vsel %vm711, %v632, %v813
        %815 = vst [vmem:[%s708 + $0xa8] sm:$0xf] %v814
        %816 = vst.msk [vmem:[%s708 + $0xac] sm:$0xf] %vm715, %v641
        %v817 = vld [vmem:[%s708 + $0xb0] sm:$0x1]
        %v818 = vsel %vm718, %v642, %v817
        %819 = vst [vmem:[%s708 + $0xb0] sm:$0x1] %v818
        %v820 = vld [vmem:[%s708 + $0xb4] sm:$0xf]
        %v821 = vsel %vm711, %v649, %v820
        %822 = vst [vmem:[%s708 + $0xb4] sm:$0xf] %v821
        %823 = vst.msk [vmem:[%s708 + $0xb8] sm:$0xf] %vm715, %v658
        %v824 = vld [vmem:[%s708 + $0xbc] sm:$0x1]
        %v825 = vsel %vm718, %v659, %v824
        %826 = vst [vmem:[%s708 + $0xbc] sm:$0x1] %v825
        %v827 = vld [vmem:[%s297] sm:$0xf]
        %v828 = vld [vmem:[%s297 + $0x4] sm:$0xf]
        %v829 = vld [vmem:[%s297 + $0x8] sm:$0xf]
        %v830 = vld [vmem:[%s297 + $0xc] sm:$0xf]
        %v831 = vld [vmem:[%s297 + $0x10] sm:$0xf]
        %v832 = vld [vmem:[%s297 + $0x14] sm:$0xf]
        %v833 = vld [vmem:[%s297 + $0x18] sm:$0xf]
        %v834 = vld [vmem:[%s297 + $0x1c] sm:$0xf]
        %v835 = vld [vmem:[%s297 + $0x20] sm:$0xf]
        %v836 = vld [vmem:[%s297 + $0x24] sm:$0xf]
        %v837 = vld [vmem:[%s297 + $0x28] sm:$0xf]
        %v838 = vld [vmem:[%s297 + $0x2c] sm:$0xf]
        %v839 = vld [vmem:[%s297 + $0x30] sm:$0xf]
        %v840 = vld [vmem:[%s297 + $0x34] sm:$0xf]
        %v841 = vld [vmem:[%s297 + $0x38] sm:$0xf]
        %v842 = vld [vmem:[%s297 + $0x3c] sm:$0xf]
        %v843 = vld [vmem:[%s297 + $0x40] sm:$0xf]
        %v844 = vld [vmem:[%s297 + $0x44] sm:$0xf]
        %v845 = vld [vmem:[%s297 + $0x48] sm:$0xf]
        %v846 = vld [vmem:[%s297 + $0x4c] sm:$0xf]
        %v847 = vld [vmem:[%s297 + $0x50] sm:$0xf]
        %v848 = vld [vmem:[%s297 + $0x54] sm:$0xf]
        %v849 = vld [vmem:[%s297 + $0x58] sm:$0xf]
        %v850 = vld [vmem:[%s297 + $0x5c] sm:$0xf]
        %v851 = vld [vmem:[%s297 + $0x60] sm:$0xf]
        %v852 = vld [vmem:[%s297 + $0x64] sm:$0xf]
        %v853 = vld [vmem:[%s297 + $0x68] sm:$0xf]
        %v854 = vld [vmem:[%s297 + $0x6c] sm:$0xf]
        %v855 = vld [vmem:[%s297 + $0x70] sm:$0xf]
        %v856 = vld [vmem:[%s297 + $0x74] sm:$0xf]
        %v857 = vld [vmem:[%s297 + $0x78] sm:$0xf]
        %v858 = vld [vmem:[%s297 + $0x7c] sm:$0xf]
        %v860 = vshrl.u32 %v827, 16
        %v862 = vrot.slane %v860, 7
        %v863 = vshll.u32 %v827, 16
        %v865 = vor.u32 %v862, %v863
        %v866 = vrot.slane %v862, 4
        %v868 = vshrl.u32 %v828, 16
        %v870 = vrot.slane %v868, 7
        %v871 = vshll.u32 %v828, 16
        %v873 = vor.u32 %v870, %v871
        %v874 = vsel %vm387, %v866, %v873
        %v875 = vrot.slane %v870, 4
        %v877 = vshrl.u32 %v829, 16
        %v879 = vrot.slane %v877, 7
        %v880 = vshll.u32 %v829, 16
        %v882 = vor.u32 %v879, %v880
        %v883 = vrot.slane %v879, 4
        %v885 = vshrl.u32 %v830, 16
        %v887 = vrot.slane %v885, 7
        %v888 = vshll.u32 %v830, 16
        %v890 = vor.u32 %v887, %v888
        %v891 = vsel %vm387, %v883, %v890
        %v892 = vrot.slane %v887, 4
        %v894 = vshrl.u32 %v831, 16
        %v896 = vrot.slane %v894, 7
        %v897 = vshll.u32 %v831, 16
        %v899 = vor.u32 %v896, %v897
        %v900 = vrot.slane %v896, 4
        %v902 = vshrl.u32 %v832, 16
        %v904 = vrot.slane %v902, 7
        %v905 = vshll.u32 %v832, 16
        %v907 = vor.u32 %v904, %v905
        %v908 = vsel %vm387, %v900, %v907
        %v909 = vrot.slane %v904, 4
        %v911 = vshrl.u32 %v833, 16
        %v913 = vrot.slane %v911, 7
        %v914 = vshll.u32 %v833, 16
        %v916 = vor.u32 %v913, %v914
        %v917 = vrot.slane %v913, 4
        %v919 = vshrl.u32 %v834, 16
        %v921 = vrot.slane %v919, 7
        %v922 = vshll.u32 %v834, 16
        %v924 = vor.u32 %v921, %v922
        %v925 = vsel %vm387, %v917, %v924
        %v926 = vrot.slane %v921, 4
        %v928 = vshrl.u32 %v835, 16
        %v930 = vrot.slane %v928, 7
        %v931 = vshll.u32 %v835, 16
        %v933 = vor.u32 %v930, %v931
        %v934 = vrot.slane %v930, 4
        %v936 = vshrl.u32 %v836, 16
        %v938 = vrot.slane %v936, 7
        %v939 = vshll.u32 %v836, 16
        %v941 = vor.u32 %v938, %v939
        %v942 = vsel %vm387, %v934, %v941
        %v943 = vrot.slane %v938, 4
        %v945 = vshrl.u32 %v837, 16
        %v947 = vrot.slane %v945, 7
        %v948 = vshll.u32 %v837, 16
        %v950 = vor.u32 %v947, %v948
        %v951 = vrot.slane %v947, 4
        %v953 = vshrl.u32 %v838, 16
        %v955 = vrot.slane %v953, 7
        %v956 = vshll.u32 %v838, 16
        %v958 = vor.u32 %v955, %v956
        %v959 = vsel %vm387, %v951, %v958
        %v960 = vrot.slane %v955, 4
        %v962 = vshrl.u32 %v839, 16
        %v964 = vrot.slane %v962, 7
        %v965 = vshll.u32 %v839, 16
        %v967 = vor.u32 %v964, %v965
        %v968 = vrot.slane %v964, 4
        %v970 = vshrl.u32 %v840, 16
        %v972 = vrot.slane %v970, 7
        %v973 = vshll.u32 %v840, 16
        %v975 = vor.u32 %v972, %v973
        %v976 = vsel %vm387, %v968, %v975
        %v977 = vrot.slane %v972, 4
        %v979 = vshrl.u32 %v841, 16
        %v981 = vrot.slane %v979, 7
        %v982 = vshll.u32 %v841, 16
        %v984 = vor.u32 %v981, %v982
        %v985 = vrot.slane %v981, 4
        %v987 = vshrl.u32 %v842, 16
        %v989 = vrot.slane %v987, 7
        %v990 = vshll.u32 %v842, 16
        %v992 = vor.u32 %v989, %v990
        %v993 = vsel %vm387, %v985, %v992
        %v994 = vrot.slane %v989, 4
        %v996 = vshrl.u32 %v843, 16
        %v998 = vrot.slane %v996, 7
        %v999 = vshll.u32 %v843, 16
        %v1001 = vor.u32 %v998, %v999
        %v1002 = vrot.slane %v998, 4
        %v1004 = vshrl.u32 %v844, 16
        %v1006 = vrot.slane %v1004, 7
        %v1007 = vshll.u32 %v844, 16
        %v1009 = vor.u32 %v1006, %v1007
        %v1010 = vsel %vm387, %v1002, %v1009
        %v1011 = vrot.slane %v1006, 4
        %v1013 = vshrl.u32 %v845, 16
        %v1015 = vrot.slane %v1013, 7
        %v1016 = vshll.u32 %v845, 16
        %v1018 = vor.u32 %v1015, %v1016
        %v1019 = vrot.slane %v1015, 4
        %v1021 = vshrl.u32 %v846, 16
        %v1023 = vrot.slane %v1021, 7
        %v1024 = vshll.u32 %v846, 16
        %v1026 = vor.u32 %v1023, %v1024
        %v1027 = vsel %vm387, %v1019, %v1026
        %v1028 = vrot.slane %v1023, 4
        %v1030 = vshrl.u32 %v847, 16
        %v1032 = vrot.slane %v1030, 7
        %v1033 = vshll.u32 %v847, 16
        %v1035 = vor.u32 %v1032, %v1033
        %v1036 = vrot.slane %v1032, 4
        %v1038 = vshrl.u32 %v848, 16
        %v1040 = vrot.slane %v1038, 7
        %v1041 = vshll.u32 %v848, 16
        %v1043 = vor.u32 %v1040, %v1041
        %v1044 = vsel %vm387, %v1036, %v1043
        %v1045 = vrot.slane %v1040, 4
        %v1047 = vshrl.u32 %v849, 16
        %v1049 = vrot.slane %v1047, 7
        %v1050 = vshll.u32 %v849, 16
        %v1052 = vor.u32 %v1049, %v1050
        %v1053 = vrot.slane %v1049, 4
        %v1055 = vshrl.u32 %v850, 16
        %v1057 = vrot.slane %v1055, 7
        %v1058 = vshll.u32 %v850, 16
        %v1060 = vor.u32 %v1057, %v1058
        %v1061 = vsel %vm387, %v1053, %v1060
        %v1062 = vrot.slane %v1057, 4
        %v1064 = vshrl.u32 %v851, 16
        %v1066 = vrot.slane %v1064, 7
        %v1067 = vshll.u32 %v851, 16
        %v1069 = vor.u32 %v1066, %v1067
        %v1070 = vrot.slane %v1066, 4
        %v1072 = vshrl.u32 %v852, 16
        %v1074 = vrot.slane %v1072, 7
        %v1075 = vshll.u32 %v852, 16
        %v1077 = vor.u32 %v1074, %v1075
        %v1078 = vsel %vm387, %v1070, %v1077
        %v1079 = vrot.slane %v1074, 4
        %v1081 = vshrl.u32 %v853, 16
        %v1083 = vrot.slane %v1081, 7
        %v1084 = vshll.u32 %v853, 16
        %v1086 = vor.u32 %v1083, %v1084
        %v1087 = vrot.slane %v1083, 4
        %v1089 = vshrl.u32 %v854, 16
        %v1091 = vrot.slane %v1089, 7
        %v1092 = vshll.u32 %v854, 16
        %v1094 = vor.u32 %v1091, %v1092
        %v1095 = vsel %vm387, %v1087, %v1094
        %v1096 = vrot.slane %v1091, 4
        %v1098 = vshrl.u32 %v855, 16
        %v1100 = vrot.slane %v1098, 7
        %v1101 = vshll.u32 %v855, 16
        %v1103 = vor.u32 %v1100, %v1101
        %v1104 = vrot.slane %v1100, 4
        %v1106 = vshrl.u32 %v856, 16
        %v1108 = vrot.slane %v1106, 7
        %v1109 = vshll.u32 %v856, 16
        %v1111 = vor.u32 %v1108, %v1109
        %v1112 = vsel %vm387, %v1104, %v1111
        %v1113 = vrot.slane %v1108, 4
        %v1115 = vshrl.u32 %v857, 16
        %v1117 = vrot.slane %v1115, 7
        %v1118 = vshll.u32 %v857, 16
        %v1120 = vor.u32 %v1117, %v1118
        %v1121 = vrot.slane %v1117, 4
        %v1123 = vshrl.u32 %v858, 16
        %v1125 = vrot.slane %v1123, 7
        %v1126 = vshll.u32 %v858, 16
        %v1128 = vor.u32 %v1125, %v1126
        %v1129 = vsel %vm387, %v1121, %v1128
        %v1130 = vrot.slane %v1125, 4
        %1131 = vrot.lane.b32.xlu0 %v865, 4
        %v1132 = vpop.permute.xlu0 %1131
        %1133 = vrot.lane.b32.xlu0 %v874, 4
        %v1134 = vpop.permute.xlu0 %1133
        %1135 = vrot.lane.b32.xlu0 %v875, 4
        %v1136 = vpop.permute.xlu0 %1135
        %1137 = vrot.lane.b32.xlu0 %v882, 4
        %v1138 = vpop.permute.xlu0 %1137
        %1139 = vrot.lane.b32.xlu0 %v891, 4
        %v1140 = vpop.permute.xlu0 %1139
        %1141 = vrot.lane.b32.xlu0 %v892, 4
        %v1142 = vpop.permute.xlu0 %1141
        %1143 = vrot.lane.b32.xlu0 %v899, 4
        %v1144 = vpop.permute.xlu0 %1143
        %1145 = vrot.lane.b32.xlu0 %v908, 4
        %v1146 = vpop.permute.xlu0 %1145
        %1147 = vrot.lane.b32.xlu0 %v909, 4
        %v1148 = vpop.permute.xlu0 %1147
        %1149 = vrot.lane.b32.xlu0 %v916, 4
        %v1150 = vpop.permute.xlu0 %1149
        %1151 = vrot.lane.b32.xlu0 %v925, 4
        %v1152 = vpop.permute.xlu0 %1151
        %1153 = vrot.lane.b32.xlu0 %v926, 4
        %v1154 = vpop.permute.xlu0 %1153
        %1155 = vrot.lane.b32.xlu0 %v933, 4
        %v1156 = vpop.permute.xlu0 %1155
        %1157 = vrot.lane.b32.xlu0 %v942, 4
        %v1158 = vpop.permute.xlu0 %1157
        %1159 = vrot.lane.b32.xlu0 %v943, 4
        %v1160 = vpop.permute.xlu0 %1159
        %1161 = vrot.lane.b32.xlu0 %v950, 4
        %v1162 = vpop.permute.xlu0 %1161
        %1163 = vrot.lane.b32.xlu0 %v959, 4
        %v1164 = vpop.permute.xlu0 %1163
        %1165 = vrot.lane.b32.xlu0 %v960, 4
        %v1166 = vpop.permute.xlu0 %1165
        %1167 = vrot.lane.b32.xlu0 %v967, 4
        %v1168 = vpop.permute.xlu0 %1167
        %1169 = vrot.lane.b32.xlu0 %v976, 4
        %v1170 = vpop.permute.xlu0 %1169
        %1171 = vrot.lane.b32.xlu0 %v977, 4
        %v1172 = vpop.permute.xlu0 %1171
        %1173 = vrot.lane.b32.xlu0 %v984, 4
        %v1174 = vpop.permute.xlu0 %1173
        %1175 = vrot.lane.b32.xlu0 %v993, 4
        %v1176 = vpop.permute.xlu0 %1175
        %1177 = vrot.lane.b32.xlu0 %v994, 4
        %v1178 = vpop.permute.xlu0 %1177
        %1179 = vrot.lane.b32.xlu0 %v1001, 4
        %v1180 = vpop.permute.xlu0 %1179
        %1181 = vrot.lane.b32.xlu0 %v1010, 4
        %v1182 = vpop.permute.xlu0 %1181
        %1183 = vrot.lane.b32.xlu0 %v1011, 4
        %v1184 = vpop.permute.xlu0 %1183
        %1185 = vrot.lane.b32.xlu0 %v1018, 4
        %v1186 = vpop.permute.xlu0 %1185
        %1187 = vrot.lane.b32.xlu0 %v1027, 4
        %v1188 = vpop.permute.xlu0 %1187
        %1189 = vrot.lane.b32.xlu0 %v1028, 4
        %v1190 = vpop.permute.xlu0 %1189
        %1191 = vrot.lane.b32.xlu0 %v1035, 4
        %v1192 = vpop.permute.xlu0 %1191
        %1193 = vrot.lane.b32.xlu0 %v1044, 4
        %v1194 = vpop.permute.xlu0 %1193
        %1195 = vrot.lane.b32.xlu0 %v1045, 4
        %v1196 = vpop.permute.xlu0 %1195
        %1197 = vrot.lane.b32.xlu0 %v1052, 4
        %v1198 = vpop.permute.xlu0 %1197
        %1199 = vrot.lane.b32.xlu0 %v1061, 4
        %v1200 = vpop.permute.xlu0 %1199
        %1201 = vrot.lane.b32.xlu0 %v1062, 4
        %v1202 = vpop.permute.xlu0 %1201
        %1203 = vrot.lane.b32.xlu0 %v1069, 4
        %v1204 = vpop.permute.xlu0 %1203
        %1205 = vrot.lane.b32.xlu0 %v1078, 4
        %v1206 = vpop.permute.xlu0 %1205
        %1207 = vrot.lane.b32.xlu0 %v1079, 4
        %v1208 = vpop.permute.xlu0 %1207
        %1209 = vrot.lane.b32.xlu0 %v1086, 4
        %v1210 = vpop.permute.xlu0 %1209
        %1211 = vrot.lane.b32.xlu0 %v1095, 4
        %v1212 = vpop.permute.xlu0 %1211
        %1213 = vrot.lane.b32.xlu0 %v1096, 4
        %v1214 = vpop.permute.xlu0 %1213
        %1215 = vrot.lane.b32.xlu0 %v1103, 4
        %v1216 = vpop.permute.xlu0 %1215
        %1217 = vrot.lane.b32.xlu0 %v1112, 4
        %v1218 = vpop.permute.xlu0 %1217
        %1219 = vrot.lane.b32.xlu0 %v1113, 4
        %v1220 = vpop.permute.xlu0 %1219
        %1221 = vrot.lane.b32.xlu0 %v1120, 4
        %v1222 = vpop.permute.xlu0 %1221
        %1223 = vrot.lane.b32.xlu0 %v1129, 4
        %v1224 = vpop.permute.xlu0 %1223
        %1225 = vrot.lane.b32.xlu0 %v1130, 4
        %v1226 = vpop.permute.xlu0 %1225
        %vm1275 = vcmask 289824
        %vm1276 = vmand %vm1275, %vm710
        %v1277 = vld [vmem:[%s708] sm:$0xf]
        %v1278 = vsel %vm1276, %v1132, %v1277
        %1279 = vst [vmem:[%s708] sm:$0xf] %v1278
        %vm1280 = vcmask 289824
        %1281 = vst.msk [vmem:[%s708 + $0x4] sm:$0xf] %vm1280, %v1134
        %vm1282 = vcmask 286752
        %vm1283 = vmand %vm1282, %vm385
        %v1284 = vld [vmem:[%s708 + $0x8] sm:$0x1]
        %v1285 = vsel %vm1283, %v1136, %v1284
        %1286 = vst [vmem:[%s708 + $0x8] sm:$0x1] %v1285
        %v1287 = vld [vmem:[%s708 + $0xc] sm:$0xf]
        %v1288 = vsel %vm1276, %v1138, %v1287
        %1289 = vst [vmem:[%s708 + $0xc] sm:$0xf] %v1288
        %1290 = vst.msk [vmem:[%s708 + $0x10] sm:$0xf] %vm1280, %v1140
        %v1291 = vld [vmem:[%s708 + $0x14] sm:$0x1]
        %v1292 = vsel %vm1283, %v1142, %v1291
        %1293 = vst [vmem:[%s708 + $0x14] sm:$0x1] %v1292
        %v1294 = vld [vmem:[%s708 + $0x18] sm:$0xf]
        %v1295 = vsel %vm1276, %v1144, %v1294
        %1296 = vst [vmem:[%s708 + $0x18] sm:$0xf] %v1295
        %1297 = vst.msk [vmem:[%s708 + $0x1c] sm:$0xf] %vm1280, %v1146
        %v1298 = vld [vmem:[%s708 + $0x20] sm:$0x1]
        %v1299 = vsel %vm1283, %v1148, %v1298
        %1300 = vst [vmem:[%s708 + $0x20] sm:$0x1] %v1299
        %v1301 = vld [vmem:[%s708 + $0x24] sm:$0xf]
        %v1302 = vsel %vm1276, %v1150, %v1301
        %1303 = vst [vmem:[%s708 + $0x24] sm:$0xf] %v1302
        %1304 = vst.msk [vmem:[%s708 + $0x28] sm:$0xf] %vm1280, %v1152
        %v1305 = vld [vmem:[%s708 + $0x2c] sm:$0x1]
        %v1306 = vsel %vm1283, %v1154, %v1305
        %1307 = vst [vmem:[%s708 + $0x2c] sm:$0x1] %v1306
        %v1308 = vld [vmem:[%s708 + $0x30] sm:$0xf]
        %v1309 = vsel %vm1276, %v1156, %v1308
        %1310 = vst [vmem:[%s708 + $0x30] sm:$0xf] %v1309
        %1311 = vst.msk [vmem:[%s708 + $0x34] sm:$0xf] %vm1280, %v1158
        %v1312 = vld [vmem:[%s708 + $0x38] sm:$0x1]
        %v1313 = vsel %vm1283, %v1160, %v1312
        %1314 = vst [vmem:[%s708 + $0x38] sm:$0x1] %v1313
        %v1315 = vld [vmem:[%s708 + $0x3c] sm:$0xf]
        %v1316 = vsel %vm1276, %v1162, %v1315
        %1317 = vst [vmem:[%s708 + $0x3c] sm:$0xf] %v1316
        %1318 = vst.msk [vmem:[%s708 + $0x40] sm:$0xf] %vm1280, %v1164
        %v1319 = vld [vmem:[%s708 + $0x44] sm:$0x1]
        %v1320 = vsel %vm1283, %v1166, %v1319
        %1321 = vst [vmem:[%s708 + $0x44] sm:$0x1] %v1320
        %v1322 = vld [vmem:[%s708 + $0x48] sm:$0xf]
        %v1323 = vsel %vm1276, %v1168, %v1322
        %1324 = vst [vmem:[%s708 + $0x48] sm:$0xf] %v1323
        %1325 = vst.msk [vmem:[%s708 + $0x4c] sm:$0xf] %vm1280, %v1170
        %v1326 = vld [vmem:[%s708 + $0x50] sm:$0x1]
        %v1327 = vsel %vm1283, %v1172, %v1326
        %1328 = vst [vmem:[%s708 + $0x50] sm:$0x1] %v1327
        %v1329 = vld [vmem:[%s708 + $0x54] sm:$0xf]
        %v1330 = vsel %vm1276, %v1174, %v1329
        %1331 = vst [vmem:[%s708 + $0x54] sm:$0xf] %v1330
        %1332 = vst.msk [vmem:[%s708 + $0x58] sm:$0xf] %vm1280, %v1176
        %v1333 = vld [vmem:[%s708 + $0x5c] sm:$0x1]
        %v1334 = vsel %vm1283, %v1178, %v1333
        %1335 = vst [vmem:[%s708 + $0x5c] sm:$0x1] %v1334
        %v1336 = vld [vmem:[%s708 + $0x60] sm:$0xf]
        %v1337 = vsel %vm1276, %v1180, %v1336
        %1338 = vst [vmem:[%s708 + $0x60] sm:$0xf] %v1337
        %1339 = vst.msk [vmem:[%s708 + $0x64] sm:$0xf] %vm1280, %v1182
        %v1340 = vld [vmem:[%s708 + $0x68] sm:$0x1]
        %v1341 = vsel %vm1283, %v1184, %v1340
        %1342 = vst [vmem:[%s708 + $0x68] sm:$0x1] %v1341
        %v1343 = vld [vmem:[%s708 + $0x6c] sm:$0xf]
        %v1344 = vsel %vm1276, %v1186, %v1343
        %1345 = vst [vmem:[%s708 + $0x6c] sm:$0xf] %v1344
        %1346 = vst.msk [vmem:[%s708 + $0x70] sm:$0xf] %vm1280, %v1188
        %v1347 = vld [vmem:[%s708 + $0x74] sm:$0x1]
        %v1348 = vsel %vm1283, %v1190, %v1347
        %1349 = vst [vmem:[%s708 + $0x74] sm:$0x1] %v1348
        %v1350 = vld [vmem:[%s708 + $0x78] sm:$0xf]
        %v1351 = vsel %vm1276, %v1192, %v1350
        %1352 = vst [vmem:[%s708 + $0x78] sm:$0xf] %v1351
        %1353 = vst.msk [vmem:[%s708 + $0x7c] sm:$0xf] %vm1280, %v1194
        %v1354 = vld [vmem:[%s708 + $0x80] sm:$0x1]
        %v1355 = vsel %vm1283, %v1196, %v1354
        %1356 = vst [vmem:[%s708 + $0x80] sm:$0x1] %v1355
        %v1357 = vld [vmem:[%s708 + $0x84] sm:$0xf]
        %v1358 = vsel %vm1276, %v1198, %v1357
        %1359 = vst [vmem:[%s708 + $0x84] sm:$0xf] %v1358
        %1360 = vst.msk [vmem:[%s708 + $0x88] sm:$0xf] %vm1280, %v1200
        %v1361 = vld [vmem:[%s708 + $0x8c] sm:$0x1]
        %v1362 = vsel %vm1283, %v1202, %v1361
        %1363 = vst [vmem:[%s708 + $0x8c] sm:$0x1] %v1362
        %v1364 = vld [vmem:[%s708 + $0x90] sm:$0xf]
        %v1365 = vsel %vm1276, %v1204, %v1364
        %1366 = vst [vmem:[%s708 + $0x90] sm:$0xf] %v1365
        %1367 = vst.msk [vmem:[%s708 + $0x94] sm:$0xf] %vm1280, %v1206
        %v1368 = vld [vmem:[%s708 + $0x98] sm:$0x1]
        %v1369 = vsel %vm1283, %v1208, %v1368
        %1370 = vst [vmem:[%s708 + $0x98] sm:$0x1] %v1369
        %v1371 = vld [vmem:[%s708 + $0x9c] sm:$0xf]
        %v1372 = vsel %vm1276, %v1210, %v1371
        %1373 = vst [vmem:[%s708 + $0x9c] sm:$0xf] %v1372
        %1374 = vst.msk [vmem:[%s708 + $0xa0] sm:$0xf] %vm1280, %v1212
        %v1375 = vld [vmem:[%s708 + $0xa4] sm:$0x1]
        %v1376 = vsel %vm1283, %v1214, %v1375
        %1377 = vst [vmem:[%s708 + $0xa4] sm:$0x1] %v1376
        %v1378 = vld [vmem:[%s708 + $0xa8] sm:$0xf]
        %v1379 = vsel %vm1276, %v1216, %v1378
        %1380 = vst [vmem:[%s708 + $0xa8] sm:$0xf] %v1379
        %1381 = vst.msk [vmem:[%s708 + $0xac] sm:$0xf] %vm1280, %v1218
        %v1382 = vld [vmem:[%s708 + $0xb0] sm:$0x1]
        %v1383 = vsel %vm1283, %v1220, %v1382
        %1384 = vst [vmem:[%s708 + $0xb0] sm:$0x1] %v1383
        %v1385 = vld [vmem:[%s708 + $0xb4] sm:$0xf]
        %v1386 = vsel %vm1276, %v1222, %v1385
        %1387 = vst [vmem:[%s708 + $0xb4] sm:$0xf] %v1386
        %1388 = vst.msk [vmem:[%s708 + $0xb8] sm:$0xf] %vm1280, %v1224
        %v1389 = vld [vmem:[%s708 + $0xbc] sm:$0x1]
        %v1390 = vsel %vm1283, %v1226, %v1389
        %1391 = vst [vmem:[%s708 + $0xbc] sm:$0x1] %v1390
        %v1392 = vld [vmem:[#allocation2] sm:$0xf]
        %v1393 = vld [vmem:[#allocation2 + $0x4] sm:$0xf]
        %v1394 = vld [vmem:[#allocation2 + $0xc] sm:$0xf]
        %v1395 = vld [vmem:[#allocation2 + $0x10] sm:$0xf]
        %v1396 = vld [vmem:[#allocation2 + $0x18] sm:$0xf]
        %v1397 = vld [vmem:[#allocation2 + $0x1c] sm:$0xf]
        %v1398 = vld [vmem:[#allocation2 + $0x24] sm:$0xf]
        %v1399 = vld [vmem:[#allocation2 + $0x28] sm:$0xf]
        %v1400 = vld [vmem:[#allocation2 + $0x30] sm:$0xf]
        %v1401 = vld [vmem:[#allocation2 + $0x34] sm:$0xf]
        %v1402 = vld [vmem:[#allocation2 + $0x3c] sm:$0xf]
        %v1403 = vld [vmem:[#allocation2 + $0x40] sm:$0xf]
        %v1404 = vld [vmem:[#allocation2 + $0x48] sm:$0xf]
        %v1405 = vld [vmem:[#allocation2 + $0x4c] sm:$0xf]
        %v1406 = vld [vmem:[#allocation2 + $0x54] sm:$0xf]
        %v1407 = vld [vmem:[#allocation2 + $0x58] sm:$0xf]
        %v1408 = vld [vmem:[#allocation2 + $0x60] sm:$0xf]
        %v1409 = vld [vmem:[#allocation2 + $0x64] sm:$0xf]
        %v1410 = vld [vmem:[#allocation2 + $0x6c] sm:$0xf]
        %v1411 = vld [vmem:[#allocation2 + $0x70] sm:$0xf]
        %v1412 = vld [vmem:[#allocation2 + $0x78] sm:$0xf]
        %v1413 = vld [vmem:[#allocation2 + $0x7c] sm:$0xf]
        %v1414 = vld [vmem:[#allocation2 + $0x84] sm:$0xf]
        %v1415 = vld [vmem:[#allocation2 + $0x88] sm:$0xf]
        %v1416 = vld [vmem:[#allocation2 + $0x90] sm:$0xf]
        %v1417 = vld [vmem:[#allocation2 + $0x94] sm:$0xf]
        %v1418 = vld [vmem:[#allocation2 + $0x9c] sm:$0xf]
        %v1419 = vld [vmem:[#allocation2 + $0xa0] sm:$0xf]
        %v1420 = vld [vmem:[#allocation2 + $0xa8] sm:$0xf]
        %v1421 = vld [vmem:[#allocation2 + $0xac] sm:$0xf]
        %v1422 = vld [vmem:[#allocation2 + $0xb4] sm:$0xf]
        %v1423 = vld [vmem:[#allocation2 + $0xb8] sm:$0xf]
        %v1424 = vld [vmem:[#allocation2 + $0x8] sm:$0x1]
        %v1425 = vld [vmem:[#allocation2 + $0x14] sm:$0x1]
        %v1426 = vld [vmem:[#allocation2 + $0x20] sm:$0x1]
        %v1427 = vld [vmem:[#allocation2 + $0x2c] sm:$0x1]
        %v1428 = vld [vmem:[#allocation2 + $0x38] sm:$0x1]
        %v1429 = vld [vmem:[#allocation2 + $0x44] sm:$0x1]
        %v1430 = vld [vmem:[#allocation2 + $0x50] sm:$0x1]
        %v1431 = vld [vmem:[#allocation2 + $0x5c] sm:$0x1]
        %v1432 = vld [vmem:[#allocation2 + $0x68] sm:$0x1]
        %v1433 = vld [vmem:[#allocation2 + $0x74] sm:$0x1]
        %v1434 = vld [vmem:[#allocation2 + $0x80] sm:$0x1]
        %v1435 = vld [vmem:[#allocation2 + $0x8c] sm:$0x1]
        %v1436 = vld [vmem:[#allocation2 + $0x98] sm:$0x1]
        %v1437 = vld [vmem:[#allocation2 + $0xa4] sm:$0x1]
        %v1438 = vld [vmem:[#allocation2 + $0xb0] sm:$0x1]
        %v1439 = vld [vmem:[#allocation2 + $0xbc] sm:$0x1]
        %v1440 = vld [vmem:[#allocation2] sm:$0xe]
        %v1441 = vld [vmem:[#allocation2 + $0xc] sm:$0xe]
        %v1442 = vld [vmem:[#allocation2 + $0x18] sm:$0xe]
        %v1443 = vld [vmem:[#allocation2 + $0x24] sm:$0xe]
        %v1444 = vld [vmem:[#allocation2 + $0x30] sm:$0xe]
        %v1445 = vld [vmem:[#allocation2 + $0x3c] sm:$0xe]
        %v1446 = vld [vmem:[#allocation2 + $0x48] sm:$0xe]
        %v1447 = vld [vmem:[#allocation2 + $0x54] sm:$0xe]
        %v1448 = vld [vmem:[#allocation2 + $0x60] sm:$0xe]
        %v1449 = vld [vmem:[#allocation2 + $0x6c] sm:$0xe]
        %v1450 = vld [vmem:[#allocation2 + $0x78] sm:$0xe]
        %v1451 = vld [vmem:[#allocation2 + $0x84] sm:$0xe]
        %v1452 = vld [vmem:[#allocation2 + $0x90] sm:$0xe]
        %v1453 = vld [vmem:[#allocation2 + $0x9c] sm:$0xe]
        %v1454 = vld [vmem:[#allocation2 + $0xa8] sm:$0xe]
        %v1455 = vld [vmem:[#allocation2 + $0xb4] sm:$0xe]
        %v1456 = vld [vmem:[%s708] sm:$0xf]
        %v1457 = vld [vmem:[%s708 + $0x4] sm:$0xf]
        %v1458 = vld [vmem:[%s708 + $0xc] sm:$0xf]
        %v1459 = vld [vmem:[%s708 + $0x10] sm:$0xf]
        %v1460 = vld [vmem:[%s708 + $0x18] sm:$0xf]
        %v1461 = vld [vmem:[%s708 + $0x1c] sm:$0xf]
        %v1462 = vld [vmem:[%s708 + $0x24] sm:$0xf]
        %v1463 = vld [vmem:[%s708 + $0x28] sm:$0xf]
        %v1464 = vld [vmem:[%s708 + $0x30] sm:$0xf]
        %v1465 = vld [vmem:[%s708 + $0x34] sm:$0xf]
        %v1466 = vld [vmem:[%s708 + $0x3c] sm:$0xf]
        %v1467 = vld [vmem:[%s708 + $0x40] sm:$0xf]
        %v1468 = vld [vmem:[%s708 + $0x48] sm:$0xf]
        %v1469 = vld [vmem:[%s708 + $0x4c] sm:$0xf]
        %v1470 = vld [vmem:[%s708 + $0x54] sm:$0xf]
        %v1471 = vld [vmem:[%s708 + $0x58] sm:$0xf]
        %v1472 = vld [vmem:[%s708 + $0x60] sm:$0xf]
        %v1473 = vld [vmem:[%s708 + $0x64] sm:$0xf]
        %v1474 = vld [vmem:[%s708 + $0x6c] sm:$0xf]
        %v1475 = vld [vmem:[%s708 + $0x70] sm:$0xf]
        %v1476 = vld [vmem:[%s708 + $0x78] sm:$0xf]
        %v1477 = vld [vmem:[%s708 + $0x7c] sm:$0xf]
        %v1478 = vld [vmem:[%s708 + $0x84] sm:$0xf]
        %v1479 = vld [vmem:[%s708 + $0x88] sm:$0xf]
        %v1480 = vld [vmem:[%s708 + $0x90] sm:$0xf]
        %v1481 = vld [vmem:[%s708 + $0x94] sm:$0xf]
        %v1482 = vld [vmem:[%s708 + $0x9c] sm:$0xf]
        %v1483 = vld [vmem:[%s708 + $0xa0] sm:$0xf]
        %v1484 = vld [vmem:[%s708 + $0xa8] sm:$0xf]
        %v1485 = vld [vmem:[%s708 + $0xac] sm:$0xf]
        %v1486 = vld [vmem:[%s708 + $0xb4] sm:$0xf]
        %v1487 = vld [vmem:[%s708 + $0xb8] sm:$0xf]
        %v1488 = vld [vmem:[%s708 + $0x8] sm:$0x1]
        %v1489 = vld [vmem:[%s708 + $0x14] sm:$0x1]
        %v1490 = vld [vmem:[%s708 + $0x20] sm:$0x1]
        %v1491 = vld [vmem:[%s708 + $0x2c] sm:$0x1]
        %v1492 = vld [vmem:[%s708 + $0x38] sm:$0x1]
        %v1493 = vld [vmem:[%s708 + $0x44] sm:$0x1]
        %v1494 = vld [vmem:[%s708 + $0x50] sm:$0x1]
        %v1495 = vld [vmem:[%s708 + $0x5c] sm:$0x1]
        %v1496 = vld [vmem:[%s708 + $0x68] sm:$0x1]
        %v1497 = vld [vmem:[%s708 + $0x74] sm:$0x1]
        %v1498 = vld [vmem:[%s708 + $0x80] sm:$0x1]
        %v1499 = vld [vmem:[%s708 + $0x8c] sm:$0x1]
        %v1500 = vld [vmem:[%s708 + $0x98] sm:$0x1]
        %v1501 = vld [vmem:[%s708 + $0xa4] sm:$0x1]
        %v1502 = vld [vmem:[%s708 + $0xb0] sm:$0x1]
        %v1503 = vld [vmem:[%s708 + $0xbc] sm:$0x1]
        %v1504 = vld [vmem:[%s708] sm:$0xe]
        %v1505 = vld [vmem:[%s708 + $0xc] sm:$0xe]
        %v1506 = vld [vmem:[%s708 + $0x18] sm:$0xe]
        %v1507 = vld [vmem:[%s708 + $0x24] sm:$0xe]
        %v1508 = vld [vmem:[%s708 + $0x30] sm:$0xe]
        %v1509 = vld [vmem:[%s708 + $0x3c] sm:$0xe]
        %v1510 = vld [vmem:[%s708 + $0x48] sm:$0xe]
        %v1511 = vld [vmem:[%s708 + $0x54] sm:$0xe]
        %v1512 = vld [vmem:[%s708 + $0x60] sm:$0xe]
        %v1513 = vld [vmem:[%s708 + $0x6c] sm:$0xe]
        %v1514 = vld [vmem:[%s708 + $0x78] sm:$0xe]
        %v1515 = vld [vmem:[%s708 + $0x84] sm:$0xe]
        %v1516 = vld [vmem:[%s708 + $0x90] sm:$0xe]
        %v1517 = vld [vmem:[%s708 + $0x9c] sm:$0xe]
        %v1518 = vld [vmem:[%s708 + $0xa8] sm:$0xe]
        %v1519 = vld [vmem:[%s708 + $0xb4] sm:$0xe]
        %s1520 = scalar_lea.vmem [#allocation2], 24
        %v1521 = vld [vmem:[%s1520] sm:$0xf]
        %v1522 = vld [vmem:[%s1520 + $0x4] sm:$0xf]
        %v1523 = vld [vmem:[%s1520 + $0xc] sm:$0xf]
        %v1524 = vld [vmem:[%s1520 + $0x10] sm:$0xf]
        %v1525 = vld [vmem:[%s1520 + $0x18] sm:$0xf]
        %v1526 = vld [vmem:[%s1520 + $0x1c] sm:$0xf]
        %v1527 = vld [vmem:[%s1520 + $0x24] sm:$0xf]
        %v1528 = vld [vmem:[%s1520 + $0x28] sm:$0xf]
        %v1529 = vld [vmem:[%s1520 + $0x30] sm:$0xf]
        %v1530 = vld [vmem:[%s1520 + $0x34] sm:$0xf]
        %v1531 = vld [vmem:[%s1520 + $0x3c] sm:$0xf]
        %v1532 = vld [vmem:[%s1520 + $0x40] sm:$0xf]
        %v1533 = vld [vmem:[%s1520 + $0x48] sm:$0xf]
        %v1534 = vld [vmem:[%s1520 + $0x4c] sm:$0xf]
        %v1535 = vld [vmem:[%s1520 + $0x54] sm:$0xf]
        %v1536 = vld [vmem:[%s1520 + $0x58] sm:$0xf]
        %v1537 = vld [vmem:[%s1520 + $0x60] sm:$0xf]
        %v1538 = vld [vmem:[%s1520 + $0x64] sm:$0xf]
        %v1539 = vld [vmem:[%s1520 + $0x6c] sm:$0xf]
        %v1540 = vld [vmem:[%s1520 + $0x70] sm:$0xf]
        %v1541 = vld [vmem:[%s1520 + $0x78] sm:$0xf]
        %v1542 = vld [vmem:[%s1520 + $0x7c] sm:$0xf]
        %v1543 = vld [vmem:[%s1520 + $0x84] sm:$0xf]
        %v1544 = vld [vmem:[%s1520 + $0x88] sm:$0xf]
        %v1545 = vld [vmem:[%s1520 + $0x90] sm:$0xf]
        %v1546 = vld [vmem:[%s1520 + $0x94] sm:$0xf]
        %v1547 = vld [vmem:[%s1520 + $0x9c] sm:$0xf]
        %v1548 = vld [vmem:[%s1520 + $0xa0] sm:$0xf]
        %v1549 = vld [vmem:[%s1520 + $0xa8] sm:$0xf]
        %v1550 = vld [vmem:[%s1520 + $0xac] sm:$0xf]
        %v1551 = vld [vmem:[%s1520 + $0xb4] sm:$0xf]
        %v1552 = vld [vmem:[%s1520 + $0xb8] sm:$0xf]
        %v1553 = vld [vmem:[%s1520 + $0x8] sm:$0x1]
        %v1554 = vld [vmem:[%s1520 + $0x14] sm:$0x1]
        %v1555 = vld [vmem:[%s1520 + $0x20] sm:$0x1]
        %v1556 = vld [vmem:[%s1520 + $0x2c] sm:$0x1]
        %v1557 = vld [vmem:[%s1520 + $0x38] sm:$0x1]
        %v1558 = vld [vmem:[%s1520 + $0x44] sm:$0x1]
        %v1559 = vld [vmem:[%s1520 + $0x50] sm:$0x1]
        %v1560 = vld [vmem:[%s1520 + $0x5c] sm:$0x1]
        %v1561 = vld [vmem:[%s1520 + $0x68] sm:$0x1]
        %v1562 = vld [vmem:[%s1520 + $0x74] sm:$0x1]
        %v1563 = vld [vmem:[%s1520 + $0x80] sm:$0x1]
        %v1564 = vld [vmem:[%s1520 + $0x8c] sm:$0x1]
        %v1565 = vld [vmem:[%s1520 + $0x98] sm:$0x1]
        %v1566 = vld [vmem:[%s1520 + $0xa4] sm:$0x1]
        %v1567 = vld [vmem:[%s1520 + $0xb0] sm:$0x1]
        %v1568 = vld [vmem:[%s1520 + $0xbc] sm:$0x1]
        %v1569 = vld [vmem:[%s1520] sm:$0xe]
        %v1570 = vld [vmem:[%s1520 + $0xc] sm:$0xe]
        %v1571 = vld [vmem:[%s1520 + $0x18] sm:$0xe]
        %v1572 = vld [vmem:[%s1520 + $0x24] sm:$0xe]
        %v1573 = vld [vmem:[%s1520 + $0x30] sm:$0xe]
        %v1574 = vld [vmem:[%s1520 + $0x3c] sm:$0xe]
        %v1575 = vld [vmem:[%s1520 + $0x48] sm:$0xe]
        %v1576 = vld [vmem:[%s1520 + $0x54] sm:$0xe]
        %v1577 = vld [vmem:[%s1520 + $0x60] sm:$0xe]
        %v1578 = vld [vmem:[%s1520 + $0x6c] sm:$0xe]
        %v1579 = vld [vmem:[%s1520 + $0x78] sm:$0xe]
        %v1580 = vld [vmem:[%s1520 + $0x84] sm:$0xe]
        %v1581 = vld [vmem:[%s1520 + $0x90] sm:$0xe]
        %v1582 = vld [vmem:[%s1520 + $0x9c] sm:$0xe]
        %v1583 = vld [vmem:[%s1520 + $0xa8] sm:$0xe]
        %v1584 = vld [vmem:[%s1520 + $0xb4] sm:$0xe]
        %v1617 = vunpack.c.l.b16 %v1392
        %v1618 = vunpack.c.l.b16 %v1393
        %v1619 = vunpack.c.l.b16 %v1394
        %v1620 = vunpack.c.l.b16 %v1395
        %v1621 = vunpack.c.l.b16 %v1396
        %v1622 = vunpack.c.l.b16 %v1397
        %v1623 = vunpack.c.l.b16 %v1398
        %v1624 = vunpack.c.l.b16 %v1399
        %v1625 = vunpack.c.l.b16 %v1400
        %v1626 = vunpack.c.l.b16 %v1401
        %v1627 = vunpack.c.l.b16 %v1402
        %v1628 = vunpack.c.l.b16 %v1403
        %v1629 = vunpack.c.l.b16 %v1404
        %v1630 = vunpack.c.l.b16 %v1405
        %v1631 = vunpack.c.l.b16 %v1406
        %v1632 = vunpack.c.l.b16 %v1407
        %v1633 = vunpack.c.l.b16 %v1408
        %v1634 = vunpack.c.l.b16 %v1409
        %v1635 = vunpack.c.l.b16 %v1410
        %v1636 = vunpack.c.l.b16 %v1411
        %v1637 = vunpack.c.l.b16 %v1412
        %v1638 = vunpack.c.l.b16 %v1413
        %v1639 = vunpack.c.l.b16 %v1414
        %v1640 = vunpack.c.l.b16 %v1415
        %v1641 = vunpack.c.l.b16 %v1416
        %v1642 = vunpack.c.l.b16 %v1417
        %v1643 = vunpack.c.l.b16 %v1418
        %v1644 = vunpack.c.l.b16 %v1419
        %v1645 = vunpack.c.l.b16 %v1420
        %v1646 = vunpack.c.l.b16 %v1421
        %v1647 = vunpack.c.l.b16 %v1422
        %v1648 = vunpack.c.l.b16 %v1423
        %v1649 = vpack.c.b16 %v1618, %v1617
        %v1650 = vpack.c.b16 %v1620, %v1619
        %v1651 = vpack.c.b16 %v1622, %v1621
        %v1652 = vpack.c.b16 %v1624, %v1623
        %v1653 = vpack.c.b16 %v1626, %v1625
        %v1654 = vpack.c.b16 %v1628, %v1627
        %v1655 = vpack.c.b16 %v1630, %v1629
        %v1656 = vpack.c.b16 %v1632, %v1631
        %v1657 = vpack.c.b16 %v1634, %v1633
        %v1658 = vpack.c.b16 %v1636, %v1635
        %v1659 = vpack.c.b16 %v1638, %v1637
        %v1660 = vpack.c.b16 %v1640, %v1639
        %v1661 = vpack.c.b16 %v1642, %v1641
        %v1662 = vpack.c.b16 %v1644, %v1643
        %v1663 = vpack.c.b16 %v1646, %v1645
        %v1664 = vpack.c.b16 %v1648, %v1647
        %v1697 = vunpack.c.l.b16 %v1424
        %v1698 = vunpack.c.l.b16 %v1425
        %v1699 = vunpack.c.l.b16 %v1426
        %v1700 = vunpack.c.l.b16 %v1427
        %v1701 = vunpack.c.l.b16 %v1428
        %v1702 = vunpack.c.l.b16 %v1429
        %v1703 = vunpack.c.l.b16 %v1430
        %v1704 = vunpack.c.l.b16 %v1431
        %v1705 = vunpack.c.l.b16 %v1432
        %v1706 = vunpack.c.l.b16 %v1433
        %v1707 = vunpack.c.l.b16 %v1434
        %v1708 = vunpack.c.l.b16 %v1435
        %v1709 = vunpack.c.l.b16 %v1436
        %v1710 = vunpack.c.l.b16 %v1437
        %v1711 = vunpack.c.l.b16 %v1438
        %v1712 = vunpack.c.l.b16 %v1439
        %v1713 = vpack.c.b16 %v1697, %v1697
        %v1714 = vpack.c.b16 %v1698, %v1698
        %v1715 = vpack.c.b16 %v1699, %v1699
        %v1716 = vpack.c.b16 %v1700, %v1700
        %v1717 = vpack.c.b16 %v1701, %v1701
        %v1718 = vpack.c.b16 %v1702, %v1702
        %v1719 = vpack.c.b16 %v1703, %v1703
        %v1720 = vpack.c.b16 %v1704, %v1704
        %v1721 = vpack.c.b16 %v1705, %v1705
        %v1722 = vpack.c.b16 %v1706, %v1706
        %v1723 = vpack.c.b16 %v1707, %v1707
        %v1724 = vpack.c.b16 %v1708, %v1708
        %v1725 = vpack.c.b16 %v1709, %v1709
        %v1726 = vpack.c.b16 %v1710, %v1710
        %v1727 = vpack.c.b16 %v1711, %v1711
        %v1728 = vpack.c.b16 %v1712, %v1712
        %vm1729 = vsmask.f32 7424
        %v1731 = vshrl.u32 %v1649, 16
        %v1733 = vshll.u32 %v1649, 16
        %v1735 = vrot.slane %v1733, 1
        %v1736 = vor.u32 %v1731, %v1735
        %v1738 = vshll.u32 %v1713, 16
        %v1740 = vrot.slane %v1738, 1
        %v1741 = vsel %vm1729, %v1736, %v1740
        %v1743 = vshrl.u32 %v1650, 16
        %v1745 = vshll.u32 %v1650, 16
        %v1747 = vrot.slane %v1745, 1
        %v1748 = vor.u32 %v1743, %v1747
        %v1750 = vshll.u32 %v1714, 16
        %v1752 = vrot.slane %v1750, 1
        %v1753 = vsel %vm1729, %v1748, %v1752
        %v1755 = vshrl.u32 %v1651, 16
        %v1757 = vshll.u32 %v1651, 16
        %v1759 = vrot.slane %v1757, 1
        %v1760 = vor.u32 %v1755, %v1759
        %v1762 = vshll.u32 %v1715, 16
        %v1764 = vrot.slane %v1762, 1
        %v1765 = vsel %vm1729, %v1760, %v1764
        %v1767 = vshrl.u32 %v1652, 16
        %v1769 = vshll.u32 %v1652, 16
        %v1771 = vrot.slane %v1769, 1
        %v1772 = vor.u32 %v1767, %v1771
        %v1774 = vshll.u32 %v1716, 16
        %v1776 = vrot.slane %v1774, 1
        %v1777 = vsel %vm1729, %v1772, %v1776
        %v1779 = vshrl.u32 %v1653, 16
        %v1781 = vshll.u32 %v1653, 16
        %v1783 = vrot.slane %v1781, 1
        %v1784 = vor.u32 %v1779, %v1783
        %v1786 = vshll.u32 %v1717, 16
        %v1788 = vrot.slane %v1786, 1
        %v1789 = vsel %vm1729, %v1784, %v1788
        %v1791 = vshrl.u32 %v1654, 16
        %v1793 = vshll.u32 %v1654, 16
        %v1795 = vrot.slane %v1793, 1
        %v1796 = vor.u32 %v1791, %v1795
        %v1798 = vshll.u32 %v1718, 16
        %v1800 = vrot.slane %v1798, 1
        %v1801 = vsel %vm1729, %v1796, %v1800
        %v1803 = vshrl.u32 %v1655, 16
        %v1805 = vshll.u32 %v1655, 16
        %v1807 = vrot.slane %v1805, 1
        %v1808 = vor.u32 %v1803, %v1807
        %v1810 = vshll.u32 %v1719, 16
        %v1812 = vrot.slane %v1810, 1
        %v1813 = vsel %vm1729, %v1808, %v1812
        %v1815 = vshrl.u32 %v1656, 16
        %v1817 = vshll.u32 %v1656, 16
        %v1819 = vrot.slane %v1817, 1
        %v1820 = vor.u32 %v1815, %v1819
        %v1822 = vshll.u32 %v1720, 16
        %v1824 = vrot.slane %v1822, 1
        %v1825 = vsel %vm1729, %v1820, %v1824
        %v1827 = vshrl.u32 %v1657, 16
        %v1829 = vshll.u32 %v1657, 16
        %v1831 = vrot.slane %v1829, 1
        %v1832 = vor.u32 %v1827, %v1831
        %v1834 = vshll.u32 %v1721, 16
        %v1836 = vrot.slane %v1834, 1
        %v1837 = vsel %vm1729, %v1832, %v1836
        %v1839 = vshrl.u32 %v1658, 16
        %v1841 = vshll.u32 %v1658, 16
        %v1843 = vrot.slane %v1841, 1
        %v1844 = vor.u32 %v1839, %v1843
        %v1846 = vshll.u32 %v1722, 16
        %v1848 = vrot.slane %v1846, 1
        %v1849 = vsel %vm1729, %v1844, %v1848
        %v1851 = vshrl.u32 %v1659, 16
        %v1853 = vshll.u32 %v1659, 16
        %v1855 = vrot.slane %v1853, 1
        %v1856 = vor.u32 %v1851, %v1855
        %v1858 = vshll.u32 %v1723, 16
        %v1860 = vrot.slane %v1858, 1
        %v1861 = vsel %vm1729, %v1856, %v1860
        %v1863 = vshrl.u32 %v1660, 16
        %v1865 = vshll.u32 %v1660, 16
        %v1867 = vrot.slane %v1865, 1
        %v1868 = vor.u32 %v1863, %v1867
        %v1870 = vshll.u32 %v1724, 16
        %v1872 = vrot.slane %v1870, 1
        %v1873 = vsel %vm1729, %v1868, %v1872
        %v1875 = vshrl.u32 %v1661, 16
        %v1877 = vshll.u32 %v1661, 16
        %v1879 = vrot.slane %v1877, 1
        %v1880 = vor.u32 %v1875, %v1879
        %v1882 = vshll.u32 %v1725, 16
        %v1884 = vrot.slane %v1882, 1
        %v1885 = vsel %vm1729, %v1880, %v1884
        %v1887 = vshrl.u32 %v1662, 16
        %v1889 = vshll.u32 %v1662, 16
        %v1891 = vrot.slane %v1889, 1
        %v1892 = vor.u32 %v1887, %v1891
        %v1894 = vshll.u32 %v1726, 16
        %v1896 = vrot.slane %v1894, 1
        %v1897 = vsel %vm1729, %v1892, %v1896
        %v1899 = vshrl.u32 %v1663, 16
        %v1901 = vshll.u32 %v1663, 16
        %v1903 = vrot.slane %v1901, 1
        %v1904 = vor.u32 %v1899, %v1903
        %v1906 = vshll.u32 %v1727, 16
        %v1908 = vrot.slane %v1906, 1
        %v1909 = vsel %vm1729, %v1904, %v1908
        %v1911 = vshrl.u32 %v1664, 16
        %v1913 = vshll.u32 %v1664, 16
        %v1915 = vrot.slane %v1913, 1
        %v1916 = vor.u32 %v1911, %v1915
        %v1918 = vshll.u32 %v1728, 16
        %v1920 = vrot.slane %v1918, 1
        %v1921 = vsel %vm1729, %v1916, %v1920
        %v1954 = vunpack.c.l.b16 %v1440
        %v1955 = vunpack.c.l.b16 %v1441
        %v1956 = vunpack.c.l.b16 %v1442
        %v1957 = vunpack.c.l.b16 %v1443
        %v1958 = vunpack.c.l.b16 %v1444
        %v1959 = vunpack.c.l.b16 %v1445
        %v1960 = vunpack.c.l.b16 %v1446
        %v1961 = vunpack.c.l.b16 %v1447
        %v1962 = vunpack.c.l.b16 %v1448
        %v1963 = vunpack.c.l.b16 %v1449
        %v1964 = vunpack.c.l.b16 %v1450
        %v1965 = vunpack.c.l.b16 %v1451
        %v1966 = vunpack.c.l.b16 %v1452
        %v1967 = vunpack.c.l.b16 %v1453
        %v1968 = vunpack.c.l.b16 %v1454
        %v1969 = vunpack.c.l.b16 %v1455
        %v1970 = vpack.c.b16 %v1618, %v1954
        %v1971 = vpack.c.b16 %v1620, %v1955
        %v1972 = vpack.c.b16 %v1622, %v1956
        %v1973 = vpack.c.b16 %v1624, %v1957
        %v1974 = vpack.c.b16 %v1626, %v1958
        %v1975 = vpack.c.b16 %v1628, %v1959
        %v1976 = vpack.c.b16 %v1630, %v1960
        %v1977 = vpack.c.b16 %v1632, %v1961
        %v1978 = vpack.c.b16 %v1634, %v1962
        %v1979 = vpack.c.b16 %v1636, %v1963
        %v1980 = vpack.c.b16 %v1638, %v1964
        %v1981 = vpack.c.b16 %v1640, %v1965
        %v1982 = vpack.c.b16 %v1642, %v1966
        %v1983 = vpack.c.b16 %v1644, %v1967
        %v1984 = vpack.c.b16 %v1646, %v1968
        %v1985 = vpack.c.b16 %v1648, %v1969
        %vm1986 = vcmask 1046528
        %v1987 = vrot.slane %v1970, 1
        %v1988 = vrot.slane %v1713, 1
        %v1989 = vsel %vm1986, %v1987, %v1988
        %v1990 = vrot.slane %v1971, 1
        %v1991 = vrot.slane %v1714, 1
        %v1992 = vsel %vm1986, %v1990, %v1991
        %v1993 = vrot.slane %v1972, 1
        %v1994 = vrot.slane %v1715, 1
        %v1995 = vsel %vm1986, %v1993, %v1994
        %v1996 = vrot.slane %v1973, 1
        %v1997 = vrot.slane %v1716, 1
        %v1998 = vsel %vm1986, %v1996, %v1997
        %v1999 = vrot.slane %v1974, 1
        %v2000 = vrot.slane %v1717, 1
        %v2001 = vsel %vm1986, %v1999, %v2000
        %v2002 = vrot.slane %v1975, 1
        %v2003 = vrot.slane %v1718, 1
        %v2004 = vsel %vm1986, %v2002, %v2003
        %v2005 = vrot.slane %v1976, 1
        %v2006 = vrot.slane %v1719, 1
        %v2007 = vsel %vm1986, %v2005, %v2006
        %v2008 = vrot.slane %v1977, 1
        %v2009 = vrot.slane %v1720, 1
        %v2010 = vsel %vm1986, %v2008, %v2009
        %v2011 = vrot.slane %v1978, 1
        %v2012 = vrot.slane %v1721, 1
        %v2013 = vsel %vm1986, %v2011, %v2012
        %v2014 = vrot.slane %v1979, 1
        %v2015 = vrot.slane %v1722, 1
        %v2016 = vsel %vm1986, %v2014, %v2015
        %v2017 = vrot.slane %v1980, 1
        %v2018 = vrot.slane %v1723, 1
        %v2019 = vsel %vm1986, %v2017, %v2018
        %v2020 = vrot.slane %v1981, 1
        %v2021 = vrot.slane %v1724, 1
        %v2022 = vsel %vm1986, %v2020, %v2021
        %v2023 = vrot.slane %v1982, 1
        %v2024 = vrot.slane %v1725, 1
        %v2025 = vsel %vm1986, %v2023, %v2024
        %v2026 = vrot.slane %v1983, 1
        %v2027 = vrot.slane %v1726, 1
        %v2028 = vsel %vm1986, %v2026, %v2027
        %v2029 = vrot.slane %v1984, 1
        %v2030 = vrot.slane %v1727, 1
        %v2031 = vsel %vm1986, %v2029, %v2030
        %v2032 = vrot.slane %v1985, 1
        %v2033 = vrot.slane %v1728, 1
        %v2034 = vsel %vm1986, %v2032, %v2033
        %v2083 = vunpack.c.l.b16 %v1456
        %v2084 = vunpack.c.l.b16 %v1457
        %v2085 = vunpack.c.l.b16 %v1458
        %v2086 = vunpack.c.l.b16 %v1459
        %v2087 = vunpack.c.l.b16 %v1460
        %v2088 = vunpack.c.l.b16 %v1461
        %v2089 = vunpack.c.l.b16 %v1462
        %v2090 = vunpack.c.l.b16 %v1463
        %v2091 = vunpack.c.l.b16 %v1464
        %v2092 = vunpack.c.l.b16 %v1465
        %v2093 = vunpack.c.l.b16 %v1466
        %v2094 = vunpack.c.l.b16 %v1467
        %v2095 = vunpack.c.l.b16 %v1468
        %v2096 = vunpack.c.l.b16 %v1469
        %v2097 = vunpack.c.l.b16 %v1470
        %v2098 = vunpack.c.l.b16 %v1471
        %v2099 = vunpack.c.l.b16 %v1472
        %v2100 = vunpack.c.l.b16 %v1473
        %v2101 = vunpack.c.l.b16 %v1474
        %v2102 = vunpack.c.l.b16 %v1475
        %v2103 = vunpack.c.l.b16 %v1476
        %v2104 = vunpack.c.l.b16 %v1477
        %v2105 = vunpack.c.l.b16 %v1478
        %v2106 = vunpack.c.l.b16 %v1479
        %v2107 = vunpack.c.l.b16 %v1480
        %v2108 = vunpack.c.l.b16 %v1481
        %v2109 = vunpack.c.l.b16 %v1482
        %v2110 = vunpack.c.l.b16 %v1483
        %v2111 = vunpack.c.l.b16 %v1484
        %v2112 = vunpack.c.l.b16 %v1485
        %v2113 = vunpack.c.l.b16 %v1486
        %v2114 = vunpack.c.l.b16 %v1487
        %v2115 = vpack.c.b16 %v2084, %v2083
        %v2116 = vpack.c.b16 %v2086, %v2085
        %v2117 = vpack.c.b16 %v2088, %v2087
        %v2118 = vpack.c.b16 %v2090, %v2089
        %v2119 = vpack.c.b16 %v2092, %v2091
        %v2120 = vpack.c.b16 %v2094, %v2093
        %v2121 = vpack.c.b16 %v2096, %v2095
        %v2122 = vpack.c.b16 %v2098, %v2097
        %v2123 = vpack.c.b16 %v2100, %v2099
        %v2124 = vpack.c.b16 %v2102, %v2101
        %v2125 = vpack.c.b16 %v2104, %v2103
        %v2126 = vpack.c.b16 %v2106, %v2105
        %v2127 = vpack.c.b16 %v2108, %v2107
        %v2128 = vpack.c.b16 %v2110, %v2109
        %v2129 = vpack.c.b16 %v2112, %v2111
        %v2130 = vpack.c.b16 %v2114, %v2113
        %v2163 = vunpack.c.l.b16 %v1488
        %v2164 = vunpack.c.l.b16 %v1489
        %v2165 = vunpack.c.l.b16 %v1490
        %v2166 = vunpack.c.l.b16 %v1491
        %v2167 = vunpack.c.l.b16 %v1492
        %v2168 = vunpack.c.l.b16 %v1493
        %v2169 = vunpack.c.l.b16 %v1494
        %v2170 = vunpack.c.l.b16 %v1495
        %v2171 = vunpack.c.l.b16 %v1496
        %v2172 = vunpack.c.l.b16 %v1497
        %v2173 = vunpack.c.l.b16 %v1498
        %v2174 = vunpack.c.l.b16 %v1499
        %v2175 = vunpack.c.l.b16 %v1500
        %v2176 = vunpack.c.l.b16 %v1501
        %v2177 = vunpack.c.l.b16 %v1502
        %v2178 = vunpack.c.l.b16 %v1503
        %v2179 = vpack.c.b16 %v2163, %v2163
        %v2180 = vpack.c.b16 %v2164, %v2164
        %v2181 = vpack.c.b16 %v2165, %v2165
        %v2182 = vpack.c.b16 %v2166, %v2166
        %v2183 = vpack.c.b16 %v2167, %v2167
        %v2184 = vpack.c.b16 %v2168, %v2168
        %v2185 = vpack.c.b16 %v2169, %v2169
        %v2186 = vpack.c.b16 %v2170, %v2170
        %v2187 = vpack.c.b16 %v2171, %v2171
        %v2188 = vpack.c.b16 %v2172, %v2172
        %v2189 = vpack.c.b16 %v2173, %v2173
        %v2190 = vpack.c.b16 %v2174, %v2174
        %v2191 = vpack.c.b16 %v2175, %v2175
        %v2192 = vpack.c.b16 %v2176, %v2176
        %v2193 = vpack.c.b16 %v2177, %v2177
        %v2194 = vpack.c.b16 %v2178, %v2178
        %v2196 = vshrl.u32 %v2115, 16
        %v2198 = vshll.u32 %v2115, 16
        %v2200 = vrot.slane %v2198, 1
        %v2201 = vor.u32 %v2196, %v2200
        %v2203 = vshll.u32 %v2179, 16
        %v2205 = vrot.slane %v2203, 1
        %v2206 = vsel %vm1729, %v2201, %v2205
        %v2208 = vshrl.u32 %v2116, 16
        %v2210 = vshll.u32 %v2116, 16
        %v2212 = vrot.slane %v2210, 1
        %v2213 = vor.u32 %v2208, %v2212
        %v2215 = vshll.u32 %v2180, 16
        %v2217 = vrot.slane %v2215, 1
        %v2218 = vsel %vm1729, %v2213, %v2217
        %v2220 = vshrl.u32 %v2117, 16
        %v2222 = vshll.u32 %v2117, 16
        %v2224 = vrot.slane %v2222, 1
        %v2225 = vor.u32 %v2220, %v2224
        %v2227 = vshll.u32 %v2181, 16
        %v2229 = vrot.slane %v2227, 1
        %v2230 = vsel %vm1729, %v2225, %v2229
        %v2232 = vshrl.u32 %v2118, 16
        %v2234 = vshll.u32 %v2118, 16
        %v2236 = vrot.slane %v2234, 1
        %v2237 = vor.u32 %v2232, %v2236
        %v2239 = vshll.u32 %v2182, 16
        %v2241 = vrot.slane %v2239, 1
        %v2242 = vsel %vm1729, %v2237, %v2241
        %v2244 = vshrl.u32 %v2119, 16
        %v2246 = vshll.u32 %v2119, 16
        %v2248 = vrot.slane %v2246, 1
        %v2249 = vor.u32 %v2244, %v2248
        %v2251 = vshll.u32 %v2183, 16
        %v2253 = vrot.slane %v2251, 1
        %v2254 = vsel %vm1729, %v2249, %v2253
        %v2256 = vshrl.u32 %v2120, 16
        %v2258 = vshll.u32 %v2120, 16
        %v2260 = vrot.slane %v2258, 1
        %v2261 = vor.u32 %v2256, %v2260
        %v2263 = vshll.u32 %v2184, 16
        %v2265 = vrot.slane %v2263, 1
        %v2266 = vsel %vm1729, %v2261, %v2265
        %v2268 = vshrl.u32 %v2121, 16
        %v2270 = vshll.u32 %v2121, 16
        %v2272 = vrot.slane %v2270, 1
        %v2273 = vor.u32 %v2268, %v2272
        %v2275 = vshll.u32 %v2185, 16
        %v2277 = vrot.slane %v2275, 1
        %v2278 = vsel %vm1729, %v2273, %v2277
        %v2280 = vshrl.u32 %v2122, 16
        %v2282 = vshll.u32 %v2122, 16
        %v2284 = vrot.slane %v2282, 1
        %v2285 = vor.u32 %v2280, %v2284
        %v2287 = vshll.u32 %v2186, 16
        %v2289 = vrot.slane %v2287, 1
        %v2290 = vsel %vm1729, %v2285, %v2289
        %v2292 = vshrl.u32 %v2123, 16
        %v2294 = vshll.u32 %v2123, 16
        %v2296 = vrot.slane %v2294, 1
        %v2297 = vor.u32 %v2292, %v2296
        %v2299 = vshll.u32 %v2187, 16
        %v2301 = vrot.slane %v2299, 1
        %v2302 = vsel %vm1729, %v2297, %v2301
        %v2304 = vshrl.u32 %v2124, 16
        %v2306 = vshll.u32 %v2124, 16
        %v2308 = vrot.slane %v2306, 1
        %v2309 = vor.u32 %v2304, %v2308
        %v2311 = vshll.u32 %v2188, 16
        %v2313 = vrot.slane %v2311, 1
        %v2314 = vsel %vm1729, %v2309, %v2313
        %v2316 = vshrl.u32 %v2125, 16
        %v2318 = vshll.u32 %v2125, 16
        %v2320 = vrot.slane %v2318, 1
        %v2321 = vor.u32 %v2316, %v2320
        %v2323 = vshll.u32 %v2189, 16
        %v2325 = vrot.slane %v2323, 1
        %v2326 = vsel %vm1729, %v2321, %v2325
        %v2328 = vshrl.u32 %v2126, 16
        %v2330 = vshll.u32 %v2126, 16
        %v2332 = vrot.slane %v2330, 1
        %v2333 = vor.u32 %v2328, %v2332
        %v2335 = vshll.u32 %v2190, 16
        %v2337 = vrot.slane %v2335, 1
        %v2338 = vsel %vm1729, %v2333, %v2337
        %v2340 = vshrl.u32 %v2127, 16
        %v2342 = vshll.u32 %v2127, 16
        %v2344 = vrot.slane %v2342, 1
        %v2345 = vor.u32 %v2340, %v2344
        %v2347 = vshll.u32 %v2191, 16
        %v2349 = vrot.slane %v2347, 1
        %v2350 = vsel %vm1729, %v2345, %v2349
        %v2352 = vshrl.u32 %v2128, 16
        %v2354 = vshll.u32 %v2128, 16
        %v2356 = vrot.slane %v2354, 1
        %v2357 = vor.u32 %v2352, %v2356
        %v2359 = vshll.u32 %v2192, 16
        %v2361 = vrot.slane %v2359, 1
        %v2362 = vsel %vm1729, %v2357, %v2361
        %v2364 = vshrl.u32 %v2129, 16
        %v2366 = vshll.u32 %v2129, 16
        %v2368 = vrot.slane %v2366, 1
        %v2369 = vor.u32 %v2364, %v2368
        %v2371 = vshll.u32 %v2193, 16
        %v2373 = vrot.slane %v2371, 1
        %v2374 = vsel %vm1729, %v2369, %v2373
        %v2376 = vshrl.u32 %v2130, 16
        %v2378 = vshll.u32 %v2130, 16
        %v2380 = vrot.slane %v2378, 1
        %v2381 = vor.u32 %v2376, %v2380
        %v2383 = vshll.u32 %v2194, 16
        %v2385 = vrot.slane %v2383, 1
        %v2386 = vsel %vm1729, %v2381, %v2385
        %v2419 = vunpack.c.l.b16 %v1504
        %v2420 = vunpack.c.l.b16 %v1505
        %v2421 = vunpack.c.l.b16 %v1506
        %v2422 = vunpack.c.l.b16 %v1507
        %v2423 = vunpack.c.l.b16 %v1508
        %v2424 = vunpack.c.l.b16 %v1509
        %v2425 = vunpack.c.l.b16 %v1510
        %v2426 = vunpack.c.l.b16 %v1511
        %v2427 = vunpack.c.l.b16 %v1512
        %v2428 = vunpack.c.l.b16 %v1513
        %v2429 = vunpack.c.l.b16 %v1514
        %v2430 = vunpack.c.l.b16 %v1515
        %v2431 = vunpack.c.l.b16 %v1516
        %v2432 = vunpack.c.l.b16 %v1517
        %v2433 = vunpack.c.l.b16 %v1518
        %v2434 = vunpack.c.l.b16 %v1519
        %v2435 = vpack.c.b16 %v2084, %v2419
        %v2436 = vpack.c.b16 %v2086, %v2420
        %v2437 = vpack.c.b16 %v2088, %v2421
        %v2438 = vpack.c.b16 %v2090, %v2422
        %v2439 = vpack.c.b16 %v2092, %v2423
        %v2440 = vpack.c.b16 %v2094, %v2424
        %v2441 = vpack.c.b16 %v2096, %v2425
        %v2442 = vpack.c.b16 %v2098, %v2426
        %v2443 = vpack.c.b16 %v2100, %v2427
        %v2444 = vpack.c.b16 %v2102, %v2428
        %v2445 = vpack.c.b16 %v2104, %v2429
        %v2446 = vpack.c.b16 %v2106, %v2430
        %v2447 = vpack.c.b16 %v2108, %v2431
        %v2448 = vpack.c.b16 %v2110, %v2432
        %v2449 = vpack.c.b16 %v2112, %v2433
        %v2450 = vpack.c.b16 %v2114, %v2434
        %v2451 = vrot.slane %v2435, 1
        %v2452 = vrot.slane %v2179, 1
        %v2453 = vsel %vm1986, %v2451, %v2452
        %v2454 = vrot.slane %v2436, 1
        %v2455 = vrot.slane %v2180, 1
        %v2456 = vsel %vm1986, %v2454, %v2455
        %v2457 = vrot.slane %v2437, 1
        %v2458 = vrot.slane %v2181, 1
        %v2459 = vsel %vm1986, %v2457, %v2458
        %v2460 = vrot.slane %v2438, 1
        %v2461 = vrot.slane %v2182, 1
        %v2462 = vsel %vm1986, %v2460, %v2461
        %v2463 = vrot.slane %v2439, 1
        %v2464 = vrot.slane %v2183, 1
        %v2465 = vsel %vm1986, %v2463, %v2464
        %v2466 = vrot.slane %v2440, 1
        %v2467 = vrot.slane %v2184, 1
        %v2468 = vsel %vm1986, %v2466, %v2467
        %v2469 = vrot.slane %v2441, 1
        %v2470 = vrot.slane %v2185, 1
        %v2471 = vsel %vm1986, %v2469, %v2470
        %v2472 = vrot.slane %v2442, 1
        %v2473 = vrot.slane %v2186, 1
        %v2474 = vsel %vm1986, %v2472, %v2473
        %v2475 = vrot.slane %v2443, 1
        %v2476 = vrot.slane %v2187, 1
        %v2477 = vsel %vm1986, %v2475, %v2476
        %v2478 = vrot.slane %v2444, 1
        %v2479 = vrot.slane %v2188, 1
        %v2480 = vsel %vm1986, %v2478, %v2479
        %v2481 = vrot.slane %v2445, 1
        %v2482 = vrot.slane %v2189, 1
        %v2483 = vsel %vm1986, %v2481, %v2482
        %v2484 = vrot.slane %v2446, 1
        %v2485 = vrot.slane %v2190, 1
        %v2486 = vsel %vm1986, %v2484, %v2485
        %v2487 = vrot.slane %v2447, 1
        %v2488 = vrot.slane %v2191, 1
        %v2489 = vsel %vm1986, %v2487, %v2488
        %v2490 = vrot.slane %v2448, 1
        %v2491 = vrot.slane %v2192, 1
        %v2492 = vsel %vm1986, %v2490, %v2491
        %v2493 = vrot.slane %v2449, 1
        %v2494 = vrot.slane %v2193, 1
        %v2495 = vsel %vm1986, %v2493, %v2494
        %v2496 = vrot.slane %v2450, 1
        %v2497 = vrot.slane %v2194, 1
        %v2498 = vsel %vm1986, %v2496, %v2497
        %v2547 = vunpack.c.l.b16 %v1521
        %v2548 = vunpack.c.l.b16 %v1522
        %v2549 = vunpack.c.l.b16 %v1523
        %v2550 = vunpack.c.l.b16 %v1524
        %v2551 = vunpack.c.l.b16 %v1525
        %v2552 = vunpack.c.l.b16 %v1526
        %v2553 = vunpack.c.l.b16 %v1527
        %v2554 = vunpack.c.l.b16 %v1528
        %v2555 = vunpack.c.l.b16 %v1529
        %v2556 = vunpack.c.l.b16 %v1530
        %v2557 = vunpack.c.l.b16 %v1531
        %v2558 = vunpack.c.l.b16 %v1532
        %v2559 = vunpack.c.l.b16 %v1533
        %v2560 = vunpack.c.l.b16 %v1534
        %v2561 = vunpack.c.l.b16 %v1535
        %v2562 = vunpack.c.l.b16 %v1536
        %v2563 = vunpack.c.l.b16 %v1537
        %v2564 = vunpack.c.l.b16 %v1538
        %v2565 = vunpack.c.l.b16 %v1539
        %v2566 = vunpack.c.l.b16 %v1540
        %v2567 = vunpack.c.l.b16 %v1541
        %v2568 = vunpack.c.l.b16 %v1542
        %v2569 = vunpack.c.l.b16 %v1543
        %v2570 = vunpack.c.l.b16 %v1544
        %v2571 = vunpack.c.l.b16 %v1545
        %v2572 = vunpack.c.l.b16 %v1546
        %v2573 = vunpack.c.l.b16 %v1547
        %v2574 = vunpack.c.l.b16 %v1548
        %v2575 = vunpack.c.l.b16 %v1549
        %v2576 = vunpack.c.l.b16 %v1550
        %v2577 = vunpack.c.l.b16 %v1551
        %v2578 = vunpack.c.l.b16 %v1552
        %v2579 = vpack.c.b16 %v2548, %v2547
        %v2580 = vpack.c.b16 %v2550, %v2549
        %v2581 = vpack.c.b16 %v2552, %v2551
        %v2582 = vpack.c.b16 %v2554, %v2553
        %v2583 = vpack.c.b16 %v2556, %v2555
        %v2584 = vpack.c.b16 %v2558, %v2557
        %v2585 = vpack.c.b16 %v2560, %v2559
        %v2586 = vpack.c.b16 %v2562, %v2561
        %v2587 = vpack.c.b16 %v2564, %v2563
        %v2588 = vpack.c.b16 %v2566, %v2565
        %v2589 = vpack.c.b16 %v2568, %v2567
        %v2590 = vpack.c.b16 %v2570, %v2569
        %v2591 = vpack.c.b16 %v2572, %v2571
        %v2592 = vpack.c.b16 %v2574, %v2573
        %v2593 = vpack.c.b16 %v2576, %v2575
        %v2594 = vpack.c.b16 %v2578, %v2577
        %v2627 = vunpack.c.l.b16 %v1553
        %v2628 = vunpack.c.l.b16 %v1554
        %v2629 = vunpack.c.l.b16 %v1555
        %v2630 = vunpack.c.l.b16 %v1556
        %v2631 = vunpack.c.l.b16 %v1557
        %v2632 = vunpack.c.l.b16 %v1558
        %v2633 = vunpack.c.l.b16 %v1559
        %v2634 = vunpack.c.l.b16 %v1560
        %v2635 = vunpack.c.l.b16 %v1561
        %v2636 = vunpack.c.l.b16 %v1562
        %v2637 = vunpack.c.l.b16 %v1563
        %v2638 = vunpack.c.l.b16 %v1564
        %v2639 = vunpack.c.l.b16 %v1565
        %v2640 = vunpack.c.l.b16 %v1566
        %v2641 = vunpack.c.l.b16 %v1567
        %v2642 = vunpack.c.l.b16 %v1568
        %v2643 = vpack.c.b16 %v2627, %v2627
        %v2644 = vpack.c.b16 %v2628, %v2628
        %v2645 = vpack.c.b16 %v2629, %v2629
        %v2646 = vpack.c.b16 %v2630, %v2630
        %v2647 = vpack.c.b16 %v2631, %v2631
        %v2648 = vpack.c.b16 %v2632, %v2632
        %v2649 = vpack.c.b16 %v2633, %v2633
        %v2650 = vpack.c.b16 %v2634, %v2634
        %v2651 = vpack.c.b16 %v2635, %v2635
        %v2652 = vpack.c.b16 %v2636, %v2636
        %v2653 = vpack.c.b16 %v2637, %v2637
        %v2654 = vpack.c.b16 %v2638, %v2638
        %v2655 = vpack.c.b16 %v2639, %v2639
        %v2656 = vpack.c.b16 %v2640, %v2640
        %v2657 = vpack.c.b16 %v2641, %v2641
        %v2658 = vpack.c.b16 %v2642, %v2642
        %v2660 = vshrl.u32 %v2579, 16
        %v2662 = vshll.u32 %v2579, 16
        %v2664 = vrot.slane %v2662, 1
        %v2665 = vor.u32 %v2660, %v2664
        %v2667 = vshll.u32 %v2643, 16
        %v2669 = vrot.slane %v2667, 1
        %v2670 = vsel %vm1729, %v2665, %v2669
        %v2672 = vshrl.u32 %v2580, 16
        %v2674 = vshll.u32 %v2580, 16
        %v2676 = vrot.slane %v2674, 1
        %v2677 = vor.u32 %v2672, %v2676
        %v2679 = vshll.u32 %v2644, 16
        %v2681 = vrot.slane %v2679, 1
        %v2682 = vsel %vm1729, %v2677, %v2681
        %v2684 = vshrl.u32 %v2581, 16
        %v2686 = vshll.u32 %v2581, 16
        %v2688 = vrot.slane %v2686, 1
        %v2689 = vor.u32 %v2684, %v2688
        %v2691 = vshll.u32 %v2645, 16
        %v2693 = vrot.slane %v2691, 1
        %v2694 = vsel %vm1729, %v2689, %v2693
        %v2696 = vshrl.u32 %v2582, 16
        %v2698 = vshll.u32 %v2582, 16
        %v2700 = vrot.slane %v2698, 1
        %v2701 = vor.u32 %v2696, %v2700
        %v2703 = vshll.u32 %v2646, 16
        %v2705 = vrot.slane %v2703, 1
        %v2706 = vsel %vm1729, %v2701, %v2705
        %v2708 = vshrl.u32 %v2583, 16
        %v2710 = vshll.u32 %v2583, 16
        %v2712 = vrot.slane %v2710, 1
        %v2713 = vor.u32 %v2708, %v2712
        %v2715 = vshll.u32 %v2647, 16
        %v2717 = vrot.slane %v2715, 1
        %v2718 = vsel %vm1729, %v2713, %v2717
        %v2720 = vshrl.u32 %v2584, 16
        %v2722 = vshll.u32 %v2584, 16
        %v2724 = vrot.slane %v2722, 1
        %v2725 = vor.u32 %v2720, %v2724
        %v2727 = vshll.u32 %v2648, 16
        %v2729 = vrot.slane %v2727, 1
        %v2730 = vsel %vm1729, %v2725, %v2729
        %v2732 = vshrl.u32 %v2585, 16
        %v2734 = vshll.u32 %v2585, 16
        %v2736 = vrot.slane %v2734, 1
        %v2737 = vor.u32 %v2732, %v2736
        %v2739 = vshll.u32 %v2649, 16
        %v2741 = vrot.slane %v2739, 1
        %v2742 = vsel %vm1729, %v2737, %v2741
        %v2744 = vshrl.u32 %v2586, 16
        %v2746 = vshll.u32 %v2586, 16
        %v2748 = vrot.slane %v2746, 1
        %v2749 = vor.u32 %v2744, %v2748
        %v2751 = vshll.u32 %v2650, 16
        %v2753 = vrot.slane %v2751, 1
        %v2754 = vsel %vm1729, %v2749, %v2753
        %v2756 = vshrl.u32 %v2587, 16
        %v2758 = vshll.u32 %v2587, 16
        %v2760 = vrot.slane %v2758, 1
        %v2761 = vor.u32 %v2756, %v2760
        %v2763 = vshll.u32 %v2651, 16
        %v2765 = vrot.slane %v2763, 1
        %v2766 = vsel %vm1729, %v2761, %v2765
        %v2768 = vshrl.u32 %v2588, 16
        %v2770 = vshll.u32 %v2588, 16
        %v2772 = vrot.slane %v2770, 1
        %v2773 = vor.u32 %v2768, %v2772
        %v2775 = vshll.u32 %v2652, 16
        %v2777 = vrot.slane %v2775, 1
        %v2778 = vsel %vm1729, %v2773, %v2777
        %v2780 = vshrl.u32 %v2589, 16
        %v2782 = vshll.u32 %v2589, 16
        %v2784 = vrot.slane %v2782, 1
        %v2785 = vor.u32 %v2780, %v2784
        %v2787 = vshll.u32 %v2653, 16
        %v2789 = vrot.slane %v2787, 1
        %v2790 = vsel %vm1729, %v2785, %v2789
        %v2792 = vshrl.u32 %v2590, 16
        %v2794 = vshll.u32 %v2590, 16
        %v2796 = vrot.slane %v2794, 1
        %v2797 = vor.u32 %v2792, %v2796
        %v2799 = vshll.u32 %v2654, 16
        %v2801 = vrot.slane %v2799, 1
        %v2802 = vsel %vm1729, %v2797, %v2801
        %v2804 = vshrl.u32 %v2591, 16
        %v2806 = vshll.u32 %v2591, 16
        %v2808 = vrot.slane %v2806, 1
        %v2809 = vor.u32 %v2804, %v2808
        %v2811 = vshll.u32 %v2655, 16
        %v2813 = vrot.slane %v2811, 1
        %v2814 = vsel %vm1729, %v2809, %v2813
        %v2816 = vshrl.u32 %v2592, 16
        %v2818 = vshll.u32 %v2592, 16
        %v2820 = vrot.slane %v2818, 1
        %v2821 = vor.u32 %v2816, %v2820
        %v2823 = vshll.u32 %v2656, 16
        %v2825 = vrot.slane %v2823, 1
        %v2826 = vsel %vm1729, %v2821, %v2825
        %v2828 = vshrl.u32 %v2593, 16
        %v2830 = vshll.u32 %v2593, 16
        %v2832 = vrot.slane %v2830, 1
        %v2833 = vor.u32 %v2828, %v2832
        %v2835 = vshll.u32 %v2657, 16
        %v2837 = vrot.slane %v2835, 1
        %v2838 = vsel %vm1729, %v2833, %v2837
        %v2840 = vshrl.u32 %v2594, 16
        %v2842 = vshll.u32 %v2594, 16
        %v2844 = vrot.slane %v2842, 1
        %v2845 = vor.u32 %v2840, %v2844
        %v2847 = vshll.u32 %v2658, 16
        %v2849 = vrot.slane %v2847, 1
        %v2850 = vsel %vm1729, %v2845, %v2849
        %v2883 = vunpack.c.l.b16 %v1569
        %v2884 = vunpack.c.l.b16 %v1570
        %v2885 = vunpack.c.l.b16 %v1571
        %v2886 = vunpack.c.l.b16 %v1572
        %v2887 = vunpack.c.l.b16 %v1573
        %v2888 = vunpack.c.l.b16 %v1574
        %v2889 = vunpack.c.l.b16 %v1575
        %v2890 = vunpack.c.l.b16 %v1576
        %v2891 = vunpack.c.l.b16 %v1577
        %v2892 = vunpack.c.l.b16 %v1578
        %v2893 = vunpack.c.l.b16 %v1579
        %v2894 = vunpack.c.l.b16 %v1580
        %v2895 = vunpack.c.l.b16 %v1581
        %v2896 = vunpack.c.l.b16 %v1582
        %v2897 = vunpack.c.l.b16 %v1583
        %v2898 = vunpack.c.l.b16 %v1584
        %v2899 = vpack.c.b16 %v2548, %v2883
        %v2900 = vpack.c.b16 %v2550, %v2884
        %v2901 = vpack.c.b16 %v2552, %v2885
        %v2902 = vpack.c.b16 %v2554, %v2886
        %v2903 = vpack.c.b16 %v2556, %v2887
        %v2904 = vpack.c.b16 %v2558, %v2888
        %v2905 = vpack.c.b16 %v2560, %v2889
        %v2906 = vpack.c.b16 %v2562, %v2890
        %v2907 = vpack.c.b16 %v2564, %v2891
        %v2908 = vpack.c.b16 %v2566, %v2892
        %v2909 = vpack.c.b16 %v2568, %v2893
        %v2910 = vpack.c.b16 %v2570, %v2894
        %v2911 = vpack.c.b16 %v2572, %v2895
        %v2912 = vpack.c.b16 %v2574, %v2896
        %v2913 = vpack.c.b16 %v2576, %v2897
        %v2914 = vpack.c.b16 %v2578, %v2898
        %v2915 = vrot.slane %v2899, 1
        %v2916 = vrot.slane %v2643, 1
        %v2917 = vsel %vm1986, %v2915, %v2916
        %v2918 = vrot.slane %v2900, 1
        %v2919 = vrot.slane %v2644, 1
        %v2920 = vsel %vm1986, %v2918, %v2919
        %v2921 = vrot.slane %v2901, 1
        %v2922 = vrot.slane %v2645, 1
        %v2923 = vsel %vm1986, %v2921, %v2922
        %v2924 = vrot.slane %v2902, 1
        %v2925 = vrot.slane %v2646, 1
        %v2926 = vsel %vm1986, %v2924, %v2925
        %v2927 = vrot.slane %v2903, 1
        %v2928 = vrot.slane %v2647, 1
        %v2929 = vsel %vm1986, %v2927, %v2928
        %v2930 = vrot.slane %v2904, 1
        %v2931 = vrot.slane %v2648, 1
        %v2932 = vsel %vm1986, %v2930, %v2931
        %v2933 = vrot.slane %v2905, 1
        %v2934 = vrot.slane %v2649, 1
        %v2935 = vsel %vm1986, %v2933, %v2934
        %v2936 = vrot.slane %v2906, 1
        %v2937 = vrot.slane %v2650, 1
        %v2938 = vsel %vm1986, %v2936, %v2937
        %v2939 = vrot.slane %v2907, 1
        %v2940 = vrot.slane %v2651, 1
        %v2941 = vsel %vm1986, %v2939, %v2940
        %v2942 = vrot.slane %v2908, 1
        %v2943 = vrot.slane %v2652, 1
        %v2944 = vsel %vm1986, %v2942, %v2943
        %v2945 = vrot.slane %v2909, 1
        %v2946 = vrot.slane %v2653, 1
        %v2947 = vsel %vm1986, %v2945, %v2946
        %v2948 = vrot.slane %v2910, 1
        %v2949 = vrot.slane %v2654, 1
        %v2950 = vsel %vm1986, %v2948, %v2949
        %v2951 = vrot.slane %v2911, 1
        %v2952 = vrot.slane %v2655, 1
        %v2953 = vsel %vm1986, %v2951, %v2952
        %v2954 = vrot.slane %v2912, 1
        %v2955 = vrot.slane %v2656, 1
        %v2956 = vsel %vm1986, %v2954, %v2955
        %v2957 = vrot.slane %v2913, 1
        %v2958 = vrot.slane %v2657, 1
        %v2959 = vsel %vm1986, %v2957, %v2958
        %v2960 = vrot.slane %v2914, 1
        %v2961 = vrot.slane %v2658, 1
        %v2962 = vsel %vm1986, %v2960, %v2961
        %v2979 = vld [vmem:[#allocation6] sm:$0xf]
        %v2980 = vld [vmem:[#allocation6 + $0x4] sm:$0xf]
        %v2981 = vld [vmem:[#allocation6 + $0x8] sm:$0xf]
        %v2982 = vld [vmem:[#allocation6 + $0xc] sm:$0xf]
        %v2983 = vld [vmem:[#allocation6 + $0x10] sm:$0xf]
        %v2984 = vld [vmem:[#allocation6 + $0x14] sm:$0xf]
        %v2985 = vld [vmem:[#allocation6 + $0x18] sm:$0xf]
        %v2986 = vld [vmem:[#allocation6 + $0x1c] sm:$0xf]
        %v2987 = vld [vmem:[#allocation6 + $0x20] sm:$0xf]
        %v2988 = vld [vmem:[#allocation6 + $0x24] sm:$0xf]
        %v2989 = vld [vmem:[#allocation6 + $0x28] sm:$0xf]
        %v2990 = vld [vmem:[#allocation6 + $0x2c] sm:$0xf]
        %v2991 = vld [vmem:[#allocation6 + $0x30] sm:$0xf]
        %v2992 = vld [vmem:[#allocation6 + $0x34] sm:$0xf]
        %v2993 = vld [vmem:[#allocation6 + $0x38] sm:$0xf]
        %v2994 = vld [vmem:[#allocation6 + $0x3c] sm:$0xf]
        %v2995 = vld [vmem:[#allocation6 + $0x40] sm:$0xf]
        %v2996 = vld [vmem:[#allocation6 + $0x44] sm:$0xf]
        %v2997 = vld [vmem:[#allocation6 + $0x48] sm:$0xf]
        %v2998 = vld [vmem:[#allocation6 + $0x4c] sm:$0xf]
        %v2999 = vld [vmem:[#allocation6 + $0x50] sm:$0xf]
        %v3000 = vld [vmem:[#allocation6 + $0x54] sm:$0xf]
        %v3001 = vld [vmem:[#allocation6 + $0x58] sm:$0xf]
        %v3002 = vld [vmem:[#allocation6 + $0x5c] sm:$0xf]
        %v3003 = vld [vmem:[#allocation6 + $0x60] sm:$0xf]
        %v3004 = vld [vmem:[#allocation6 + $0x64] sm:$0xf]
        %v3005 = vld [vmem:[#allocation6 + $0x68] sm:$0xf]
        %v3006 = vld [vmem:[#allocation6 + $0x6c] sm:$0xf]
        %v3007 = vld [vmem:[#allocation6 + $0x70] sm:$0xf]
        %v3008 = vld [vmem:[#allocation6 + $0x74] sm:$0xf]
        %v3009 = vld [vmem:[#allocation6 + $0x78] sm:$0xf]
        %v3010 = vld [vmem:[#allocation6 + $0x7c] sm:$0xf]
        %v3011 = vld [vmem:[#allocation6 + $0x80] sm:$0xf]
        %v3012 = vld [vmem:[#allocation6 + $0x84] sm:$0xf]
        %v3013 = vld [vmem:[#allocation6 + $0x88] sm:$0xf]
        %v3014 = vld [vmem:[#allocation6 + $0x8c] sm:$0xf]
        %v3015 = vld [vmem:[#allocation6 + $0x90] sm:$0xf]
        %v3016 = vld [vmem:[#allocation6 + $0x94] sm:$0xf]
        %v3017 = vld [vmem:[#allocation6 + $0x98] sm:$0xf]
        %v3018 = vld [vmem:[#allocation6 + $0x9c] sm:$0xf]
        %v3019 = vld [vmem:[#allocation6 + $0xa0] sm:$0xf]
        %v3020 = vld [vmem:[#allocation6 + $0xa4] sm:$0xf]
        %v3021 = vld [vmem:[#allocation6 + $0xa8] sm:$0xf]
        %v3022 = vld [vmem:[#allocation6 + $0xac] sm:$0xf]
        %v3023 = vld [vmem:[#allocation6 + $0xb0] sm:$0xf]
        %v3024 = vld [vmem:[#allocation6 + $0xb4] sm:$0xf]
        %v3025 = vld [vmem:[#allocation6 + $0xb8] sm:$0xf]
        %v3026 = vld [vmem:[#allocation6 + $0xbc] sm:$0xf]
        %v3027 = vld [vmem:[#allocation6 + $0xc0] sm:$0xf]
        %v3028 = vld [vmem:[#allocation6 + $0xc4] sm:$0xf]
        %v3029 = vld [vmem:[#allocation6 + $0xc8] sm:$0xf]
        %v3030 = vld [vmem:[#allocation6 + $0xcc] sm:$0xf]
        %v3031 = vld [vmem:[#allocation6 + $0xd0] sm:$0xf]
        %v3032 = vld [vmem:[#allocation6 + $0xd4] sm:$0xf]
        %v3033 = vld [vmem:[#allocation6 + $0xd8] sm:$0xf]
        %v3034 = vld [vmem:[#allocation6 + $0xdc] sm:$0xf]
        %v3035 = vld [vmem:[#allocation6 + $0xe0] sm:$0xf]
        %v3036 = vld [vmem:[#allocation6 + $0xe4] sm:$0xf]
        %v3037 = vld [vmem:[#allocation6 + $0xe8] sm:$0xf]
        %v3038 = vld [vmem:[#allocation6 + $0xec] sm:$0xf]
        %v3039 = vld [vmem:[#allocation6 + $0xf0] sm:$0xf]
        %v3040 = vld [vmem:[#allocation6 + $0xf4] sm:$0xf]
        %v3041 = vld [vmem:[#allocation6 + $0xf8] sm:$0xf]
        %v3042 = vld [vmem:[#allocation6 + $0xfc] sm:$0xf]
        %v3043 = vld [vmem:[#allocation6 + $0x100] sm:$0xf]
        %v3044 = vld [vmem:[#allocation6 + $0x104] sm:$0xf]
        %v3045 = vld [vmem:[#allocation6 + $0x108] sm:$0xf]
        %v3046 = vld [vmem:[#allocation6 + $0x10c] sm:$0xf]
        %v3047 = vld [vmem:[#allocation6 + $0x110] sm:$0xf]
        %v3048 = vld [vmem:[#allocation6 + $0x114] sm:$0xf]
        %v3049 = vld [vmem:[#allocation6 + $0x118] sm:$0xf]
        %v3050 = vld [vmem:[#allocation6 + $0x11c] sm:$0xf]
        %v3051 = vld [vmem:[#allocation6 + $0x120] sm:$0xf]
        %v3052 = vld [vmem:[#allocation6 + $0x124] sm:$0xf]
        %v3053 = vld [vmem:[#allocation6 + $0x128] sm:$0xf]
        %v3054 = vld [vmem:[#allocation6 + $0x12c] sm:$0xf]
        %v3055 = vld [vmem:[#allocation6 + $0x130] sm:$0xf]
        %v3056 = vld [vmem:[#allocation6 + $0x134] sm:$0xf]
        %v3057 = vld [vmem:[#allocation6 + $0x138] sm:$0xf]
        %v3058 = vld [vmem:[#allocation6 + $0x13c] sm:$0xf]
        %v3059 = vld [vmem:[#allocation6 + $0x140] sm:$0xf]
        %v3060 = vld [vmem:[#allocation6 + $0x144] sm:$0xf]
        %v3061 = vld [vmem:[#allocation6 + $0x148] sm:$0xf]
        %v3062 = vld [vmem:[#allocation6 + $0x14c] sm:$0xf]
        %v3063 = vld [vmem:[#allocation6 + $0x150] sm:$0xf]
        %v3064 = vld [vmem:[#allocation6 + $0x154] sm:$0xf]
        %v3065 = vld [vmem:[#allocation6 + $0x158] sm:$0xf]
        %v3066 = vld [vmem:[#allocation6 + $0x15c] sm:$0xf]
        %v3067 = vld [vmem:[#allocation6 + $0x160] sm:$0xf]
        %v3068 = vld [vmem:[#allocation6 + $0x164] sm:$0xf]
        %v3069 = vld [vmem:[#allocation6 + $0x168] sm:$0xf]
        %v3070 = vld [vmem:[#allocation6 + $0x16c] sm:$0xf]
        %v3071 = vld [vmem:[#allocation6 + $0x170] sm:$0xf]
        %v3072 = vld [vmem:[#allocation6 + $0x174] sm:$0xf]
        %v3073 = vld [vmem:[#allocation6 + $0x178] sm:$0xf]
        %v3074 = vld [vmem:[#allocation6 + $0x17c] sm:$0xf]
        %v3075 = vld [vmem:[#allocation6 + $0x180] sm:$0xf]
        %v3076 = vld [vmem:[#allocation6 + $0x184] sm:$0xf]
        %v3077 = vld [vmem:[#allocation6 + $0x188] sm:$0xf]
        %v3078 = vld [vmem:[#allocation6 + $0x18c] sm:$0xf]
        %v3079 = vld [vmem:[#allocation6 + $0x190] sm:$0xf]
        %v3080 = vld [vmem:[#allocation6 + $0x194] sm:$0xf]
        %v3081 = vld [vmem:[#allocation6 + $0x198] sm:$0xf]
        %v3082 = vld [vmem:[#allocation6 + $0x19c] sm:$0xf]
        %v3083 = vld [vmem:[#allocation6 + $0x1a0] sm:$0xf]
        %v3084 = vld [vmem:[#allocation6 + $0x1a4] sm:$0xf]
        %v3085 = vld [vmem:[#allocation6 + $0x1a8] sm:$0xf]
        %v3086 = vld [vmem:[#allocation6 + $0x1ac] sm:$0xf]
        %v3087 = vld [vmem:[#allocation6 + $0x1b0] sm:$0xf]
        %v3088 = vld [vmem:[#allocation6 + $0x1b4] sm:$0xf]
        %v3089 = vld [vmem:[#allocation6 + $0x1b8] sm:$0xf]
        %v3090 = vld [vmem:[#allocation6 + $0x1bc] sm:$0xf]
        %v3091 = vld [vmem:[#allocation6 + $0x1c0] sm:$0xf]
        %v3092 = vld [vmem:[#allocation6 + $0x1c4] sm:$0xf]
        %v3093 = vld [vmem:[#allocation6 + $0x1c8] sm:$0xf]
        %v3094 = vld [vmem:[#allocation6 + $0x1cc] sm:$0xf]
        %v3095 = vld [vmem:[#allocation6 + $0x1d0] sm:$0xf]
        %v3096 = vld [vmem:[#allocation6 + $0x1d4] sm:$0xf]
        %v3097 = vld [vmem:[#allocation6 + $0x1d8] sm:$0xf]
        %v3098 = vld [vmem:[#allocation6 + $0x1dc] sm:$0xf]
        %v3099 = vld [vmem:[#allocation6 + $0x1e0] sm:$0xf]
        %v3100 = vld [vmem:[#allocation6 + $0x1e4] sm:$0xf]
        %v3101 = vld [vmem:[#allocation6 + $0x1e8] sm:$0xf]
        %v3102 = vld [vmem:[#allocation6 + $0x1ec] sm:$0xf]
        %v3103 = vld [vmem:[#allocation6 + $0x1f0] sm:$0xf]
        %v3104 = vld [vmem:[#allocation6 + $0x1f4] sm:$0xf]
        %v3105 = vld [vmem:[#allocation6 + $0x1f8] sm:$0xf]
        %v3106 = vld [vmem:[#allocation6 + $0x1fc] sm:$0xf]
        %v3107 = vld [vmem:[#allocation6 + $0x200] sm:$0xf]
        %v3108 = vld [vmem:[#allocation6 + $0x204] sm:$0xf]
        %v3109 = vld [vmem:[#allocation6 + $0x208] sm:$0xf]
        %v3110 = vld [vmem:[#allocation6 + $0x20c] sm:$0xf]
        %v3111 = vld [vmem:[#allocation6 + $0x210] sm:$0xf]
        %v3112 = vld [vmem:[#allocation6 + $0x214] sm:$0xf]
        %v3113 = vld [vmem:[#allocation6 + $0x218] sm:$0xf]
        %v3114 = vld [vmem:[#allocation6 + $0x21c] sm:$0xf]
        %v3115 = vld [vmem:[#allocation6 + $0x220] sm:$0xf]
        %v3116 = vld [vmem:[#allocation6 + $0x224] sm:$0xf]
        %v3117 = vld [vmem:[#allocation6 + $0x228] sm:$0xf]
        %v3118 = vld [vmem:[#allocation6 + $0x22c] sm:$0xf]
        %v3119 = vld [vmem:[#allocation6 + $0x230] sm:$0xf]
        %v3120 = vld [vmem:[#allocation6 + $0x234] sm:$0xf]
        %v3121 = vld [vmem:[#allocation6 + $0x238] sm:$0xf]
        %v3122 = vld [vmem:[#allocation6 + $0x23c] sm:$0xf]
        %v3123 = vld [vmem:[%s4] sm:$0x1]
        %v3125 = vlaneseq
        %v3126 = vshrl.u32 %v3125, 7
        %v3127 = vsub.s32 0, %v3126
        %v3128 = vrot.slane %v3123, %v3127
        %v3274 = vunpack.c.l.b16 %v2979
        %v3275 = vunpack.c.l.b16 %v2980
        %v3276 = vunpack.c.l.b16 %v2981
        %v3277 = vunpack.c.l.b16 %v2982
        %v3278 = vunpack.c.l.b16 %v2983
        %v3279 = vunpack.c.l.b16 %v2984
        %v3280 = vunpack.c.l.b16 %v2985
        %v3281 = vunpack.c.l.b16 %v2986
        %v3282 = vunpack.c.l.b16 %v2987
        %v3283 = vunpack.c.l.b16 %v2988
        %v3284 = vunpack.c.l.b16 %v2989
        %v3285 = vunpack.c.l.b16 %v2990
        %v3286 = vunpack.c.l.b16 %v2991
        %v3287 = vunpack.c.l.b16 %v2992
        %v3288 = vunpack.c.l.b16 %v2993
        %v3289 = vunpack.c.l.b16 %v2994
        %v3290 = vunpack.c.l.b16 %v2995
        %v3291 = vunpack.c.l.b16 %v2996
        %v3292 = vunpack.c.l.b16 %v2997
        %v3293 = vunpack.c.l.b16 %v2998
        %v3294 = vunpack.c.l.b16 %v2999
        %v3295 = vunpack.c.l.b16 %v3000
        %v3296 = vunpack.c.l.b16 %v3001
        %v3297 = vunpack.c.l.b16 %v3002
        %v3298 = vunpack.c.l.b16 %v3003
        %v3299 = vunpack.c.l.b16 %v3004
        %v3300 = vunpack.c.l.b16 %v3005
        %v3301 = vunpack.c.l.b16 %v3006
        %v3302 = vunpack.c.l.b16 %v3007
        %v3303 = vunpack.c.l.b16 %v3008
        %v3304 = vunpack.c.l.b16 %v3009
        %v3305 = vunpack.c.l.b16 %v3010
        %v3306 = vunpack.c.l.b16 %v3011
        %v3307 = vunpack.c.l.b16 %v3012
        %v3308 = vunpack.c.l.b16 %v3013
        %v3309 = vunpack.c.l.b16 %v3014
        %v3310 = vunpack.c.l.b16 %v3015
        %v3311 = vunpack.c.l.b16 %v3016
        %v3312 = vunpack.c.l.b16 %v3017
        %v3313 = vunpack.c.l.b16 %v3018
        %v3314 = vunpack.c.l.b16 %v3019
        %v3315 = vunpack.c.l.b16 %v3020
        %v3316 = vunpack.c.l.b16 %v3021
        %v3317 = vunpack.c.l.b16 %v3022
        %v3318 = vunpack.c.l.b16 %v3023
        %v3319 = vunpack.c.l.b16 %v3024
        %v3320 = vunpack.c.l.b16 %v3025
        %v3321 = vunpack.c.l.b16 %v3026
        %v3322 = vunpack.c.l.b16 %v3027
        %v3323 = vunpack.c.l.b16 %v3028
        %v3324 = vunpack.c.l.b16 %v3029
        %v3325 = vunpack.c.l.b16 %v3030
        %v3326 = vunpack.c.l.b16 %v3031
        %v3327 = vunpack.c.l.b16 %v3032
        %v3328 = vunpack.c.l.b16 %v3033
        %v3329 = vunpack.c.l.b16 %v3034
        %v3330 = vunpack.c.l.b16 %v3035
        %v3331 = vunpack.c.l.b16 %v3036
        %v3332 = vunpack.c.l.b16 %v3037
        %v3333 = vunpack.c.l.b16 %v3038
        %v3334 = vunpack.c.l.b16 %v3039
        %v3335 = vunpack.c.l.b16 %v3040
        %v3336 = vunpack.c.l.b16 %v3041
        %v3337 = vunpack.c.l.b16 %v3042
        %v3338 = vunpack.c.l.b16 %v3043
        %v3339 = vunpack.c.l.b16 %v3044
        %v3340 = vunpack.c.l.b16 %v3045
        %v3341 = vunpack.c.l.b16 %v3046
        %v3342 = vunpack.c.l.b16 %v3047
        %v3343 = vunpack.c.l.b16 %v3048
        %v3344 = vunpack.c.l.b16 %v3049
        %v3345 = vunpack.c.l.b16 %v3050
        %v3346 = vunpack.c.l.b16 %v3051
        %v3347 = vunpack.c.l.b16 %v3052
        %v3348 = vunpack.c.l.b16 %v3053
        %v3349 = vunpack.c.l.b16 %v3054
        %v3350 = vunpack.c.l.b16 %v3055
        %v3351 = vunpack.c.l.b16 %v3056
        %v3352 = vunpack.c.l.b16 %v3057
        %v3353 = vunpack.c.l.b16 %v3058
        %v3354 = vunpack.c.l.b16 %v3059
        %v3355 = vunpack.c.l.b16 %v3060
        %v3356 = vunpack.c.l.b16 %v3061
        %v3357 = vunpack.c.l.b16 %v3062
        %v3358 = vunpack.c.l.b16 %v3063
        %v3359 = vunpack.c.l.b16 %v3064
        %v3360 = vunpack.c.l.b16 %v3065
        %v3361 = vunpack.c.l.b16 %v3066
        %v3362 = vunpack.c.l.b16 %v3067
        %v3363 = vunpack.c.l.b16 %v3068
        %v3364 = vunpack.c.l.b16 %v3069
        %v3365 = vunpack.c.l.b16 %v3070
        %v3366 = vunpack.c.l.b16 %v3071
        %v3367 = vunpack.c.l.b16 %v3072
        %v3368 = vunpack.c.l.b16 %v3073
        %v3369 = vunpack.c.l.b16 %v3074
        %v3370 = vunpack.c.l.b16 %v3075
        %v3371 = vunpack.c.l.b16 %v3076
        %v3372 = vunpack.c.l.b16 %v3077
        %v3373 = vunpack.c.l.b16 %v3078
        %v3374 = vunpack.c.l.b16 %v3079
        %v3375 = vunpack.c.l.b16 %v3080
        %v3376 = vunpack.c.l.b16 %v3081
        %v3377 = vunpack.c.l.b16 %v3082
        %v3378 = vunpack.c.l.b16 %v3083
        %v3379 = vunpack.c.l.b16 %v3084
        %v3380 = vunpack.c.l.b16 %v3085
        %v3381 = vunpack.c.l.b16 %v3086
        %v3382 = vunpack.c.l.b16 %v3087
        %v3383 = vunpack.c.l.b16 %v3088
        %v3384 = vunpack.c.l.b16 %v3089
        %v3385 = vunpack.c.l.b16 %v3090
        %v3386 = vunpack.c.l.b16 %v3091
        %v3387 = vunpack.c.l.b16 %v3092
        %v3388 = vunpack.c.l.b16 %v3093
        %v3389 = vunpack.c.l.b16 %v3094
        %v3390 = vunpack.c.l.b16 %v3095
        %v3391 = vunpack.c.l.b16 %v3096
        %v3392 = vunpack.c.l.b16 %v3097
        %v3393 = vunpack.c.l.b16 %v3098
        %v3394 = vunpack.c.l.b16 %v3099
        %v3395 = vunpack.c.l.b16 %v3100
        %v3396 = vunpack.c.l.b16 %v3101
        %v3397 = vunpack.c.l.b16 %v3102
        %v3398 = vunpack.c.l.b16 %v3103
        %v3399 = vunpack.c.l.b16 %v3104
        %v3400 = vunpack.c.l.b16 %v3105
        %v3401 = vunpack.c.l.b16 %v3106
        %v3402 = vunpack.c.l.b16 %v3107
        %v3403 = vunpack.c.l.b16 %v3108
        %v3404 = vunpack.c.l.b16 %v3109
        %v3405 = vunpack.c.l.b16 %v3110
        %v3406 = vunpack.c.l.b16 %v3111
        %v3407 = vunpack.c.l.b16 %v3112
        %v3408 = vunpack.c.l.b16 %v3113
        %v3409 = vunpack.c.l.b16 %v3114
        %v3410 = vunpack.c.l.b16 %v3115
        %v3411 = vunpack.c.l.b16 %v3116
        %v3412 = vunpack.c.l.b16 %v3117
        %v3413 = vunpack.c.l.b16 %v3118
        %v3414 = vunpack.c.l.b16 %v3119
        %v3415 = vunpack.c.l.b16 %v3120
        %v3416 = vunpack.c.l.b16 %v3121
        %v3417 = vunpack.c.l.b16 %v3122
        %v3418 = vpack.c.b16 %v3275, %v3274
        %v3419 = vpack.c.b16 %v3277, %v3276
        %v3420 = vpack.c.b16 %v3279, %v3278
        %v3421 = vpack.c.b16 %v3281, %v3280
        %v3422 = vpack.c.b16 %v3283, %v3282
        %v3423 = vpack.c.b16 %v3285, %v3284
        %v3424 = vpack.c.b16 %v3287, %v3286
        %v3425 = vpack.c.b16 %v3289, %v3288
        %v3426 = vpack.c.b16 %v3291, %v3290
        %v3427 = vpack.c.b16 %v3293, %v3292
        %v3428 = vpack.c.b16 %v3295, %v3294
        %v3429 = vpack.c.b16 %v3297, %v3296
        %v3430 = vpack.c.b16 %v3299, %v3298
        %v3431 = vpack.c.b16 %v3301, %v3300
        %v3432 = vpack.c.b16 %v3303, %v3302
        %v3433 = vpack.c.b16 %v3305, %v3304
        %v3434 = vpack.c.b16 %v3307, %v3306
        %v3435 = vpack.c.b16 %v3309, %v3308
        %v3436 = vpack.c.b16 %v3311, %v3310
        %v3437 = vpack.c.b16 %v3313, %v3312
        %v3438 = vpack.c.b16 %v3315, %v3314
        %v3439 = vpack.c.b16 %v3317, %v3316
        %v3440 = vpack.c.b16 %v3319, %v3318
        %v3441 = vpack.c.b16 %v3321, %v3320
        %v3442 = vpack.c.b16 %v3323, %v3322
        %v3443 = vpack.c.b16 %v3325, %v3324
        %v3444 = vpack.c.b16 %v3327, %v3326
        %v3445 = vpack.c.b16 %v3329, %v3328
        %v3446 = vpack.c.b16 %v3331, %v3330
        %v3447 = vpack.c.b16 %v3333, %v3332
        %v3448 = vpack.c.b16 %v3335, %v3334
        %v3449 = vpack.c.b16 %v3337, %v3336
        %v3450 = vpack.c.b16 %v3339, %v3338
        %v3451 = vpack.c.b16 %v3341, %v3340
        %v3452 = vpack.c.b16 %v3343, %v3342
        %v3453 = vpack.c.b16 %v3345, %v3344
        %v3454 = vpack.c.b16 %v3347, %v3346
        %v3455 = vpack.c.b16 %v3349, %v3348
        %v3456 = vpack.c.b16 %v3351, %v3350
        %v3457 = vpack.c.b16 %v3353, %v3352
        %v3458 = vpack.c.b16 %v3355, %v3354
        %v3459 = vpack.c.b16 %v3357, %v3356
        %v3460 = vpack.c.b16 %v3359, %v3358
        %v3461 = vpack.c.b16 %v3361, %v3360
        %v3462 = vpack.c.b16 %v3363, %v3362
        %v3463 = vpack.c.b16 %v3365, %v3364
        %v3464 = vpack.c.b16 %v3367, %v3366
        %v3465 = vpack.c.b16 %v3369, %v3368
        %v3466 = vpack.c.b16 %v3371, %v3370
        %v3467 = vpack.c.b16 %v3373, %v3372
        %v3468 = vpack.c.b16 %v3375, %v3374
        %v3469 = vpack.c.b16 %v3377, %v3376
        %v3470 = vpack.c.b16 %v3379, %v3378
        %v3471 = vpack.c.b16 %v3381, %v3380
        %v3472 = vpack.c.b16 %v3383, %v3382
        %v3473 = vpack.c.b16 %v3385, %v3384
        %v3474 = vpack.c.b16 %v3387, %v3386
        %v3475 = vpack.c.b16 %v3389, %v3388
        %v3476 = vpack.c.b16 %v3391, %v3390
        %v3477 = vpack.c.b16 %v3393, %v3392
        %v3478 = vpack.c.b16 %v3395, %v3394
        %v3479 = vpack.c.b16 %v3397, %v3396
        %v3480 = vpack.c.b16 %v3399, %v3398
        %v3481 = vpack.c.b16 %v3401, %v3400
        %v3482 = vpack.c.b16 %v3403, %v3402
        %v3483 = vpack.c.b16 %v3405, %v3404
        %v3484 = vpack.c.b16 %v3407, %v3406
        %v3485 = vpack.c.b16 %v3409, %v3408
        %v3486 = vpack.c.b16 %v3411, %v3410
        %v3487 = vpack.c.b16 %v3413, %v3412
        %v3488 = vpack.c.b16 %v3415, %v3414
        %v3489 = vpack.c.b16 %v3417, %v3416
        %3562 = vmatprep.subr.bf16.mxu0 0
        %3563 = vmatpush1.bf16.msra.mxu0 %v3425
        %3564 = vmatprep.subr.bf16.mxu0 0
        %3565 = vmatpush1.bf16.msra.mxu0 %v3424
        %3566 = vmatprep.subr.bf16.mxu0 0
        %3567 = vmatpush1.bf16.msra.mxu0 %v3423
        %3568 = vmatprep.subr.bf16.mxu0 0
        %3569 = vmatpush1.bf16.msra.mxu0 %v3422
        %3570 = vmatprep.subr.bf16.mxu0 0
        %3571 = vmatpush1.bf16.msra.mxu0 %v3421
        %3572 = vmatprep.subr.bf16.mxu0 0
        %3573 = vmatpush1.bf16.msra.mxu0 %v3420
        %3574 = vmatprep.subr.bf16.mxu0 0
        %3575 = vmatpush1.bf16.msra.mxu0 %v3419
        %3576 = vmatprep.subr.bf16.mxu0 0
        %3577 = vmatpush1.bf16.msra.mxu0 %v3418
        %3578 = vmatprep.subr.bf16.mxu0 0
        %3579 = vmatpush2.bf16.msra.mxu0 %v3433
        %3580 = vmatprep.subr.bf16.mxu0 0
        %3581 = vmatpush2.bf16.msra.mxu0 %v3432
        %3582 = vmatprep.subr.bf16.mxu0 0
        %3583 = vmatpush2.bf16.msra.mxu0 %v3431
        %3584 = vmatprep.subr.bf16.mxu0 0
        %3585 = vmatpush2.bf16.msra.mxu0 %v3430
        %3586 = vmatprep.subr.bf16.mxu0 0
        %3587 = vmatpush2.bf16.msra.mxu0 %v3429
        %3588 = vmatprep.subr.bf16.mxu0 0
        %3589 = vmatpush2.bf16.msra.mxu0 %v3428
        %3590 = vmatprep.subr.bf16.mxu0 0
        %3591 = vmatpush2.bf16.msra.mxu0 %v3427
        %3592 = vmatprep.subr.bf16.mxu0 0
        %3593 = vmatpush2.bf16.msra.mxu0 %v3426
        %3594 = vmatprep.mubr.bf16.mxu0 %v1741
        %3595 = vmatmul.mubr.bf16.gmra.mxu0 %v1649
        %v3596 = vpop.f32.mrf.mxu0
        %v3597 = vadd.f32 %v3128, %v3596
        %v3598 = vpop.f32.mrf.mxu0
        %v3599 = vpop.f32.mrf.mxu0
        %v3600 = vadd.f32 %v3128, %v3599
        %v3601 = vpop.f32.mrf.mxu0
        %3602 = vmatprep.mubr.bf16.mxu0 %v1753
        %3603 = vmatmul.mubr.bf16.gmra.mxu0 %v1650
        %v3604 = vpop.f32.mrf.mxu0
        %v3605 = vadd.f32 %v3128, %v3604
        %v3606 = vpop.f32.mrf.mxu0
        %v3607 = vpop.f32.mrf.mxu0
        %v3608 = vadd.f32 %v3128, %v3607
        %v3609 = vpop.f32.mrf.mxu0
        %3610 = vmatprep.mubr.bf16.mxu0 %v1765
        %3611 = vmatmul.mubr.bf16.gmra.mxu0 %v1651
        %v3612 = vpop.f32.mrf.mxu0
        %v3613 = vadd.f32 %v3128, %v3612
        %v3614 = vpop.f32.mrf.mxu0
        %v3615 = vpop.f32.mrf.mxu0
        %v3616 = vadd.f32 %v3128, %v3615
        %v3617 = vpop.f32.mrf.mxu0
        %3618 = vmatprep.mubr.bf16.mxu0 %v1777
        %3619 = vmatmul.mubr.bf16.gmra.mxu0 %v1652
        %v3620 = vpop.f32.mrf.mxu0
        %v3621 = vadd.f32 %v3128, %v3620
        %v3622 = vpop.f32.mrf.mxu0
        %v3623 = vpop.f32.mrf.mxu0
        %v3624 = vadd.f32 %v3128, %v3623
        %v3625 = vpop.f32.mrf.mxu0
        %3626 = vmatprep.mubr.bf16.mxu0 %v1789
        %3627 = vmatmul.mubr.bf16.gmra.mxu0 %v1653
        %v3628 = vpop.f32.mrf.mxu0
        %v3629 = vadd.f32 %v3128, %v3628
        %v3630 = vpop.f32.mrf.mxu0
        %v3631 = vpop.f32.mrf.mxu0
        %v3632 = vadd.f32 %v3128, %v3631
        %v3633 = vpop.f32.mrf.mxu0
        %3634 = vmatprep.mubr.bf16.mxu0 %v1801
        %3635 = vmatmul.mubr.bf16.gmra.mxu0 %v1654
        %v3636 = vpop.f32.mrf.mxu0
        %v3637 = vadd.f32 %v3128, %v3636
        %v3638 = vpop.f32.mrf.mxu0
        %v3639 = vpop.f32.mrf.mxu0
        %v3640 = vadd.f32 %v3128, %v3639
        %v3641 = vpop.f32.mrf.mxu0
        %3642 = vmatprep.mubr.bf16.mxu0 %v1813
        %3643 = vmatmul.mubr.bf16.gmra.mxu0 %v1655
        %v3644 = vpop.f32.mrf.mxu0
        %v3645 = vadd.f32 %v3128, %v3644
        %v3646 = vpop.f32.mrf.mxu0
        %v3647 = vpop.f32.mrf.mxu0
        %v3648 = vadd.f32 %v3128, %v3647
        %v3649 = vpop.f32.mrf.mxu0
        %3650 = vmatprep.mubr.bf16.mxu0 %v1825
        %3651 = vmatmul.mubr.bf16.gmra.mxu0 %v1656
        %v3652 = vpop.f32.mrf.mxu0
        %v3653 = vadd.f32 %v3128, %v3652
        %v3654 = vpop.f32.mrf.mxu0
        %v3655 = vpop.f32.mrf.mxu0
        %v3656 = vadd.f32 %v3128, %v3655
        %v3657 = vpop.f32.mrf.mxu0
        %3658 = vmatprep.mubr.bf16.mxu0 %v1837
        %3659 = vmatmul.mubr.bf16.gmra.mxu0 %v1657
        %v3660 = vpop.f32.mrf.mxu0
        %v3661 = vadd.f32 %v3128, %v3660
        %v3662 = vpop.f32.mrf.mxu0
        %v3663 = vpop.f32.mrf.mxu0
        %v3664 = vadd.f32 %v3128, %v3663
        %v3665 = vpop.f32.mrf.mxu0
        %3666 = vmatprep.mubr.bf16.mxu0 %v1849
        %3667 = vmatmul.mubr.bf16.gmra.mxu0 %v1658
        %v3668 = vpop.f32.mrf.mxu0
        %v3669 = vadd.f32 %v3128, %v3668
        %v3670 = vpop.f32.mrf.mxu0
        %v3671 = vpop.f32.mrf.mxu0
        %v3672 = vadd.f32 %v3128, %v3671
        %v3673 = vpop.f32.mrf.mxu0
        %3674 = vmatprep.mubr.bf16.mxu0 %v1861
        %3675 = vmatmul.mubr.bf16.gmra.mxu0 %v1659
        %v3676 = vpop.f32.mrf.mxu0
        %v3677 = vadd.f32 %v3128, %v3676
        %v3678 = vpop.f32.mrf.mxu0
        %v3679 = vpop.f32.mrf.mxu0
        %v3680 = vadd.f32 %v3128, %v3679
        %v3681 = vpop.f32.mrf.mxu0
        %3682 = vmatprep.mubr.bf16.mxu0 %v1873
        %3683 = vmatmul.mubr.bf16.gmra.mxu0 %v1660
        %v3684 = vpop.f32.mrf.mxu0
        %v3685 = vadd.f32 %v3128, %v3684
        %v3686 = vpop.f32.mrf.mxu0
        %v3687 = vpop.f32.mrf.mxu0
        %v3688 = vadd.f32 %v3128, %v3687
        %v3689 = vpop.f32.mrf.mxu0
        %3690 = vmatprep.mubr.bf16.mxu0 %v1885
        %3691 = vmatmul.mubr.bf16.gmra.mxu0 %v1661
        %v3692 = vpop.f32.mrf.mxu0
        %v3693 = vadd.f32 %v3128, %v3692
        %v3694 = vpop.f32.mrf.mxu0
        %v3695 = vpop.f32.mrf.mxu0
        %v3696 = vadd.f32 %v3128, %v3695
        %v3697 = vpop.f32.mrf.mxu0
        %3698 = vmatprep.mubr.bf16.mxu0 %v1897
        %3699 = vmatmul.mubr.bf16.gmra.mxu0 %v1662
        %v3700 = vpop.f32.mrf.mxu0
        %v3701 = vadd.f32 %v3128, %v3700
        %v3702 = vpop.f32.mrf.mxu0
        %v3703 = vpop.f32.mrf.mxu0
        %v3704 = vadd.f32 %v3128, %v3703
        %v3705 = vpop.f32.mrf.mxu0
        %3706 = vmatprep.mubr.bf16.mxu0 %v1909
        %3707 = vmatmul.mubr.bf16.gmra.mxu0 %v1663
        %v3708 = vpop.f32.mrf.mxu0
        %v3709 = vadd.f32 %v3128, %v3708
        %v3710 = vpop.f32.mrf.mxu0
        %v3711 = vpop.f32.mrf.mxu0
        %v3712 = vadd.f32 %v3128, %v3711
        %v3713 = vpop.f32.mrf.mxu0
        %3714 = vmatprep.mubr.bf16.mxu0 %v1921
        %3715 = vmatmul.mubr.bf16.gmra.mxu0 %v1664
        %v3716 = vpop.f32.mrf.mxu0
        %v3717 = vadd.f32 %v3128, %v3716
        %v3718 = vpop.f32.mrf.mxu0
        %v3719 = vpop.f32.mrf.mxu0
        %v3720 = vadd.f32 %v3128, %v3719
        %v3721 = vpop.f32.mrf.mxu0
        %3722 = vdwg.mxu0
        %3723 = vmatprep.subr.bf16.mxu0 0
        %3724 = vmatpush1.bf16.msra.mxu0 %v3441
        %3725 = vmatprep.subr.bf16.mxu0 0
        %3726 = vmatpush1.bf16.msra.mxu0 %v3440
        %3727 = vmatprep.subr.bf16.mxu0 0
        %3728 = vmatpush1.bf16.msra.mxu0 %v3439
        %3729 = vmatprep.subr.bf16.mxu0 0
        %3730 = vmatpush1.bf16.msra.mxu0 %v3438
        %3731 = vmatprep.subr.bf16.mxu0 0
        %3732 = vmatpush1.bf16.msra.mxu0 %v3437
        %3733 = vmatprep.subr.bf16.mxu0 0
        %3734 = vmatpush1.bf16.msra.mxu0 %v3436
        %3735 = vmatprep.subr.bf16.mxu0 0
        %3736 = vmatpush1.bf16.msra.mxu0 %v3435
        %3737 = vmatprep.subr.bf16.mxu0 0
        %3738 = vmatpush1.bf16.msra.mxu0 %v3434
        %3739 = vmatprep.subr.bf16.mxu0 0
        %3740 = vmatpush2.bf16.msra.mxu0 %v3449
        %3741 = vmatprep.subr.bf16.mxu0 0
        %3742 = vmatpush2.bf16.msra.mxu0 %v3448
        %3743 = vmatprep.subr.bf16.mxu0 0
        %3744 = vmatpush2.bf16.msra.mxu0 %v3447
        %3745 = vmatprep.subr.bf16.mxu0 0
        %3746 = vmatpush2.bf16.msra.mxu0 %v3446
        %3747 = vmatprep.subr.bf16.mxu0 0
        %3748 = vmatpush2.bf16.msra.mxu0 %v3445
        %3749 = vmatprep.subr.bf16.mxu0 0
        %3750 = vmatpush2.bf16.msra.mxu0 %v3444
        %3751 = vmatprep.subr.bf16.mxu0 0
        %3752 = vmatpush2.bf16.msra.mxu0 %v3443
        %3753 = vmatprep.subr.bf16.mxu0 0
        %3754 = vmatpush2.bf16.msra.mxu0 %v3442
        %3755 = vmatprep.mubr.bf16.mxu0 %v2115
        %3756 = vmatmul.mubr.bf16.gmra.mxu0 %v1989
        %v3757 = vpop.f32.mrf.mxu0
        %v3758 = vadd.f32 %v3597, %v3757
        %v3759 = vpop.f32.mrf.mxu0
        %v3760 = vpop.f32.mrf.mxu0
        %v3761 = vadd.f32 %v3600, %v3760
        %v3762 = vpop.f32.mrf.mxu0
        %3763 = vmatprep.mubr.bf16.mxu0 %v2116
        %3764 = vmatmul.mubr.bf16.gmra.mxu0 %v1992
        %v3765 = vpop.f32.mrf.mxu0
        %v3766 = vadd.f32 %v3605, %v3765
        %v3767 = vpop.f32.mrf.mxu0
        %v3768 = vpop.f32.mrf.mxu0
        %v3769 = vadd.f32 %v3608, %v3768
        %v3770 = vpop.f32.mrf.mxu0
        %3771 = vmatprep.mubr.bf16.mxu0 %v2117
        %3772 = vmatmul.mubr.bf16.gmra.mxu0 %v1995
        %v3773 = vpop.f32.mrf.mxu0
        %v3774 = vadd.f32 %v3613, %v3773
        %v3775 = vpop.f32.mrf.mxu0
        %v3776 = vpop.f32.mrf.mxu0
        %v3777 = vadd.f32 %v3616, %v3776
        %v3778 = vpop.f32.mrf.mxu0
        %3779 = vmatprep.mubr.bf16.mxu0 %v2118
        %3780 = vmatmul.mubr.bf16.gmra.mxu0 %v1998
        %v3781 = vpop.f32.mrf.mxu0
        %v3782 = vadd.f32 %v3621, %v3781
        %v3783 = vpop.f32.mrf.mxu0
        %v3784 = vpop.f32.mrf.mxu0
        %v3785 = vadd.f32 %v3624, %v3784
        %v3786 = vpop.f32.mrf.mxu0
        %3787 = vmatprep.mubr.bf16.mxu0 %v2119
        %3788 = vmatmul.mubr.bf16.gmra.mxu0 %v2001
        %v3789 = vpop.f32.mrf.mxu0
        %v3790 = vadd.f32 %v3629, %v3789
        %v3791 = vpop.f32.mrf.mxu0
        %v3792 = vpop.f32.mrf.mxu0
        %v3793 = vadd.f32 %v3632, %v3792
        %v3794 = vpop.f32.mrf.mxu0
        %3795 = vmatprep.mubr.bf16.mxu0 %v2120
        %3796 = vmatmul.mubr.bf16.gmra.mxu0 %v2004
        %v3797 = vpop.f32.mrf.mxu0
        %v3798 = vadd.f32 %v3637, %v3797
        %v3799 = vpop.f32.mrf.mxu0
        %v3800 = vpop.f32.mrf.mxu0
        %v3801 = vadd.f32 %v3640, %v3800
        %v3802 = vpop.f32.mrf.mxu0
        %3803 = vmatprep.mubr.bf16.mxu0 %v2121
        %3804 = vmatmul.mubr.bf16.gmra.mxu0 %v2007
        %v3805 = vpop.f32.mrf.mxu0
        %v3806 = vadd.f32 %v3645, %v3805
        %v3807 = vpop.f32.mrf.mxu0
        %v3808 = vpop.f32.mrf.mxu0
        %v3809 = vadd.f32 %v3648, %v3808
        %v3810 = vpop.f32.mrf.mxu0
        %3811 = vmatprep.mubr.bf16.mxu0 %v2122
        %3812 = vmatmul.mubr.bf16.gmra.mxu0 %v2010
        %v3813 = vpop.f32.mrf.mxu0
        %v3814 = vadd.f32 %v3653, %v3813
        %v3815 = vpop.f32.mrf.mxu0
        %v3816 = vpop.f32.mrf.mxu0
        %v3817 = vadd.f32 %v3656, %v3816
        %v3818 = vpop.f32.mrf.mxu0
        %3819 = vmatprep.mubr.bf16.mxu0 %v2123
        %3820 = vmatmul.mubr.bf16.gmra.mxu0 %v2013
        %v3821 = vpop.f32.mrf.mxu0
        %v3822 = vadd.f32 %v3661, %v3821
        %v3823 = vpop.f32.mrf.mxu0
        %v3824 = vpop.f32.mrf.mxu0
        %v3825 = vadd.f32 %v3664, %v3824
        %v3826 = vpop.f32.mrf.mxu0
        %3827 = vmatprep.mubr.bf16.mxu0 %v2124
        %3828 = vmatmul.mubr.bf16.gmra.mxu0 %v2016
        %v3829 = vpop.f32.mrf.mxu0
        %v3830 = vadd.f32 %v3669, %v3829
        %v3831 = vpop.f32.mrf.mxu0
        %v3832 = vpop.f32.mrf.mxu0
        %v3833 = vadd.f32 %v3672, %v3832
        %v3834 = vpop.f32.mrf.mxu0
        %3835 = vmatprep.mubr.bf16.mxu0 %v2125
        %3836 = vmatmul.mubr.bf16.gmra.mxu0 %v2019
        %v3837 = vpop.f32.mrf.mxu0
        %v3838 = vadd.f32 %v3677, %v3837
        %v3839 = vpop.f32.mrf.mxu0
        %v3840 = vpop.f32.mrf.mxu0
        %v3841 = vadd.f32 %v3680, %v3840
        %v3842 = vpop.f32.mrf.mxu0
        %3843 = vmatprep.mubr.bf16.mxu0 %v2126
        %3844 = vmatmul.mubr.bf16.gmra.mxu0 %v2022
        %v3845 = vpop.f32.mrf.mxu0
        %v3846 = vadd.f32 %v3685, %v3845
        %v3847 = vpop.f32.mrf.mxu0
        %v3848 = vpop.f32.mrf.mxu0
        %v3849 = vadd.f32 %v3688, %v3848
        %v3850 = vpop.f32.mrf.mxu0
        %3851 = vmatprep.mubr.bf16.mxu0 %v2127
        %3852 = vmatmul.mubr.bf16.gmra.mxu0 %v2025
        %v3853 = vpop.f32.mrf.mxu0
        %v3854 = vadd.f32 %v3693, %v3853
        %v3855 = vpop.f32.mrf.mxu0
        %v3856 = vpop.f32.mrf.mxu0
        %v3857 = vadd.f32 %v3696, %v3856
        %v3858 = vpop.f32.mrf.mxu0
        %3859 = vmatprep.mubr.bf16.mxu0 %v2128
        %3860 = vmatmul.mubr.bf16.gmra.mxu0 %v2028
        %v3861 = vpop.f32.mrf.mxu0
        %v3862 = vadd.f32 %v3701, %v3861
        %v3863 = vpop.f32.mrf.mxu0
        %v3864 = vpop.f32.mrf.mxu0
        %v3865 = vadd.f32 %v3704, %v3864
        %v3866 = vpop.f32.mrf.mxu0
        %3867 = vmatprep.mubr.bf16.mxu0 %v2129
        %3868 = vmatmul.mubr.bf16.gmra.mxu0 %v2031
        %v3869 = vpop.f32.mrf.mxu0
        %v3870 = vadd.f32 %v3709, %v3869
        %v3871 = vpop.f32.mrf.mxu0
        %v3872 = vpop.f32.mrf.mxu0
        %v3873 = vadd.f32 %v3712, %v3872
        %v3874 = vpop.f32.mrf.mxu0
        %3875 = vmatprep.mubr.bf16.mxu0 %v2130
        %3876 = vmatmul.mubr.bf16.gmra.mxu0 %v2034
        %v3877 = vpop.f32.mrf.mxu0
        %v3878 = vadd.f32 %v3717, %v3877
        %v3879 = vpop.f32.mrf.mxu0
        %v3880 = vpop.f32.mrf.mxu0
        %v3881 = vadd.f32 %v3720, %v3880
        %v3882 = vpop.f32.mrf.mxu0
        %3883 = vdwg.mxu0
        %3884 = vmatprep.subr.bf16.mxu0 0
        %3885 = vmatpush1.bf16.msra.mxu0 %v3457
        %3886 = vmatprep.subr.bf16.mxu0 0
        %3887 = vmatpush1.bf16.msra.mxu0 %v3456
        %3888 = vmatprep.subr.bf16.mxu0 0
        %3889 = vmatpush1.bf16.msra.mxu0 %v3455
        %3890 = vmatprep.subr.bf16.mxu0 0
        %3891 = vmatpush1.bf16.msra.mxu0 %v3454
        %3892 = vmatprep.subr.bf16.mxu0 0
        %3893 = vmatpush1.bf16.msra.mxu0 %v3453
        %3894 = vmatprep.subr.bf16.mxu0 0
        %3895 = vmatpush1.bf16.msra.mxu0 %v3452
        %3896 = vmatprep.subr.bf16.mxu0 0
        %3897 = vmatpush1.bf16.msra.mxu0 %v3451
        %3898 = vmatprep.subr.bf16.mxu0 0
        %3899 = vmatpush1.bf16.msra.mxu0 %v3450
        %3900 = vmatprep.subr.bf16.mxu0 0
        %3901 = vmatpush2.bf16.msra.mxu0 %v3465
        %3902 = vmatprep.subr.bf16.mxu0 0
        %3903 = vmatpush2.bf16.msra.mxu0 %v3464
        %3904 = vmatprep.subr.bf16.mxu0 0
        %3905 = vmatpush2.bf16.msra.mxu0 %v3463
        %3906 = vmatprep.subr.bf16.mxu0 0
        %3907 = vmatpush2.bf16.msra.mxu0 %v3462
        %3908 = vmatprep.subr.bf16.mxu0 0
        %3909 = vmatpush2.bf16.msra.mxu0 %v3461
        %3910 = vmatprep.subr.bf16.mxu0 0
        %3911 = vmatpush2.bf16.msra.mxu0 %v3460
        %3912 = vmatprep.subr.bf16.mxu0 0
        %3913 = vmatpush2.bf16.msra.mxu0 %v3459
        %3914 = vmatprep.subr.bf16.mxu0 0
        %3915 = vmatpush2.bf16.msra.mxu0 %v3458
        %3916 = vmatprep.mubr.bf16.mxu0 %v2453
        %3917 = vmatmul.mubr.bf16.gmra.mxu0 %v2206
        %v3918 = vpop.f32.mrf.mxu0
        %v3919 = vadd.f32 %v3758, %v3918
        %v3920 = vpop.f32.mrf.mxu0
        %v3921 = vpop.f32.mrf.mxu0
        %v3922 = vadd.f32 %v3761, %v3921
        %v3923 = vpop.f32.mrf.mxu0
        %3924 = vmatprep.mubr.bf16.mxu0 %v2456
        %3925 = vmatmul.mubr.bf16.gmra.mxu0 %v2218
        %v3926 = vpop.f32.mrf.mxu0
        %v3927 = vadd.f32 %v3766, %v3926
        %v3928 = vpop.f32.mrf.mxu0
        %v3929 = vpop.f32.mrf.mxu0
        %v3930 = vadd.f32 %v3769, %v3929
        %v3931 = vpop.f32.mrf.mxu0
        %3932 = vmatprep.mubr.bf16.mxu0 %v2459
        %3933 = vmatmul.mubr.bf16.gmra.mxu0 %v2230
        %v3934 = vpop.f32.mrf.mxu0
        %v3935 = vadd.f32 %v3774, %v3934
        %v3936 = vpop.f32.mrf.mxu0
        %v3937 = vpop.f32.mrf.mxu0
        %v3938 = vadd.f32 %v3777, %v3937
        %v3939 = vpop.f32.mrf.mxu0
        %3940 = vmatprep.mubr.bf16.mxu0 %v2462
        %3941 = vmatmul.mubr.bf16.gmra.mxu0 %v2242
        %v3942 = vpop.f32.mrf.mxu0
        %v3943 = vadd.f32 %v3782, %v3942
        %v3944 = vpop.f32.mrf.mxu0
        %v3945 = vpop.f32.mrf.mxu0
        %v3946 = vadd.f32 %v3785, %v3945
        %v3947 = vpop.f32.mrf.mxu0
        %3948 = vmatprep.mubr.bf16.mxu0 %v2465
        %3949 = vmatmul.mubr.bf16.gmra.mxu0 %v2254
        %v3950 = vpop.f32.mrf.mxu0
        %v3951 = vadd.f32 %v3790, %v3950
        %v3952 = vpop.f32.mrf.mxu0
        %v3953 = vpop.f32.mrf.mxu0
        %v3954 = vadd.f32 %v3793, %v3953
        %v3955 = vpop.f32.mrf.mxu0
        %3956 = vmatprep.mubr.bf16.mxu0 %v2468
        %3957 = vmatmul.mubr.bf16.gmra.mxu0 %v2266
        %v3958 = vpop.f32.mrf.mxu0
        %v3959 = vadd.f32 %v3798, %v3958
        %v3960 = vpop.f32.mrf.mxu0
        %v3961 = vpop.f32.mrf.mxu0
        %v3962 = vadd.f32 %v3801, %v3961
        %v3963 = vpop.f32.mrf.mxu0
        %3964 = vmatprep.mubr.bf16.mxu0 %v2471
        %3965 = vmatmul.mubr.bf16.gmra.mxu0 %v2278
        %v3966 = vpop.f32.mrf.mxu0
        %v3967 = vadd.f32 %v3806, %v3966
        %v3968 = vpop.f32.mrf.mxu0
        %v3969 = vpop.f32.mrf.mxu0
        %v3970 = vadd.f32 %v3809, %v3969
        %v3971 = vpop.f32.mrf.mxu0
        %3972 = vmatprep.mubr.bf16.mxu0 %v2474
        %3973 = vmatmul.mubr.bf16.gmra.mxu0 %v2290
        %v3974 = vpop.f32.mrf.mxu0
        %v3975 = vadd.f32 %v3814, %v3974
        %v3976 = vpop.f32.mrf.mxu0
        %v3977 = vpop.f32.mrf.mxu0
        %v3978 = vadd.f32 %v3817, %v3977
        %v3979 = vpop.f32.mrf.mxu0
        %3980 = vmatprep.mubr.bf16.mxu0 %v2477
        %3981 = vmatmul.mubr.bf16.gmra.mxu0 %v2302
        %v3982 = vpop.f32.mrf.mxu0
        %v3983 = vadd.f32 %v3822, %v3982
        %v3984 = vpop.f32.mrf.mxu0
        %v3985 = vpop.f32.mrf.mxu0
        %v3986 = vadd.f32 %v3825, %v3985
        %v3987 = vpop.f32.mrf.mxu0
        %3988 = vmatprep.mubr.bf16.mxu0 %v2480
        %3989 = vmatmul.mubr.bf16.gmra.mxu0 %v2314
        %v3990 = vpop.f32.mrf.mxu0
        %v3991 = vadd.f32 %v3830, %v3990
        %v3992 = vpop.f32.mrf.mxu0
        %v3993 = vpop.f32.mrf.mxu0
        %v3994 = vadd.f32 %v3833, %v3993
        %v3995 = vpop.f32.mrf.mxu0
        %3996 = vmatprep.mubr.bf16.mxu0 %v2483
        %3997 = vmatmul.mubr.bf16.gmra.mxu0 %v2326
        %v3998 = vpop.f32.mrf.mxu0
        %v3999 = vadd.f32 %v3838, %v3998
        %v4000 = vpop.f32.mrf.mxu0
        %v4001 = vpop.f32.mrf.mxu0
        %v4002 = vadd.f32 %v3841, %v4001
        %v4003 = vpop.f32.mrf.mxu0
        %4004 = vmatprep.mubr.bf16.mxu0 %v2486
        %4005 = vmatmul.mubr.bf16.gmra.mxu0 %v2338
        %v4006 = vpop.f32.mrf.mxu0
        %v4007 = vadd.f32 %v3846, %v4006
        %v4008 = vpop.f32.mrf.mxu0
        %v4009 = vpop.f32.mrf.mxu0
        %v4010 = vadd.f32 %v3849, %v4009
        %v4011 = vpop.f32.mrf.mxu0
        %4012 = vmatprep.mubr.bf16.mxu0 %v2489
        %4013 = vmatmul.mubr.bf16.gmra.mxu0 %v2350
        %v4014 = vpop.f32.mrf.mxu0
        %v4015 = vadd.f32 %v3854, %v4014
        %v4016 = vpop.f32.mrf.mxu0
        %v4017 = vpop.f32.mrf.mxu0
        %v4018 = vadd.f32 %v3857, %v4017
        %v4019 = vpop.f32.mrf.mxu0
        %4020 = vmatprep.mubr.bf16.mxu0 %v2492
        %4021 = vmatmul.mubr.bf16.gmra.mxu0 %v2362
        %v4022 = vpop.f32.mrf.mxu0
        %v4023 = vadd.f32 %v3862, %v4022
        %v4024 = vpop.f32.mrf.mxu0
        %v4025 = vpop.f32.mrf.mxu0
        %v4026 = vadd.f32 %v3865, %v4025
        %v4027 = vpop.f32.mrf.mxu0
        %4028 = vmatprep.mubr.bf16.mxu0 %v2495
        %4029 = vmatmul.mubr.bf16.gmra.mxu0 %v2374
        %v4030 = vpop.f32.mrf.mxu0
        %v4031 = vadd.f32 %v3870, %v4030
        %v4032 = vpop.f32.mrf.mxu0
        %v4033 = vpop.f32.mrf.mxu0
        %v4034 = vadd.f32 %v3873, %v4033
        %v4035 = vpop.f32.mrf.mxu0
        %4036 = vmatprep.mubr.bf16.mxu0 %v2498
        %4037 = vmatmul.mubr.bf16.gmra.mxu0 %v2386
        %v4038 = vpop.f32.mrf.mxu0
        %v4039 = vadd.f32 %v3878, %v4038
        %v4040 = vpop.f32.mrf.mxu0
        %v4041 = vpop.f32.mrf.mxu0
        %v4042 = vadd.f32 %v3881, %v4041
        %v4043 = vpop.f32.mrf.mxu0
        %4044 = vdwg.mxu0
        %4045 = vmatprep.subr.bf16.mxu0 0
        %4046 = vmatpush1.bf16.msra.mxu0 %v3473
        %4047 = vmatprep.subr.bf16.mxu0 0
        %4048 = vmatpush1.bf16.msra.mxu0 %v3472
        %4049 = vmatprep.subr.bf16.mxu0 0
        %4050 = vmatpush1.bf16.msra.mxu0 %v3471
        %4051 = vmatprep.subr.bf16.mxu0 0
        %4052 = vmatpush1.bf16.msra.mxu0 %v3470
        %4053 = vmatprep.subr.bf16.mxu0 0
        %4054 = vmatpush1.bf16.msra.mxu0 %v3469
        %4055 = vmatprep.subr.bf16.mxu0 0
        %4056 = vmatpush1.bf16.msra.mxu0 %v3468
        %4057 = vmatprep.subr.bf16.mxu0 0
        %4058 = vmatpush1.bf16.msra.mxu0 %v3467
        %4059 = vmatprep.subr.bf16.mxu0 0
        %4060 = vmatpush1.bf16.msra.mxu0 %v3466
        %4061 = vmatprep.subr.bf16.mxu0 0
        %4062 = vmatpush2.bf16.msra.mxu0 %v3481
        %4063 = vmatprep.subr.bf16.mxu0 0
        %4064 = vmatpush2.bf16.msra.mxu0 %v3480
        %4065 = vmatprep.subr.bf16.mxu0 0
        %4066 = vmatpush2.bf16.msra.mxu0 %v3479
        %4067 = vmatprep.subr.bf16.mxu0 0
        %4068 = vmatpush2.bf16.msra.mxu0 %v3478
        %4069 = vmatprep.subr.bf16.mxu0 0
        %4070 = vmatpush2.bf16.msra.mxu0 %v3477
        %4071 = vmatprep.subr.bf16.mxu0 0
        %4072 = vmatpush2.bf16.msra.mxu0 %v3476
        %4073 = vmatprep.subr.bf16.mxu0 0
        %4074 = vmatpush2.bf16.msra.mxu0 %v3475
        %4075 = vmatprep.subr.bf16.mxu0 0
        %4076 = vmatpush2.bf16.msra.mxu0 %v3474
        %4077 = vmatprep.mubr.bf16.mxu0 %v2670
        %4078 = vmatmul.mubr.bf16.gmra.mxu0 %v2579
        %v4079 = vpop.f32.mrf.mxu0
        %v4080 = vadd.f32 %v3919, %v4079
        %v4081 = vpop.f32.mrf.mxu0
        %v4082 = vpop.f32.mrf.mxu0
        %v4083 = vadd.f32 %v3922, %v4082
        %v4084 = vpop.f32.mrf.mxu0
        %4085 = vmatprep.mubr.bf16.mxu0 %v2682
        %4086 = vmatmul.mubr.bf16.gmra.mxu0 %v2580
        %v4087 = vpop.f32.mrf.mxu0
        %v4088 = vadd.f32 %v3927, %v4087
        %v4089 = vpop.f32.mrf.mxu0
        %v4090 = vpop.f32.mrf.mxu0
        %v4091 = vadd.f32 %v3930, %v4090
        %v4092 = vpop.f32.mrf.mxu0
        %4093 = vmatprep.mubr.bf16.mxu0 %v2694
        %4094 = vmatmul.mubr.bf16.gmra.mxu0 %v2581
        %v4095 = vpop.f32.mrf.mxu0
        %v4096 = vadd.f32 %v3935, %v4095
        %v4097 = vpop.f32.mrf.mxu0
        %v4098 = vpop.f32.mrf.mxu0
        %v4099 = vadd.f32 %v3938, %v4098
        %v4100 = vpop.f32.mrf.mxu0
        %4101 = vmatprep.mubr.bf16.mxu0 %v2706
        %4102 = vmatmul.mubr.bf16.gmra.mxu0 %v2582
        %v4103 = vpop.f32.mrf.mxu0
        %v4104 = vadd.f32 %v3943, %v4103
        %v4105 = vpop.f32.mrf.mxu0
        %v4106 = vpop.f32.mrf.mxu0
        %v4107 = vadd.f32 %v3946, %v4106
        %v4108 = vpop.f32.mrf.mxu0
        %4109 = vmatprep.mubr.bf16.mxu0 %v2718
        %4110 = vmatmul.mubr.bf16.gmra.mxu0 %v2583
        %v4111 = vpop.f32.mrf.mxu0
        %v4112 = vadd.f32 %v3951, %v4111
        %v4113 = vpop.f32.mrf.mxu0
        %v4114 = vpop.f32.mrf.mxu0
        %v4115 = vadd.f32 %v3954, %v4114
        %v4116 = vpop.f32.mrf.mxu0
        %4117 = vmatprep.mubr.bf16.mxu0 %v2730
        %4118 = vmatmul.mubr.bf16.gmra.mxu0 %v2584
        %v4119 = vpop.f32.mrf.mxu0
        %v4120 = vadd.f32 %v3959, %v4119
        %v4121 = vpop.f32.mrf.mxu0
        %v4122 = vpop.f32.mrf.mxu0
        %v4123 = vadd.f32 %v3962, %v4122
        %v4124 = vpop.f32.mrf.mxu0
        %4125 = vmatprep.mubr.bf16.mxu0 %v2742
        %4126 = vmatmul.mubr.bf16.gmra.mxu0 %v2585
        %v4127 = vpop.f32.mrf.mxu0
        %v4128 = vadd.f32 %v3967, %v4127
        %v4129 = vpop.f32.mrf.mxu0
        %v4130 = vpop.f32.mrf.mxu0
        %v4131 = vadd.f32 %v3970, %v4130
        %v4132 = vpop.f32.mrf.mxu0
        %4133 = vmatprep.mubr.bf16.mxu0 %v2754
        %4134 = vmatmul.mubr.bf16.gmra.mxu0 %v2586
        %v4135 = vpop.f32.mrf.mxu0
        %v4136 = vadd.f32 %v3975, %v4135
        %v4137 = vpop.f32.mrf.mxu0
        %v4138 = vpop.f32.mrf.mxu0
        %v4139 = vadd.f32 %v3978, %v4138
        %v4140 = vpop.f32.mrf.mxu0
        %4141 = vmatprep.mubr.bf16.mxu0 %v2766
        %4142 = vmatmul.mubr.bf16.gmra.mxu0 %v2587
        %v4143 = vpop.f32.mrf.mxu0
        %v4144 = vadd.f32 %v3983, %v4143
        %v4145 = vpop.f32.mrf.mxu0
        %v4146 = vpop.f32.mrf.mxu0
        %v4147 = vadd.f32 %v3986, %v4146
        %v4148 = vpop.f32.mrf.mxu0
        %4149 = vmatprep.mubr.bf16.mxu0 %v2778
        %4150 = vmatmul.mubr.bf16.gmra.mxu0 %v2588
        %v4151 = vpop.f32.mrf.mxu0
        %v4152 = vadd.f32 %v3991, %v4151
        %v4153 = vpop.f32.mrf.mxu0
        %v4154 = vpop.f32.mrf.mxu0
        %v4155 = vadd.f32 %v3994, %v4154
        %v4156 = vpop.f32.mrf.mxu0
        %4157 = vmatprep.mubr.bf16.mxu0 %v2790
        %4158 = vmatmul.mubr.bf16.gmra.mxu0 %v2589
        %v4159 = vpop.f32.mrf.mxu0
        %v4160 = vadd.f32 %v3999, %v4159
        %v4161 = vpop.f32.mrf.mxu0
        %v4162 = vpop.f32.mrf.mxu0
        %v4163 = vadd.f32 %v4002, %v4162
        %v4164 = vpop.f32.mrf.mxu0
        %4165 = vmatprep.mubr.bf16.mxu0 %v2802
        %4166 = vmatmul.mubr.bf16.gmra.mxu0 %v2590
        %v4167 = vpop.f32.mrf.mxu0
        %v4168 = vadd.f32 %v4007, %v4167
        %v4169 = vpop.f32.mrf.mxu0
        %v4170 = vpop.f32.mrf.mxu0
        %v4171 = vadd.f32 %v4010, %v4170
        %v4172 = vpop.f32.mrf.mxu0
        %4173 = vmatprep.mubr.bf16.mxu0 %v2814
        %4174 = vmatmul.mubr.bf16.gmra.mxu0 %v2591
        %v4175 = vpop.f32.mrf.mxu0
        %v4176 = vadd.f32 %v4015, %v4175
        %v4177 = vpop.f32.mrf.mxu0
        %v4178 = vpop.f32.mrf.mxu0
        %v4179 = vadd.f32 %v4018, %v4178
        %v4180 = vpop.f32.mrf.mxu0
        %4181 = vmatprep.mubr.bf16.mxu0 %v2826
        %4182 = vmatmul.mubr.bf16.gmra.mxu0 %v2592
        %v4183 = vpop.f32.mrf.mxu0
        %v4184 = vadd.f32 %v4023, %v4183
        %v4185 = vpop.f32.mrf.mxu0
        %v4186 = vpop.f32.mrf.mxu0
        %v4187 = vadd.f32 %v4026, %v4186
        %v4188 = vpop.f32.mrf.mxu0
        %4189 = vmatprep.mubr.bf16.mxu0 %v2838
        %4190 = vmatmul.mubr.bf16.gmra.mxu0 %v2593
        %v4191 = vpop.f32.mrf.mxu0
        %v4192 = vadd.f32 %v4031, %v4191
        %v4193 = vpop.f32.mrf.mxu0
        %v4194 = vpop.f32.mrf.mxu0
        %v4195 = vadd.f32 %v4034, %v4194
        %v4196 = vpop.f32.mrf.mxu0
        %4197 = vmatprep.mubr.bf16.mxu0 %v2850
        %4198 = vmatmul.mubr.bf16.gmra.mxu0 %v2594
        %v4199 = vpop.f32.mrf.mxu0
        %v4200 = vadd.f32 %v4039, %v4199
        %v4201 = vpop.f32.mrf.mxu0
        %v4202 = vpop.f32.mrf.mxu0
        %v4203 = vadd.f32 %v4042, %v4202
        %v4204 = vpop.f32.mrf.mxu0
        %4205 = vdwg.mxu0
        %4206 = vmatprep.subr.bf16.mxu0 0
        %4207 = vmatpush1.bf16.msra.mxu0 %v3489
        %4208 = vmatprep.subr.bf16.mxu0 0
        %4209 = vmatpush1.bf16.msra.mxu0 %v3488
        %4210 = vmatprep.subr.bf16.mxu0 0
        %4211 = vmatpush1.bf16.msra.mxu0 %v3487
        %4212 = vmatprep.subr.bf16.mxu0 0
        %4213 = vmatpush1.bf16.msra.mxu0 %v3486
        %4214 = vmatprep.subr.bf16.mxu0 0
        %4215 = vmatpush1.bf16.msra.mxu0 %v3485
        %4216 = vmatprep.subr.bf16.mxu0 0
        %4217 = vmatpush1.bf16.msra.mxu0 %v3484
        %4218 = vmatprep.subr.bf16.mxu0 0
        %4219 = vmatpush1.bf16.msra.mxu0 %v3483
        %4220 = vmatprep.subr.bf16.mxu0 0
        %4221 = vmatpush1.bf16.msra.mxu0 %v3482
        %4222 = vmatprep.subr.bf16.mxu0 0
        %4223 = vmatpush2.bf16.msra.mxu0 0
        %4224 = vmatprep.subr.bf16.mxu0 0
        %4225 = vmatpush2.bf16.msra.mxu0 0
        %4226 = vmatprep.subr.bf16.mxu0 0
        %4227 = vmatpush2.bf16.msra.mxu0 0
        %4228 = vmatprep.subr.bf16.mxu0 0
        %4229 = vmatpush2.bf16.msra.mxu0 0
        %4230 = vmatprep.subr.bf16.mxu0 0
        %4231 = vmatpush2.bf16.msra.mxu0 0
        %4232 = vmatprep.subr.bf16.mxu0 0
        %4233 = vmatpush2.bf16.msra.mxu0 0
        %4234 = vmatprep.subr.bf16.mxu0 0
        %4235 = vmatpush2.bf16.msra.mxu0 0
        %4236 = vmatprep.subr.bf16.mxu0 0
        %4237 = vmatpush2.bf16.msra.mxu0 0
        %4238 = vmatprep.mubr.bf16.mxu0 0
        %4239 = vmatmul.mubr.bf16.gmra.mxu0 %v2917
        %v4240 = vpop.f32.mrf.mxu0
        %v4241 = vadd.f32 %v4080, %v4240
        %v4242 = vpop.f32.mrf.mxu0
        %v4243 = vpop.f32.mrf.mxu0
        %v4244 = vadd.f32 %v4083, %v4243
        %v4245 = vpop.f32.mrf.mxu0
        %4246 = vmatprep.mubr.bf16.mxu0 0
        %4247 = vmatmul.mubr.bf16.gmra.mxu0 %v2920
        %v4248 = vpop.f32.mrf.mxu0
        %v4249 = vadd.f32 %v4088, %v4248
        %v4250 = vpop.f32.mrf.mxu0
        %v4251 = vpop.f32.mrf.mxu0
        %v4252 = vadd.f32 %v4091, %v4251
        %v4253 = vpop.f32.mrf.mxu0
        %4254 = vmatprep.mubr.bf16.mxu0 0
        %4255 = vmatmul.mubr.bf16.gmra.mxu0 %v2923
        %v4256 = vpop.f32.mrf.mxu0
        %v4257 = vadd.f32 %v4096, %v4256
        %v4258 = vpop.f32.mrf.mxu0
        %v4259 = vpop.f32.mrf.mxu0
        %v4260 = vadd.f32 %v4099, %v4259
        %v4261 = vpop.f32.mrf.mxu0
        %4262 = vmatprep.mubr.bf16.mxu0 0
        %4263 = vmatmul.mubr.bf16.gmra.mxu0 %v2926
        %v4264 = vpop.f32.mrf.mxu0
        %v4265 = vadd.f32 %v4104, %v4264
        %v4266 = vpop.f32.mrf.mxu0
        %v4267 = vpop.f32.mrf.mxu0
        %v4268 = vadd.f32 %v4107, %v4267
        %v4269 = vpop.f32.mrf.mxu0
        %4270 = vmatprep.mubr.bf16.mxu0 0
        %4271 = vmatmul.mubr.bf16.gmra.mxu0 %v2929
        %v4272 = vpop.f32.mrf.mxu0
        %v4273 = vadd.f32 %v4112, %v4272
        %v4274 = vpop.f32.mrf.mxu0
        %v4275 = vpop.f32.mrf.mxu0
        %v4276 = vadd.f32 %v4115, %v4275
        %v4277 = vpop.f32.mrf.mxu0
        %4278 = vmatprep.mubr.bf16.mxu0 0
        %4279 = vmatmul.mubr.bf16.gmra.mxu0 %v2932
        %v4280 = vpop.f32.mrf.mxu0
        %v4281 = vadd.f32 %v4120, %v4280
        %v4282 = vpop.f32.mrf.mxu0
        %v4283 = vpop.f32.mrf.mxu0
        %v4284 = vadd.f32 %v4123, %v4283
        %v4285 = vpop.f32.mrf.mxu0
        %4286 = vmatprep.mubr.bf16.mxu0 0
        %4287 = vmatmul.mubr.bf16.gmra.mxu0 %v2935
        %v4288 = vpop.f32.mrf.mxu0
        %v4289 = vadd.f32 %v4128, %v4288
        %v4290 = vpop.f32.mrf.mxu0
        %v4291 = vpop.f32.mrf.mxu0
        %v4292 = vadd.f32 %v4131, %v4291
        %v4293 = vpop.f32.mrf.mxu0
        %4294 = vmatprep.mubr.bf16.mxu0 0
        %4295 = vmatmul.mubr.bf16.gmra.mxu0 %v2938
        %v4296 = vpop.f32.mrf.mxu0
        %v4297 = vadd.f32 %v4136, %v4296
        %v4298 = vpop.f32.mrf.mxu0
        %v4299 = vpop.f32.mrf.mxu0
        %v4300 = vadd.f32 %v4139, %v4299
        %v4301 = vpop.f32.mrf.mxu0
        %4302 = vmatprep.mubr.bf16.mxu0 0
        %4303 = vmatmul.mubr.bf16.gmra.mxu0 %v2941
        %v4304 = vpop.f32.mrf.mxu0
        %v4305 = vadd.f32 %v4144, %v4304
        %v4306 = vpop.f32.mrf.mxu0
        %v4307 = vpop.f32.mrf.mxu0
        %v4308 = vadd.f32 %v4147, %v4307
        %v4309 = vpop.f32.mrf.mxu0
        %4310 = vmatprep.mubr.bf16.mxu0 0
        %4311 = vmatmul.mubr.bf16.gmra.mxu0 %v2944
        %v4312 = vpop.f32.mrf.mxu0
        %v4313 = vadd.f32 %v4152, %v4312
        %v4314 = vpop.f32.mrf.mxu0
        %v4315 = vpop.f32.mrf.mxu0
        %v4316 = vadd.f32 %v4155, %v4315
        %v4317 = vpop.f32.mrf.mxu0
        %4318 = vmatprep.mubr.bf16.mxu0 0
        %4319 = vmatmul.mubr.bf16.gmra.mxu0 %v2947
        %v4320 = vpop.f32.mrf.mxu0
        %v4321 = vadd.f32 %v4160, %v4320
        %v4322 = vpop.f32.mrf.mxu0
        %v4323 = vpop.f32.mrf.mxu0
        %v4324 = vadd.f32 %v4163, %v4323
        %v4325 = vpop.f32.mrf.mxu0
        %4326 = vmatprep.mubr.bf16.mxu0 0
        %4327 = vmatmul.mubr.bf16.gmra.mxu0 %v2950
        %v4328 = vpop.f32.mrf.mxu0
        %v4329 = vadd.f32 %v4168, %v4328
        %v4330 = vpop.f32.mrf.mxu0
        %v4331 = vpop.f32.mrf.mxu0
        %v4332 = vadd.f32 %v4171, %v4331
        %v4333 = vpop.f32.mrf.mxu0
        %4334 = vmatprep.mubr.bf16.mxu0 0
        %4335 = vmatmul.mubr.bf16.gmra.mxu0 %v2953
        %v4336 = vpop.f32.mrf.mxu0
        %v4337 = vadd.f32 %v4176, %v4336
        %v4338 = vpop.f32.mrf.mxu0
        %v4339 = vpop.f32.mrf.mxu0
        %v4340 = vadd.f32 %v4179, %v4339
        %v4341 = vpop.f32.mrf.mxu0
        %4342 = vmatprep.mubr.bf16.mxu0 0
        %4343 = vmatmul.mubr.bf16.gmra.mxu0 %v2956
        %v4344 = vpop.f32.mrf.mxu0
        %v4345 = vadd.f32 %v4184, %v4344
        %v4346 = vpop.f32.mrf.mxu0
        %v4347 = vpop.f32.mrf.mxu0
        %v4348 = vadd.f32 %v4187, %v4347
        %v4349 = vpop.f32.mrf.mxu0
        %4350 = vmatprep.mubr.bf16.mxu0 0
        %4351 = vmatmul.mubr.bf16.gmra.mxu0 %v2959
        %v4352 = vpop.f32.mrf.mxu0
        %v4353 = vadd.f32 %v4192, %v4352
        %v4354 = vpop.f32.mrf.mxu0
        %v4355 = vpop.f32.mrf.mxu0
        %v4356 = vadd.f32 %v4195, %v4355
        %v4357 = vpop.f32.mrf.mxu0
        %4358 = vmatprep.mubr.bf16.mxu0 0
        %4359 = vmatmul.mubr.bf16.gmra.mxu0 %v2962
        %v4360 = vpop.f32.mrf.mxu0
        %v4361 = vadd.f32 %v4200, %v4360
        %v4362 = vpop.f32.mrf.mxu0
        %v4363 = vpop.f32.mrf.mxu0
        %v4364 = vadd.f32 %v4203, %v4363
        %v4365 = vpop.f32.mrf.mxu0
        %4366 = vdwg.mxu0
        %4367 = vxpose.xlu0.b32.start [1/16] %v4241, 128
        %4368 = vxpose.xlu0.b32.cont [2/16] %v4244, 128
        %4369 = vxpose.xlu0.b32.cont [3/16] %v4249, 128
        %4370 = vxpose.xlu0.b32.cont [4/16] %v4252, 128
        %4371 = vxpose.xlu0.b32.cont [5/16] %v4257, 128
        %4372 = vxpose.xlu0.b32.cont [6/16] %v4260, 128
        %4373 = vxpose.xlu0.b32.cont [7/16] %v4265, 128
        %4374 = vxpose.xlu0.b32.cont [8/16] %v4268, 128
        %4375 = vxpose.xlu0.b32.cont [9/16] %v4273, 128
        %4376 = vxpose.xlu0.b32.cont [10/16] %v4276, 128
        %4377 = vxpose.xlu0.b32.cont [11/16] %v4281, 128
        %4378 = vxpose.xlu0.b32.cont [12/16] %v4284, 128
        %4379 = vxpose.xlu0.b32.cont [13/16] %v4289, 128
        %4380 = vxpose.xlu0.b32.cont [14/16] %v4292, 128
        %4381 = vxpose.xlu0.b32.cont [15/16] %v4297, 128
        %4382 = vxpose.xlu0.b32.end [16/16] %v4300, 128
        %v4383 = vpop.trf.xlu0
        %v4384 = vpop.trf.xlu0
        %v4385 = vpop.trf.xlu0
        %v4386 = vpop.trf.xlu0
        %v4387 = vpop.trf.xlu0
        %v4388 = vpop.trf.xlu0
        %v4389 = vpop.trf.xlu0
        %v4390 = vpop.trf.xlu0
        %v4391 = vpop.trf.xlu0
        %v4392 = vpop.trf.xlu0
        %v4393 = vpop.trf.xlu0
        %v4394 = vpop.trf.xlu0
        %v4395 = vpop.trf.xlu0
        %v4396 = vpop.trf.xlu0
        %v4397 = vpop.trf.xlu0
        %v4398 = vpop.trf.xlu0
        %4399 = vxpose.xlu0.b32.start [1/16] %v4305, 128
        %4400 = vxpose.xlu0.b32.cont [2/16] %v4308, 128
        %4401 = vxpose.xlu0.b32.cont [3/16] %v4313, 128
        %4402 = vxpose.xlu0.b32.cont [4/16] %v4316, 128
        %4403 = vxpose.xlu0.b32.cont [5/16] %v4321, 128
        %4404 = vxpose.xlu0.b32.cont [6/16] %v4324, 128
        %4405 = vxpose.xlu0.b32.cont [7/16] %v4329, 128
        %4406 = vxpose.xlu0.b32.cont [8/16] %v4332, 128
        %4407 = vxpose.xlu0.b32.cont [9/16] %v4337, 128
        %4408 = vxpose.xlu0.b32.cont [10/16] %v4340, 128
        %4409 = vxpose.xlu0.b32.cont [11/16] %v4345, 128
        %4410 = vxpose.xlu0.b32.cont [12/16] %v4348, 128
        %4411 = vxpose.xlu0.b32.cont [13/16] %v4353, 128
        %4412 = vxpose.xlu0.b32.cont [14/16] %v4356, 128
        %4413 = vxpose.xlu0.b32.cont [15/16] %v4361, 128
        %4414 = vxpose.xlu0.b32.end [16/16] %v4364, 128
        %v4415 = vpop.trf.xlu0
        %v4416 = vpop.trf.xlu0
        %v4417 = vpop.trf.xlu0
        %v4418 = vpop.trf.xlu0
        %v4419 = vpop.trf.xlu0
        %v4420 = vpop.trf.xlu0
        %v4421 = vpop.trf.xlu0
        %v4422 = vpop.trf.xlu0
        %v4423 = vpop.trf.xlu0
        %v4424 = vpop.trf.xlu0
        %v4425 = vpop.trf.xlu0
        %v4426 = vpop.trf.xlu0
        %v4427 = vpop.trf.xlu0
        %v4428 = vpop.trf.xlu0
        %v4429 = vpop.trf.xlu0
        %v4430 = vpop.trf.xlu0
        %v4431 = vxor.u32 %v4383, 2147483648
        %v4432 = vxor.u32 %v4415, 2147483648
        %v4433 = vxor.u32 %v4384, 2147483648
        %v4434 = vxor.u32 %v4416, 2147483648
        %v4435 = vxor.u32 %v4385, 2147483648
        %v4436 = vxor.u32 %v4417, 2147483648
        %v4437 = vxor.u32 %v4386, 2147483648
        %v4438 = vxor.u32 %v4418, 2147483648
        %v4439 = vxor.u32 %v4387, 2147483648
        %v4440 = vxor.u32 %v4419, 2147483648
        %v4441 = vxor.u32 %v4388, 2147483648
        %v4442 = vxor.u32 %v4420, 2147483648
        %v4443 = vxor.u32 %v4389, 2147483648
        %v4444 = vxor.u32 %v4421, 2147483648
        %v4445 = vxor.u32 %v4390, 2147483648
        %v4446 = vxor.u32 %v4422, 2147483648
        %v4447 = vxor.u32 %v4391, 2147483648
        %v4448 = vxor.u32 %v4423, 2147483648
        %v4449 = vxor.u32 %v4392, 2147483648
        %v4450 = vxor.u32 %v4424, 2147483648
        %v4451 = vxor.u32 %v4393, 2147483648
        %v4452 = vxor.u32 %v4425, 2147483648
        %v4453 = vxor.u32 %v4394, 2147483648
        %v4454 = vxor.u32 %v4426, 2147483648
        %v4455 = vmul.f32 %v4431, 1.442695
        %v4456 = vpow.pop %v4455
        %v4457 = vmul.f32 %v4432, 1.442695
        %v4458 = vpow.pop %v4457
        %v4459 = vmul.f32 %v4433, 1.442695
        %v4460 = vpow.pop %v4459
        %v4461 = vmul.f32 %v4434, 1.442695
        %v4462 = vpow.pop %v4461
        %v4463 = vmul.f32 %v4435, 1.442695
        %v4464 = vpow.pop %v4463
        %v4465 = vmul.f32 %v4436, 1.442695
        %v4466 = vpow.pop %v4465
        %v4467 = vmul.f32 %v4437, 1.442695
        %v4468 = vpow.pop %v4467
        %v4469 = vmul.f32 %v4438, 1.442695
        %v4470 = vpow.pop %v4469
        %v4471 = vmul.f32 %v4439, 1.442695
        %v4472 = vpow.pop %v4471
        %v4473 = vmul.f32 %v4440, 1.442695
        %v4474 = vpow.pop %v4473
        %v4475 = vmul.f32 %v4441, 1.442695
        %v4476 = vpow.pop %v4475
        %v4477 = vmul.f32 %v4442, 1.442695
        %v4478 = vpow.pop %v4477
        %v4479 = vmul.f32 %v4443, 1.442695
        %v4480 = vpow.pop %v4479
        %v4481 = vmul.f32 %v4444, 1.442695
        %v4482 = vpow.pop %v4481
        %v4483 = vmul.f32 %v4445, 1.442695
        %v4484 = vpow.pop %v4483
        %v4485 = vmul.f32 %v4446, 1.442695
        %v4486 = vpow.pop %v4485
        %v4487 = vmul.f32 %v4447, 1.442695
        %v4488 = vpow.pop %v4487
        %v4489 = vmul.f32 %v4448, 1.442695
        %v4490 = vpow.pop %v4489
        %v4491 = vmul.f32 %v4449, 1.442695
        %v4492 = vpow.pop %v4491
        %v4493 = vmul.f32 %v4450, 1.442695
        %v4494 = vpow.pop %v4493
        %v4495 = vmul.f32 %v4451, 1.442695
        %v4496 = vpow.pop %v4495
        %v4497 = vmul.f32 %v4452, 1.442695
        %v4498 = vpow.pop %v4497
        %v4499 = vmul.f32 %v4453, 1.442695
        %v4500 = vpow.pop %v4499
        %v4501 = vmul.f32 %v4454, 1.442695
        %v4502 = vpow.pop %v4501
        %v4503 = vadd.f32 %v4456, 1.0
        %v4504 = vadd.f32 %v4458, 1.0
        %v4505 = vadd.f32 %v4460, 1.0
        %v4506 = vadd.f32 %v4462, 1.0
        %v4507 = vadd.f32 %v4464, 1.0
        %v4508 = vadd.f32 %v4466, 1.0
        %v4509 = vadd.f32 %v4468, 1.0
        %v4510 = vadd.f32 %v4470, 1.0
        %v4511 = vadd.f32 %v4472, 1.0
        %v4512 = vadd.f32 %v4474, 1.0
        %v4513 = vadd.f32 %v4476, 1.0
        %v4514 = vadd.f32 %v4478, 1.0
        %v4515 = vadd.f32 %v4480, 1.0
        %v4516 = vadd.f32 %v4482, 1.0
        %v4517 = vadd.f32 %v4484, 1.0
        %v4518 = vadd.f32 %v4486, 1.0
        %v4519 = vadd.f32 %v4488, 1.0
        %v4520 = vadd.f32 %v4490, 1.0
        %v4521 = vadd.f32 %v4492, 1.0
        %v4522 = vadd.f32 %v4494, 1.0
        %v4523 = vadd.f32 %v4496, 1.0
        %v4524 = vadd.f32 %v4498, 1.0
        %v4525 = vadd.f32 %v4500, 1.0
        %v4526 = vadd.f32 %v4502, 1.0
        %v4527 = vrcp.pop %v4503
        %v4528 = vmul.f32 1.0, %v4527
        %v4529 = vrcp.pop %v4504
        %v4530 = vmul.f32 1.0, %v4529
        %v4531 = vrcp.pop %v4505
        %v4532 = vmul.f32 1.0, %v4531
        %v4533 = vrcp.pop %v4506
        %v4534 = vmul.f32 1.0, %v4533
        %v4535 = vrcp.pop %v4507
        %v4536 = vmul.f32 1.0, %v4535
        %v4537 = vrcp.pop %v4508
        %v4538 = vmul.f32 1.0, %v4537
        %v4539 = vrcp.pop %v4509
        %v4540 = vmul.f32 1.0, %v4539
        %v4541 = vrcp.pop %v4510
        %v4542 = vmul.f32 1.0, %v4541
        %v4543 = vrcp.pop %v4511
        %v4544 = vmul.f32 1.0, %v4543
        %v4545 = vrcp.pop %v4512
        %v4546 = vmul.f32 1.0, %v4545
        %v4547 = vrcp.pop %v4513
        %v4548 = vmul.f32 1.0, %v4547
        %v4549 = vrcp.pop %v4514
        %v4550 = vmul.f32 1.0, %v4549
        %v4551 = vrcp.pop %v4515
        %v4552 = vmul.f32 1.0, %v4551
        %v4553 = vrcp.pop %v4516
        %v4554 = vmul.f32 1.0, %v4553
        %v4555 = vrcp.pop %v4517
        %v4556 = vmul.f32 1.0, %v4555
        %v4557 = vrcp.pop %v4518
        %v4558 = vmul.f32 1.0, %v4557
        %v4559 = vrcp.pop %v4519
        %v4560 = vmul.f32 1.0, %v4559
        %v4561 = vrcp.pop %v4520
        %v4562 = vmul.f32 1.0, %v4561
        %v4563 = vrcp.pop %v4521
        %v4564 = vmul.f32 1.0, %v4563
        %v4565 = vrcp.pop %v4522
        %v4566 = vmul.f32 1.0, %v4565
        %v4567 = vrcp.pop %v4523
        %v4568 = vmul.f32 1.0, %v4567
        %v4569 = vrcp.pop %v4524
        %v4570 = vmul.f32 1.0, %v4569
        %v4571 = vrcp.pop %v4525
        %v4572 = vmul.f32 1.0, %v4571
        %v4573 = vrcp.pop %v4526
        %v4574 = vmul.f32 1.0, %v4573
        %v4575 = vtanh.pop %v4395
        %v4576 = vtanh.pop %v4427
        %v4577 = vtanh.pop %v4396
        %v4578 = vtanh.pop %v4428
        %v4579 = vtanh.pop %v4397
        %v4580 = vtanh.pop %v4429
        %v4581 = vtanh.pop %v4398
        %v4582 = vtanh.pop %v4430
        %v4583 = vld [vmem:[%s247] sm:$0xff]
        %v4584 = vld [vmem:[%s247 + $0x8] sm:$0xff]
        %v4585 = vld [vmem:[%s247 + $0x10] sm:$0xff]
        %v4586 = vld [vmem:[%s247 + $0x18] sm:$0xff]
        %v4587 = vld [vmem:[%s247 + $0x20] sm:$0xff]
        %v4588 = vld [vmem:[%s247 + $0x28] sm:$0xff]
        %v4589 = vld [vmem:[%s247 + $0x30] sm:$0xff]
        %v4590 = vld [vmem:[%s247 + $0x38] sm:$0xff]
        %v4591 = vmul.f32 %v4544, %v4583
        %v4592 = vmul.f32 %v4546, %v4584
        %v4593 = vmul.f32 %v4548, %v4585
        %v4594 = vmul.f32 %v4550, %v4586
        %v4595 = vmul.f32 %v4552, %v4587
        %v4596 = vmul.f32 %v4554, %v4588
        %v4597 = vmul.f32 %v4556, %v4589
        %v4598 = vmul.f32 %v4558, %v4590
        %v4599 = vmul.f32 %v4528, %v4575
        %v4600 = vmul.f32 %v4530, %v4576
        %v4601 = vmul.f32 %v4532, %v4577
        %v4602 = vmul.f32 %v4534, %v4578
        %v4603 = vmul.f32 %v4536, %v4579
        %v4604 = vmul.f32 %v4538, %v4580
        %v4605 = vmul.f32 %v4540, %v4581
        %v4606 = vmul.f32 %v4542, %v4582
        %v4607 = vadd.f32 %v4591, %v4599
        %v4608 = vadd.f32 %v4592, %v4600
        %v4609 = vadd.f32 %v4593, %v4601
        %v4610 = vadd.f32 %v4594, %v4602
        %v4611 = vadd.f32 %v4595, %v4603
        %v4612 = vadd.f32 %v4596, %v4604
        %v4613 = vadd.f32 %v4597, %v4605
        %v4614 = vadd.f32 %v4598, %v4606
        %v4615 = vtanh.pop %v4607
        %v4616 = vtanh.pop %v4608
        %v4617 = vtanh.pop %v4609
        %v4618 = vtanh.pop %v4610
        %v4619 = vtanh.pop %v4611
        %v4620 = vtanh.pop %v4612
        %v4621 = vtanh.pop %v4613
        %v4622 = vtanh.pop %v4614
        %v4623 = vmul.f32 %v4560, %v4615
        %v4624 = vmul.f32 %v4562, %v4616
        %v4625 = vmul.f32 %v4564, %v4617
        %v4626 = vmul.f32 %v4566, %v4618
        %v4627 = vmul.f32 %v4568, %v4619
        %v4628 = vmul.f32 %v4570, %v4620
        %v4629 = vmul.f32 %v4572, %v4621
        %v4630 = vmul.f32 %v4574, %v4622
        %4631 = vst [vmem:[%s287] sm:$0xff] %v4623
        %4632 = vst [vmem:[%s287 + $0x8] sm:$0xff] %v4624
        %4633 = vst [vmem:[%s287 + $0x10] sm:$0xff] %v4625
        %4634 = vst [vmem:[%s287 + $0x18] sm:$0xff] %v4626
        %4635 = vst [vmem:[%s287 + $0x20] sm:$0xff] %v4627
        %4636 = vst [vmem:[%s287 + $0x28] sm:$0xff] %v4628
        %4637 = vst [vmem:[%s287 + $0x30] sm:$0xff] %v4629
        %4638 = vst [vmem:[%s287 + $0x38] sm:$0xff] %v4630
        %4639 = vst [vmem:[%s287 + $0x40] sm:$0xff] %v4607
        %4640 = vst [vmem:[%s287 + $0x48] sm:$0xff] %v4608
        %4641 = vst [vmem:[%s287 + $0x50] sm:$0xff] %v4609
        %4642 = vst [vmem:[%s287 + $0x58] sm:$0xff] %v4610
        %4643 = vst [vmem:[%s287 + $0x60] sm:$0xff] %v4611
        %4644 = vst [vmem:[%s287 + $0x68] sm:$0xff] %v4612
        %4645 = vst [vmem:[%s287 + $0x70] sm:$0xff] %v4613
        %4646 = vst [vmem:[%s287 + $0x78] sm:$0xff] %v4614
        %s4647 = sand.u32 %s151, 1
        %s4648 = scalar_lea.sflag [#allocation5], %s4647
        %s4649 = sand.u32 %s151, 1
        %s4650 = smul.addr %s4649, 128
        %s4651 = scalar_lea.vmem [#allocation8], %s4650
        // Predicated region
        $region49: #{tpu_custom_call.1} parent=39 // pred_check
          %p4652 = pneg %p161
        $region50: #{tpu_custom_call.1} parent=39 // pred_check_branch
          %4654 = sbr.rel (%p4652) target = $region52
        $region51: #{tpu_custom_call.1} parent=39 // pred_region
          %s4656 = ssub.s32 2048, 2048
          %4657 = vsyncadd %s4648, %s4656
          %s4658 = smul.addr %s23, 16
          %s4659 = smul.addr %s4658, 128
          %s4660 = scalar_lea.hbm %s5, %s4659
          %s4661 = sshll.u32 %s4651, 4
          %s4662 = int_to_ptr.vmem [resolvable:$true] %s4661
          %4667 = dma.vmem_to_hbm [thread:$0]  %s4662, 2048, %s4660, %s4648, 256, 256, 16
        $region52: #{tpu_custom_call.1} parent=39 // pred_fallthru
          _
      $region40: #{tpu_custom_call.1} parent=5 // pred_fallthru
        _
      %p4668 = scmp.le.s32.totalorder 2, %s18
      // Predicated region
      $region53: #{tpu_custom_call.1} parent=5 // pred_check
        %p4669 = pneg %p4668
      $region54: #{tpu_custom_call.1} parent=5 // pred_check_branch
        %4671 = sbr.rel (%p4669) target = $region56
      $region55: #{tpu_custom_call.1} parent=5 // pred_region
        %s4672 = ssub.s32 %s18, 2
        // Predicated region
        $region57: #{tpu_custom_call.1} parent=55 // pred_check
          %p4673 = pneg %p167
        $region58: #{tpu_custom_call.1} parent=55 // pred_check_branch
          %4675 = sbr.rel (%p4673) target = $region60
        $region59: #{tpu_custom_call.1} parent=55 // pred_region
          %s4676 = sand.u32 %s152, 1
          %s4677 = scalar_lea.sflag [#allocation5], %s4676
          %s4678 = sand.u32 %s152, 1
          %s4679 = smul.addr %s4678, 128
          %s4680 = scalar_lea.vmem [#allocation8], %s4679
          %4681 = dma.done %s4677, 2048
        $region60: #{tpu_custom_call.1} parent=55 // pred_fallthru
          _
      $region56: #{tpu_custom_call.1} parent=5 // pred_fallthru
        _
    $region6: #{tpu_custom_call.1} parent=1 // loop_footer
      %s22 = sadd.s32 1, %s18
    $region7: #{tpu_custom_call.1} parent=1 // loop_footer_branch
      %17 = sbr.rel target = $region3
    $region8: #{tpu_custom_call.1} parent=1 // loop_exit
      _
    %4682 = vsyncpa [#allocation4], 1
    %s4683 = scalar_lea.sflag [#allocation4], 1
    %4684 = vsyncpa %s4683, 1
    %4685 = vsyncpa [#allocation7], 1
    %4686 = vsyncpa [#allocation5], 1
    %s4687 = scalar_lea.sflag [#allocation5], 1
    %4688 = vsyncpa %s4687, 1

</llo_original>
